<compile_context>
chip_gen: v5e
topology: v5e:2x2
jax: 0.10.0
libtpu: 0.0.40
codegen_flags: <defaults>
</compile_context>

<pallas_src>
import functools

import jax
import jax.numpy as jnp
import numpy as np
from jax.experimental import pallas as pl
from jax.experimental.pallas import tpu as pltpu

BN_EPS = 1e-5  # torch.nn.BatchNorm2d default


def _bn_rows(y, inv_m):
    """BatchNorm2d(affine=False), training mode; y = [channels, M], stats/row.

    Centered two-pass biased variance (more robust than E[x^2]-E[x]^2)."""
    mean = jnp.sum(y, axis=1, keepdims=True) * inv_m
    d = y - mean
    var = jnp.sum(d * d, axis=1, keepdims=True) * inv_m
    return d * jax.lax.rsqrt(var + BN_EPS)


def _cell_kernel(alpha_ref, beta_ref, x0_ref, x1_ref, w01_ref, wf_ref,
                 mask_ref, out_ref, bank_ref, *,
                 num_nodes, W, C, Ck, k_groups, ksize, dil, pad, tap_stride):
    """Entire PC-DARTS normal cell, single invocation (no grid).

    alpha_ref: SMEM [num_edges]   (already column-0-selected -> reference bug)
    beta_ref : SMEM [num_edges]
    x0_ref   : VMEM [C_pp, M]     pre-ReLU input of node0 (pixels on lanes)
    x1_ref   : VMEM [C_p,  M]     pre-ReLU input of node1
    w01_ref  : VMEM [2C, C_pp+C_p]    block-diagonal 1x1 conv weights
    wf_ref   : VMEM [num_nodes, maxE*Ck, maxE*tap_stride]
               fused depthwise*pointwise im2col weights, block-diag over edges
    mask_ref : VMEM [25, M]       per-tap zero-padding boundary masks
    out_ref  : VMEM [num_nodes*C, M]
    bank_ref : VMEM [maxE*tap_stride, M]   reusable im2col tap bank scratch
    """
    M = out_ref.shape[1]
    inv_m = 1.0 / float(M)
    tap_rows = ksize * ksize * Ck

    # ---- node0 / node1: ReLU -> 1x1 conv (one block-diag MXU matmul) -> BN --
    x01 = jnp.concatenate([jnp.maximum(x0_ref[...], 0.0),
                           jnp.maximum(x1_ref[...], 0.0)], axis=0)
    y01 = jnp.dot(w01_ref[...], x01,
                  preferred_element_type=jnp.float32)          # [2C, M]
    s01 = _bn_rows(y01, inv_m)
    states = [s01[:C, :], s01[C:2 * C, :]]                     # each [C, M]

    # Zero the tap bank once (pad rows / not-yet-filled blocks must be 0.0,
    # never uninitialized, because the fused matmul spans the whole bank).
    bank_ref[...] = jnp.zeros(bank_ref.shape, jnp.float32)

    masks = mask_ref[...]                                      # [25, M]

    def fill_taps(state, slot):
        """Build the 25-tap im2col slab of ReLU(state[:Ck]) into the bank."""
        xp = jnp.maximum(state[:Ck, :], 0.0)                   # [Ck, M]
        taps = []
        for ky in range(ksize):
            for kx in range(ksize):
                t = ky * ksize + kx
                s = (ky * dil - pad) * W + (kx * dil - pad)    # flat lane shift
                rolled = xp if s == 0 else pltpu.roll(xp, shift=(-s) % M, axis=1)
                taps.append(rolled * masks[t:t + 1, :])
        block = jnp.concatenate(taps, axis=0)                  # [25*Ck, M]
        base = slot * tap_stride
        bank_ref[base:base + tap_rows, :] = block

    fill_taps(states[0], 0)
    fill_taps(states[1], 1)

    nodes = []
    offset = 0
    for i in range(num_nodes):
        E = 2 + i                                              # incoming edges

        # (1) ALL edges of this node: dilated-dw-5x5 + pointwise-1x1 fused
        #     into one block-diagonal im2col MXU matmul over the tap bank.
        y = jnp.dot(wf_ref[i], bank_ref[...],
                    preferred_element_type=jnp.float32)        # [maxE*Ck, M]
        bn = _bn_rows(y, inv_m)                                # per-edge BN(Ck)

        # (2) weighted reduction over edges: processed part gets
        #     alpha[e,0]*beta[e]; the raw (non-ReLU) bypass gets beta[e].
        proc = jnp.zeros((Ck, M), jnp.float32)
        byp = jnp.zeros((C - Ck, M), jnp.float32)
        for e in range(E):
            a0 = alpha_ref[offset + e]
            be = beta_ref[offset + e]
            proc = proc + (a0 * be) * bn[e * Ck:(e + 1) * Ck, :]
            byp = byp + be * states[e][Ck:, :]

        # (3) concat([proc, byp]) + channel_shuffle(k) == fixed row
        #     permutation applied with static indexing (no matmul).
        rows = []
        for o in range(C):
            src = (o % k_groups) * Ck + (o // k_groups)
            if src < Ck:
                rows.append(proc[src:src + 1, :])
            else:
                rows.append(byp[src - Ck:src - Ck + 1, :])
        node = jnp.concatenate(rows, axis=0)                   # [C, M]

        states.append(node)
        nodes.append(node)
        if i < num_nodes - 1:          # last node's state is never an edge input
            fill_taps(node, 2 + i)
        offset += E

    # ---- torch.cat(states[-num_nodes:], dim=channel): one lane-dense store --
    out_ref[...] = jnp.concatenate(nodes, axis=0).astype(out_ref.dtype)


class CellPCDartsPallas:
    """PC-DARTS normal cell as a single fused Pallas TPU kernel."""

    def __init__(self, num_nodes, C_pp, C_p, C, reduction, reduction_prev,
                 k=4, seed=0):
        assert not reduction and not reduction_prev, \
            "only the normal-cell configuration is implemented"
        assert C % k == 0
        self.num_nodes = num_nodes
        self.C_pp = C_pp
        self.C_p = C_p
        self.C = C
        self.k = k
        self.Ck = C // k
        self.ksize = 5
        self.dil = 2
        self.pad = 4
        self.num_edges = sum(2 + i for i in range(num_nodes))
        self.maxE = num_nodes + 1
        self.tap_rows = self.ksize * self.ksize * self.Ck          # 25*Ck
        self.tap_stride = ((self.tap_rows + 7) // 8) * 8           # 8-aligned
        self.bank_rows = self.maxE * self.tap_stride

        rng = np.random.default_rng(seed)

        def init(shape, fan_in):
            return (rng.standard_normal(shape).astype(np.float32)
                    / np.sqrt(np.float32(fan_in)))

        Ck = self.Ck
        # node0/node1: ReLUConvBN 1x1 weights, stored [out, in].
        w_node0 = init((C, C_pp), C_pp)
        w_node1 = init((C, C_p), C_p)
        # per-edge dil_conv_5x5: depthwise [5,5,Ck] + pointwise [Ck_out,Ck_in].
        dw = [init((self.ksize, self.ksize, Ck), self.ksize ** 2)
              for _ in range(self.num_edges)]
        pw = [init((Ck, Ck), Ck) for _ in range(self.num_edges)]

        # block-diagonal 1x1 weights for node0|node1 in one matmul
        w01 = np.zeros((2 * C, C_pp + C_p), np.float32)
        w01[:C, :C_pp] = w_node0
        w01[C:, C_pp:] = w_node1

        # fused depthwise*pointwise im2col weights, block-diag over edges:
        # wf[i, e*Ck + c', e*tap_stride + t*Ck + c] = pw[c',c] * dw[t,c]
        wf = np.zeros((num_nodes, self.maxE * Ck, self.bank_rows), np.float32)
        off = 0
        for i in range(num_nodes):
            for e in range(2 + i):
                j = off + e
                dw_flat = dw[j].reshape(self.ksize * self.ksize, Ck)   # [25,Ck]
                fused = (pw[j][:, None, :] * dw_flat[None, :, :]
                         ).reshape(Ck, self.tap_rows)                  # [Ck,25*Ck]
                wf[i, e * Ck:(e + 1) * Ck,
                   e * self.tap_stride:e * self.tap_stride + self.tap_rows] = fused
            off += 2 + i

        self.w01 = jnp.asarray(w01)
        self.wf = jnp.asarray(wf)

    def _tap_mask(self, N, H, W):
        """[25, N*H*W] validity mask for each dilated-5x5 tap (zero padding)."""
        M = N * H * W
        mask = np.zeros((self.ksize * self.ksize, M), np.float32)
        hh = np.arange(H)[:, None]
        ww = np.arange(W)[None, :]
        for ky in range(self.ksize):
            for kx in range(self.ksize):
                dy = ky * self.dil - self.pad
                dx = kx * self.dil - self.pad
                ok = ((hh + dy >= 0) & (hh + dy < H) &
                      (ww + dx >= 0) & (ww + dx < W)).astype(np.float32)
                mask[ky * self.ksize + kx] = np.tile(
                    ok.reshape(1, H * W), (N, 1)).reshape(M)
        return jnp.asarray(mask)

    def __call__(self, s0_nchw, s1_nchw, weights_alpha, weights_beta):
        N, _, H, W = s0_nchw.shape
        M = N * H * W
        # NCHW -> channels-on-sublanes / pixels-on-lanes [Cin, M]
        x0 = jnp.transpose(s0_nchw, (1, 0, 2, 3)).reshape(self.C_pp, M)
        x1 = jnp.transpose(s1_nchw, (1, 0, 2, 3)).reshape(self.C_p, M)
        alpha0 = weights_alpha[:, 0].astype(jnp.float32)   # reference-bug col 0
        beta = weights_beta.astype(jnp.float32)
        mask = self._tap_mask(N, H, W)

        kern = functools.partial(
            _cell_kernel, num_nodes=self.num_nodes, W=W, C=self.C, Ck=self.Ck,
            k_groups=self.k, ksize=self.ksize, dil=self.dil, pad=self.pad,
            tap_stride=self.tap_stride)

        smem = pl.BlockSpec(memory_space=pltpu.MemorySpace.SMEM)
        vmem = pl.BlockSpec(memory_space=pltpu.MemorySpace.VMEM)

        out2d = pl.pallas_call(
            kern,
            out_shape=jax.ShapeDtypeStruct((self.num_nodes * self.C, M),
                                           jnp.float32),
            in_specs=[smem, smem, vmem, vmem, vmem, vmem, vmem],
            out_specs=vmem,
            scratch_shapes=[pltpu.VMEM((self.bank_rows, M), jnp.float32)],
        )(alpha0, beta, x0, x1, self.w01, self.wf, mask)

        # [num_nodes*C, N, H, W] -> NCHW
        out = out2d.reshape(self.num_nodes * self.C, N, H, W)
        return jnp.transpose(out, (1, 0, 2, 3))


if __name__ == "__main__":
    num_nodes, C_pp, C_p, C, k = 4, 16, 16, 16, 4
    N, H, W = 2, 8, 8
    NUM_PRIMITIVES = 8   # standard PC-DARTS primitive list length

    cell = CellPCDartsPallas(num_nodes, C_pp, C_p, C,
                             reduction=False, reduction_prev=False,
                             k=k, seed=0)

    key = jax.random.PRNGKey(0)
    k1, k2, k3, k4 = jax.random.split(key, 4)
    s0 = jax.random.normal(k1, (N, C_pp, H, W), jnp.float32)
    s1 = jax.random.normal(k2, (N, C_p, H, W), jnp.float32)
    weights_alpha = jax.nn.softmax(
        jax.random.normal(k3, (cell.num_edges, NUM_PRIMITIVES), jnp.float32),
        axis=-1)
    weights_beta = jax.nn.softmax(
        jax.random.normal(k4, (cell.num_edges,), jnp.float32))

    fwd = jax.jit(lambda a, b, wa, wb: cell(a, b, wa, wb))
    out = jax.block_until_ready(fwd(s0, s1, weights_alpha, weights_beta))

    assert out.shape == (N, num_nodes * C, H, W), out.shape
    assert bool(jnp.all(jnp.isfinite(out)))
    print("KERNEL_OK")
</pallas_src>

<mosaic_0001>
module attributes {stable_mosaic.version = 11 : i64} {
  func.func @_cell_kernel(%arg0: memref<14xf32, #tpu.memory_space<smem>>, %arg1: memref<14xf32, #tpu.memory_space<smem>>, %arg2: memref<16x128xf32, #tpu.memory_space<vmem>>, %arg3: memref<16x128xf32, #tpu.memory_space<vmem>>, %arg4: memref<32x32xf32, #tpu.memory_space<vmem>>, %arg5: memref<4x20x520xf32, #tpu.memory_space<vmem>>, %arg6: memref<25x128xf32, #tpu.memory_space<vmem>>, %arg7: memref<64x128xf32, #tpu.memory_space<vmem>>, %arg8: memref<520x128xf32, #tpu.memory_space<vmem>>) attributes {dimension_semantics = [], scalar_prefetch = 0 : i64, scratch_operands = 1 : i64, tpu.core_type = #tpu.core_type<tc>} {
    %c0 = arith.constant 0 : index
    %c0_0 = arith.constant 0 : index
    %0 = vector.load %arg2[%c0, %c0_0] : memref<16x128xf32, #tpu.memory_space<vmem>>, vector<16x128xf32>
    %cst = arith.constant 0.000000e+00 : f32
    %1 = vector.broadcast %cst : f32 to vector<16x128xf32>
    %2 = arith.maximumf %0, %1 : vector<16x128xf32>
    %c0_1 = arith.constant 0 : index
    %c0_2 = arith.constant 0 : index
    %3 = vector.load %arg3[%c0_1, %c0_2] : memref<16x128xf32, #tpu.memory_space<vmem>>, vector<16x128xf32>
    %cst_3 = arith.constant 0.000000e+00 : f32
    %4 = vector.broadcast %cst_3 : f32 to vector<16x128xf32>
    %5 = arith.maximumf %3, %4 : vector<16x128xf32>
    %6 = tpu.concatenate %2, %5 in 0 : vector<16x128xf32>, vector<16x128xf32> -> vector<32x128xf32>
    %c0_4 = arith.constant 0 : index
    %c0_5 = arith.constant 0 : index
    %7 = vector.load %arg4[%c0_4, %c0_5] : memref<32x32xf32, #tpu.memory_space<vmem>>, vector<32x32xf32>
    %cst_6 = arith.constant dense<0.000000e+00> : vector<32x128xf32>
    %8 = tpu.matmul %7, %6, %cst_6 {dimension_numbers = #tpu.dot_dimension_numbers<[1], [0], [0], [1], [0, 0, 1, 1], [], []>} : vector<32x32xf32>, vector<32x128xf32>, vector<32x128xf32> -> vector<32x128xf32>
    %cst_7 = arith.constant dense<0.000000e+00> : vector<32xf32>
    %9 = vector.multi_reduction <add>, %8, %cst_7 [1] : vector<32x128xf32> to vector<32xf32>
    %10 = vector.shape_cast %9 : vector<32xf32> to vector<32x1xf32>
    %cst_8 = arith.constant 7.812500e-03 : f32
    %11 = vector.broadcast %cst_8 : f32 to vector<32x1xf32>
    %12 = arith.mulf %10, %11 : vector<32x1xf32>
    %13 = vector.broadcast %12 : vector<32x1xf32> to vector<32x128xf32>
    %14 = arith.subf %8, %13 : vector<32x128xf32>
    %15 = arith.mulf %14, %14 : vector<32x128xf32>
    %cst_9 = arith.constant dense<0.000000e+00> : vector<32xf32>
    %16 = vector.multi_reduction <add>, %15, %cst_9 [1] : vector<32x128xf32> to vector<32xf32>
    %17 = vector.shape_cast %16 : vector<32xf32> to vector<32x1xf32>
    %cst_10 = arith.constant 7.812500e-03 : f32
    %18 = vector.broadcast %cst_10 : f32 to vector<32x1xf32>
    %19 = arith.mulf %17, %18 : vector<32x1xf32>
    %cst_11 = arith.constant 9.99999974E-6 : f32
    %20 = vector.broadcast %cst_11 : f32 to vector<32x1xf32>
    %21 = arith.addf %19, %20 : vector<32x1xf32>
    %22 = math.rsqrt %21 : vector<32x1xf32>
    %23 = vector.broadcast %22 : vector<32x1xf32> to vector<32x128xf32>
    %24 = arith.mulf %14, %23 : vector<32x128xf32>
    %25 = vector.extract_strided_slice %24 {offsets = [0, 0], sizes = [16, 128], strides = [1, 1]} : vector<32x128xf32> to vector<16x128xf32>
    %26 = vector.extract_strided_slice %24 {offsets = [16, 0], sizes = [16, 128], strides = [1, 1]} : vector<32x128xf32> to vector<16x128xf32>
    %cst_12 = arith.constant 0.000000e+00 : f32
    %27 = vector.broadcast %cst_12 : f32 to vector<520x128xf32>
    %c0_13 = arith.constant 0 : index
    %c0_14 = arith.constant 0 : index
    %28 = vector.load %arg8[%c0_13, %c0_14] : memref<520x128xf32, #tpu.memory_space<vmem>>, vector<520x128xf32>
    tpu.vector_store %arg8[%c0_13, %c0_14], %27 {strides = array<i32>} : memref<520x128xf32, #tpu.memory_space<vmem>>, vector<520x128xf32>,
    %c0_15 = arith.constant 0 : index
    %c0_16 = arith.constant 0 : index
    %29 = vector.load %arg6[%c0_15, %c0_16] : memref<25x128xf32, #tpu.memory_space<vmem>>, vector<25x128xf32>
    %30 = vector.extract_strided_slice %25 {offsets = [0, 0], sizes = [4, 128], strides = [1, 1]} : vector<16x128xf32> to vector<4x128xf32>
    %cst_17 = arith.constant 0.000000e+00 : f32
    %31 = vector.broadcast %cst_17 : f32 to vector<4x128xf32>
    %32 = arith.maximumf %30, %31 : vector<4x128xf32>
    %c36_i32 = arith.constant 36 : i32
    %33 = tpu.dynamic_rotate %32 by %c36_i32 dim 1 : vector<4x128xf32>, i32 -> vector<4x128xf32>
    %34 = vector.extract_strided_slice %29 {offsets = [0, 0], sizes = [1, 128], strides = [1, 1]} : vector<25x128xf32> to vector<1x128xf32>
    %35 = vector.broadcast %34 : vector<1x128xf32> to vector<4x128xf32>
    %36 = arith.mulf %33, %35 : vector<4x128xf32>
    %c34_i32 = arith.constant 34 : i32
    %37 = tpu.dynamic_rotate %32 by %c34_i32 dim 1 : vector<4x128xf32>, i32 -> vector<4x128xf32>
    %38 = vector.extract_strided_slice %29 {offsets = [1, 0], sizes = [1, 128], strides = [1, 1]} : vector<25x128xf32> to vector<1x128xf32>
    %39 = vector.broadcast %38 : vector<1x128xf32> to vector<4x128xf32>
    %40 = arith.mulf %37, %39 : vector<4x128xf32>
    %c32_i32 = arith.constant 32 : i32
    %41 = tpu.dynamic_rotate %32 by %c32_i32 dim 1 : vector<4x128xf32>, i32 -> vector<4x128xf32>
    %42 = vector.extract_strided_slice %29 {offsets = [2, 0], sizes = [1, 128], strides = [1, 1]} : vector<25x128xf32> to vector<1x128xf32>
    %43 = vector.broadcast %42 : vector<1x128xf32> to vector<4x128xf32>
    %44 = arith.mulf %41, %43 : vector<4x128xf32>
    %c30_i32 = arith.constant 30 : i32
    %45 = tpu.dynamic_rotate %32 by %c30_i32 dim 1 : vector<4x128xf32>, i32 -> vector<4x128xf32>
    %46 = vector.extract_strided_slice %29 {offsets = [3, 0], sizes = [1, 128], strides = [1, 1]} : vector<25x128xf32> to vector<1x128xf32>
    %47 = vector.broadcast %46 : vector<1x128xf32> to vector<4x128xf32>
    %48 = arith.mulf %45, %47 : vector<4x128xf32>
    %c28_i32 = arith.constant 28 : i32
    %49 = tpu.dynamic_rotate %32 by %c28_i32 dim 1 : vector<4x128xf32>, i32 -> vector<4x128xf32>
    %50 = vector.extract_strided_slice %29 {offsets = [4, 0], sizes = [1, 128], strides = [1, 1]} : vector<25x128xf32> to vector<1x128xf32>
    %51 = vector.broadcast %50 : vector<1x128xf32> to vector<4x128xf32>
    %52 = arith.mulf %49, %51 : vector<4x128xf32>
    %c20_i32 = arith.constant 20 : i32
    %53 = tpu.dynamic_rotate %32 by %c20_i32 dim 1 : vector<4x128xf32>, i32 -> vector<4x128xf32>
    %54 = vector.extract_strided_slice %29 {offsets = [5, 0], sizes = [1, 128], strides = [1, 1]} : vector<25x128xf32> to vector<1x128xf32>
    %55 = vector.broadcast %54 : vector<1x128xf32> to vector<4x128xf32>
    %56 = arith.mulf %53, %55 : vector<4x128xf32>
    %c18_i32 = arith.constant 18 : i32
    %57 = tpu.dynamic_rotate %32 by %c18_i32 dim 1 : vector<4x128xf32>, i32 -> vector<4x128xf32>
    %58 = vector.extract_strided_slice %29 {offsets = [6, 0], sizes = [1, 128], strides = [1, 1]} : vector<25x128xf32> to vector<1x128xf32>
    %59 = vector.broadcast %58 : vector<1x128xf32> to vector<4x128xf32>
    %60 = arith.mulf %57, %59 : vector<4x128xf32>
    %c16_i32 = arith.constant 16 : i32
    %61 = tpu.dynamic_rotate %32 by %c16_i32 dim 1 : vector<4x128xf32>, i32 -> vector<4x128xf32>
    %62 = vector.extract_strided_slice %29 {offsets = [7, 0], sizes = [1, 128], strides = [1, 1]} : vector<25x128xf32> to vector<1x128xf32>
    %63 = vector.broadcast %62 : vector<1x128xf32> to vector<4x128xf32>
    %64 = arith.mulf %61, %63 : vector<4x128xf32>
    %c14_i32 = arith.constant 14 : i32
    %65 = tpu.dynamic_rotate %32 by %c14_i32 dim 1 : vector<4x128xf32>, i32 -> vector<4x128xf32>
    %66 = vector.extract_strided_slice %29 {offsets = [8, 0], sizes = [1, 128], strides = [1, 1]} : vector<25x128xf32> to vector<1x128xf32>
    %67 = vector.broadcast %66 : vector<1x128xf32> to vector<4x128xf32>
    %68 = arith.mulf %65, %67 : vector<4x128xf32>
    %c12_i32 = arith.constant 12 : i32
    %69 = tpu.dynamic_rotate %32 by %c12_i32 dim 1 : vector<4x128xf32>, i32 -> vector<4x128xf32>
    %70 = vector.extract_strided_slice %29 {offsets = [9, 0], sizes = [1, 128], strides = [1, 1]} : vector<25x128xf32> to vector<1x128xf32>
    %71 = vector.broadcast %70 : vector<1x128xf32> to vector<4x128xf32>
    %72 = arith.mulf %69, %71 : vector<4x128xf32>
    %c4_i32 = arith.constant 4 : i32
    %73 = tpu.dynamic_rotate %32 by %c4_i32 dim 1 : vector<4x128xf32>, i32 -> vector<4x128xf32>
    %74 = vector.extract_strided_slice %29 {offsets = [10, 0], sizes = [1, 128], strides = [1, 1]} : vector<25x128xf32> to vector<1x128xf32>
    %75 = vector.broadcast %74 : vector<1x128xf32> to vector<4x128xf32>
    %76 = arith.mulf %73, %75 : vector<4x128xf32>
    %c2_i32 = arith.constant 2 : i32
    %77 = tpu.dynamic_rotate %32 by %c2_i32 dim 1 : vector<4x128xf32>, i32 -> vector<4x128xf32>
    %78 = vector.extract_strided_slice %29 {offsets = [11, 0], sizes = [1, 128], strides = [1, 1]} : vector<25x128xf32> to vector<1x128xf32>
    %79 = vector.broadcast %78 : vector<1x128xf32> to vector<4x128xf32>
    %80 = arith.mulf %77, %79 : vector<4x128xf32>
    %81 = vector.extract_strided_slice %29 {offsets = [12, 0], sizes = [1, 128], strides = [1, 1]} : vector<25x128xf32> to vector<1x128xf32>
    %82 = vector.broadcast %81 : vector<1x128xf32> to vector<4x128xf32>
    %83 = arith.mulf %32, %82 : vector<4x128xf32>
    %c126_i32 = arith.constant 126 : i32
    %84 = tpu.dynamic_rotate %32 by %c126_i32 dim 1 : vector<4x128xf32>, i32 -> vector<4x128xf32>
    %85 = vector.extract_strided_slice %29 {offsets = [13, 0], sizes = [1, 128], strides = [1, 1]} : vector<25x128xf32> to vector<1x128xf32>
    %86 = vector.broadcast %85 : vector<1x128xf32> to vector<4x128xf32>
    %87 = arith.mulf %84, %86 : vector<4x128xf32>
    %c124_i32 = arith.constant 124 : i32
    %88 = tpu.dynamic_rotate %32 by %c124_i32 dim 1 : vector<4x128xf32>, i32 -> vector<4x128xf32>
    %89 = vector.extract_strided_slice %29 {offsets = [14, 0], sizes = [1, 128], strides = [1, 1]} : vector<25x128xf32> to vector<1x128xf32>
    %90 = vector.broadcast %89 : vector<1x128xf32> to vector<4x128xf32>
    %91 = arith.mulf %88, %90 : vector<4x128xf32>
    %c116_i32 = arith.constant 116 : i32
    %92 = tpu.dynamic_rotate %32 by %c116_i32 dim 1 : vector<4x128xf32>, i32 -> vector<4x128xf32>
    %93 = vector.extract_strided_slice %29 {offsets = [15, 0], sizes = [1, 128], strides = [1, 1]} : vector<25x128xf32> to vector<1x128xf32>
    %94 = vector.broadcast %93 : vector<1x128xf32> to vector<4x128xf32>
    %95 = arith.mulf %92, %94 : vector<4x128xf32>
    %c114_i32 = arith.constant 114 : i32
    %96 = tpu.dynamic_rotate %32 by %c114_i32 dim 1 : vector<4x128xf32>, i32 -> vector<4x128xf32>
    %97 = vector.extract_strided_slice %29 {offsets = [16, 0], sizes = [1, 128], strides = [1, 1]} : vector<25x128xf32> to vector<1x128xf32>
    %98 = vector.broadcast %97 : vector<1x128xf32> to vector<4x128xf32>
    %99 = arith.mulf %96, %98 : vector<4x128xf32>
    %c112_i32 = arith.constant 112 : i32
    %100 = tpu.dynamic_rotate %32 by %c112_i32 dim 1 : vector<4x128xf32>, i32 -> vector<4x128xf32>
    %101 = vector.extract_strided_slice %29 {offsets = [17, 0], sizes = [1, 128], strides = [1, 1]} : vector<25x128xf32> to vector<1x128xf32>
    %102 = vector.broadcast %101 : vector<1x128xf32> to vector<4x128xf32>
    %103 = arith.mulf %100, %102 : vector<4x128xf32>
    %c110_i32 = arith.constant 110 : i32
    %104 = tpu.dynamic_rotate %32 by %c110_i32 dim 1 : vector<4x128xf32>, i32 -> vector<4x128xf32>
    %105 = vector.extract_strided_slice %29 {offsets = [18, 0], sizes = [1, 128], strides = [1, 1]} : vector<25x128xf32> to vector<1x128xf32>
    %106 = vector.broadcast %105 : vector<1x128xf32> to vector<4x128xf32>
    %107 = arith.mulf %104, %106 : vector<4x128xf32>
    %c108_i32 = arith.constant 108 : i32
    %108 = tpu.dynamic_rotate %32 by %c108_i32 dim 1 : vector<4x128xf32>, i32 -> vector<4x128xf32>
    %109 = vector.extract_strided_slice %29 {offsets = [19, 0], sizes = [1, 128], strides = [1, 1]} : vector<25x128xf32> to vector<1x128xf32>
    %110 = vector.broadcast %109 : vector<1x128xf32> to vector<4x128xf32>
    %111 = arith.mulf %108, %110 : vector<4x128xf32>
    %c100_i32 = arith.constant 100 : i32
    %112 = tpu.dynamic_rotate %32 by %c100_i32 dim 1 : vector<4x128xf32>, i32 -> vector<4x128xf32>
    %113 = vector.extract_strided_slice %29 {offsets = [20, 0], sizes = [1, 128], strides = [1, 1]} : vector<25x128xf32> to vector<1x128xf32>
    %114 = vector.broadcast %113 : vector<1x128xf32> to vector<4x128xf32>
    %115 = arith.mulf %112, %114 : vector<4x128xf32>
    %c98_i32 = arith.constant 98 : i32
    %116 = tpu.dynamic_rotate %32 by %c98_i32 dim 1 : vector<4x128xf32>, i32 -> vector<4x128xf32>
    %117 = vector.extract_strided_slice %29 {offsets = [21, 0], sizes = [1, 128], strides = [1, 1]} : vector<25x128xf32> to vector<1x128xf32>
    %118 = vector.broadcast %117 : vector<1x128xf32> to vector<4x128xf32>
    %119 = arith.mulf %116, %118 : vector<4x128xf32>
    %c96_i32 = arith.constant 96 : i32
    %120 = tpu.dynamic_rotate %32 by %c96_i32 dim 1 : vector<4x128xf32>, i32 -> vector<4x128xf32>
    %121 = vector.extract_strided_slice %29 {offsets = [22, 0], sizes = [1, 128], strides = [1, 1]} : vector<25x128xf32> to vector<1x128xf32>
    %122 = vector.broadcast %121 : vector<1x128xf32> to vector<4x128xf32>
    %123 = arith.mulf %120, %122 : vector<4x128xf32>
    %c94_i32 = arith.constant 94 : i32
    %124 = tpu.dynamic_rotate %32 by %c94_i32 dim 1 : vector<4x128xf32>, i32 -> vector<4x128xf32>
    %125 = vector.extract_strided_slice %29 {offsets = [23, 0], sizes = [1, 128], strides = [1, 1]} : vector<25x128xf32> to vector<1x128xf32>
    %126 = vector.broadcast %125 : vector<1x128xf32> to vector<4x128xf32>
    %127 = arith.mulf %124, %126 : vector<4x128xf32>
    %c92_i32 = arith.constant 92 : i32
    %128 = tpu.dynamic_rotate %32 by %c92_i32 dim 1 : vector<4x128xf32>, i32 -> vector<4x128xf32>
    %129 = vector.extract_strided_slice %29 {offsets = [24, 0], sizes = [1, 128], strides = [1, 1]} : vector<25x128xf32> to vector<1x128xf32>
    %130 = vector.broadcast %129 : vector<1x128xf32> to vector<4x128xf32>
    %131 = arith.mulf %128, %130 : vector<4x128xf32>
    %132 = tpu.concatenate %36, %40, %44, %48, %52, %56, %60, %64, %68, %72, %76, %80, %83, %87, %91, %95 in 0 : vector<4x128xf32>, vector<4x128xf32>, vector<4x128xf32>, vector<4x128xf32>, vector<4x128xf32>, vector<4x128xf32>, vector<4x128xf32>, vector<4x128xf32>, vector<4x128xf32>, vector<4x128xf32>, vector<4x128xf32>, vector<4x128xf32>, vector<4x128xf32>, vector<4x128xf32>, vector<4x128xf32>, vector<4x128xf32> -> vector<64x128xf32>
    %133 = tpu.concatenate %99, %103, %107, %111, %115, %119, %123, %127, %131 in 0 : vector<4x128xf32>, vector<4x128xf32>, vector<4x128xf32>, vector<4x128xf32>, vector<4x128xf32>, vector<4x128xf32>, vector<4x128xf32>, vector<4x128xf32>, vector<4x128xf32> -> vector<36x128xf32>
    %134 = tpu.concatenate %132, %133 in 0 : vector<64x128xf32>, vector<36x128xf32> -> vector<100x128xf32>
    %c0_18 = arith.constant 0 : index
    %c0_19 = arith.constant 0 : index
    %135 = vector.load %arg8[%c0_18, %c0_19] : memref<520x128xf32, #tpu.memory_space<vmem>>, vector<100x128xf32>
    tpu.vector_store %arg8[%c0_18, %c0_19], %134 {strides = array<i32>} : memref<520x128xf32, #tpu.memory_space<vmem>>, vector<100x128xf32>,
    %136 = vector.extract_strided_slice %26 {offsets = [0, 0], sizes = [4, 128], strides = [1, 1]} : vector<16x128xf32> to vector<4x128xf32>
    %cst_20 = arith.constant 0.000000e+00 : f32
    %137 = vector.broadcast %cst_20 : f32 to vector<4x128xf32>
    %138 = arith.maximumf %136, %137 : vector<4x128xf32>
    %c36_i32_21 = arith.constant 36 : i32
    %139 = tpu.dynamic_rotate %138 by %c36_i32_21 dim 1 : vector<4x128xf32>, i32 -> vector<4x128xf32>
    %140 = vector.extract_strided_slice %29 {offsets = [0, 0], sizes = [1, 128], strides = [1, 1]} : vector<25x128xf32> to vector<1x128xf32>
    %141 = vector.broadcast %140 : vector<1x128xf32> to vector<4x128xf32>
    %142 = arith.mulf %139, %141 : vector<4x128xf32>
    %c34_i32_22 = arith.constant 34 : i32
    %143 = tpu.dynamic_rotate %138 by %c34_i32_22 dim 1 : vector<4x128xf32>, i32 -> vector<4x128xf32>
    %144 = vector.extract_strided_slice %29 {offsets = [1, 0], sizes = [1, 128], strides = [1, 1]} : vector<25x128xf32> to vector<1x128xf32>
    %145 = vector.broadcast %144 : vector<1x128xf32> to vector<4x128xf32>
    %146 = arith.mulf %143, %145 : vector<4x128xf32>
    %c32_i32_23 = arith.constant 32 : i32
    %147 = tpu.dynamic_rotate %138 by %c32_i32_23 dim 1 : vector<4x128xf32>, i32 -> vector<4x128xf32>
    %148 = vector.extract_strided_slice %29 {offsets = [2, 0], sizes = [1, 128], strides = [1, 1]} : vector<25x128xf32> to vector<1x128xf32>
    %149 = vector.broadcast %148 : vector<1x128xf32> to vector<4x128xf32>
    %150 = arith.mulf %147, %149 : vector<4x128xf32>
    %c30_i32_24 = arith.constant 30 : i32
    %151 = tpu.dynamic_rotate %138 by %c30_i32_24 dim 1 : vector<4x128xf32>, i32 -> vector<4x128xf32>
    %152 = vector.extract_strided_slice %29 {offsets = [3, 0], sizes = [1, 128], strides = [1, 1]} : vector<25x128xf32> to vector<1x128xf32>
    %153 = vector.broadcast %152 : vector<1x128xf32> to vector<4x128xf32>
    %154 = arith.mulf %151, %153 : vector<4x128xf32>
    %c28_i32_25 = arith.constant 28 : i32
    %155 = tpu.dynamic_rotate %138 by %c28_i32_25 dim 1 : vector<4x128xf32>, i32 -> vector<4x128xf32>
    %156 = vector.extract_strided_slice %29 {offsets = [4, 0], sizes = [1, 128], strides = [1, 1]} : vector<25x128xf32> to vector<1x128xf32>
    %157 = vector.broadcast %156 : vector<1x128xf32> to vector<4x128xf32>
    %158 = arith.mulf %155, %157 : vector<4x128xf32>
    %c20_i32_26 = arith.constant 20 : i32
    %159 = tpu.dynamic_rotate %138 by %c20_i32_26 dim 1 : vector<4x128xf32>, i32 -> vector<4x128xf32>
    %160 = vector.extract_strided_slice %29 {offsets = [5, 0], sizes = [1, 128], strides = [1, 1]} : vector<25x128xf32> to vector<1x128xf32>
    %161 = vector.broadcast %160 : vector<1x128xf32> to vector<4x128xf32>
    %162 = arith.mulf %159, %161 : vector<4x128xf32>
    %c18_i32_27 = arith.constant 18 : i32
    %163 = tpu.dynamic_rotate %138 by %c18_i32_27 dim 1 : vector<4x128xf32>, i32 -> vector<4x128xf32>
    %164 = vector.extract_strided_slice %29 {offsets = [6, 0], sizes = [1, 128], strides = [1, 1]} : vector<25x128xf32> to vector<1x128xf32>
    %165 = vector.broadcast %164 : vector<1x128xf32> to vector<4x128xf32>
    %166 = arith.mulf %163, %165 : vector<4x128xf32>
    %c16_i32_28 = arith.constant 16 : i32
    %167 = tpu.dynamic_rotate %138 by %c16_i32_28 dim 1 : vector<4x128xf32>, i32 -> vector<4x128xf32>
    %168 = vector.extract_strided_slice %29 {offsets = [7, 0], sizes = [1, 128], strides = [1, 1]} : vector<25x128xf32> to vector<1x128xf32>
    %169 = vector.broadcast %168 : vector<1x128xf32> to vector<4x128xf32>
    %170 = arith.mulf %167, %169 : vector<4x128xf32>
    %c14_i32_29 = arith.constant 14 : i32
    %171 = tpu.dynamic_rotate %138 by %c14_i32_29 dim 1 : vector<4x128xf32>, i32 -> vector<4x128xf32>
    %172 = vector.extract_strided_slice %29 {offsets = [8, 0], sizes = [1, 128], strides = [1, 1]} : vector<25x128xf32> to vector<1x128xf32>
    %173 = vector.broadcast %172 : vector<1x128xf32> to vector<4x128xf32>
    %174 = arith.mulf %171, %173 : vector<4x128xf32>
    %c12_i32_30 = arith.constant 12 : i32
    %175 = tpu.dynamic_rotate %138 by %c12_i32_30 dim 1 : vector<4x128xf32>, i32 -> vector<4x128xf32>
    %176 = vector.extract_strided_slice %29 {offsets = [9, 0], sizes = [1, 128], strides = [1, 1]} : vector<25x128xf32> to vector<1x128xf32>
    %177 = vector.broadcast %176 : vector<1x128xf32> to vector<4x128xf32>
    %178 = arith.mulf %175, %177 : vector<4x128xf32>
    %c4_i32_31 = arith.constant 4 : i32
    %179 = tpu.dynamic_rotate %138 by %c4_i32_31 dim 1 : vector<4x128xf32>, i32 -> vector<4x128xf32>
    %180 = vector.extract_strided_slice %29 {offsets = [10, 0], sizes = [1, 128], strides = [1, 1]} : vector<25x128xf32> to vector<1x128xf32>
    %181 = vector.broadcast %180 : vector<1x128xf32> to vector<4x128xf32>
    %182 = arith.mulf %179, %181 : vector<4x128xf32>
    %c2_i32_32 = arith.constant 2 : i32
    %183 = tpu.dynamic_rotate %138 by %c2_i32_32 dim 1 : vector<4x128xf32>, i32 -> vector<4x128xf32>
    %184 = vector.extract_strided_slice %29 {offsets = [11, 0], sizes = [1, 128], strides = [1, 1]} : vector<25x128xf32> to vector<1x128xf32>
    %185 = vector.broadcast %184 : vector<1x128xf32> to vector<4x128xf32>
    %186 = arith.mulf %183, %185 : vector<4x128xf32>
    %187 = vector.extract_strided_slice %29 {offsets = [12, 0], sizes = [1, 128], strides = [1, 1]} : vector<25x128xf32> to vector<1x128xf32>
    %188 = vector.broadcast %187 : vector<1x128xf32> to vector<4x128xf32>
    %189 = arith.mulf %138, %188 : vector<4x128xf32>
    %c126_i32_33 = arith.constant 126 : i32
    %190 = tpu.dynamic_rotate %138 by %c126_i32_33 dim 1 : vector<4x128xf32>, i32 -> vector<4x128xf32>
    %191 = vector.extract_strided_slice %29 {offsets = [13, 0], sizes = [1, 128], strides = [1, 1]} : vector<25x128xf32> to vector<1x128xf32>
    %192 = vector.broadcast %191 : vector<1x128xf32> to vector<4x128xf32>
    %193 = arith.mulf %190, %192 : vector<4x128xf32>
    %c124_i32_34 = arith.constant 124 : i32
    %194 = tpu.dynamic_rotate %138 by %c124_i32_34 dim 1 : vector<4x128xf32>, i32 -> vector<4x128xf32>
    %195 = vector.extract_strided_slice %29 {offsets = [14, 0], sizes = [1, 128], strides = [1, 1]} : vector<25x128xf32> to vector<1x128xf32>
    %196 = vector.broadcast %195 : vector<1x128xf32> to vector<4x128xf32>
    %197 = arith.mulf %194, %196 : vector<4x128xf32>
    %c116_i32_35 = arith.constant 116 : i32
    %198 = tpu.dynamic_rotate %138 by %c116_i32_35 dim 1 : vector<4x128xf32>, i32 -> vector<4x128xf32>
    %199 = vector.extract_strided_slice %29 {offsets = [15, 0], sizes = [1, 128], strides = [1, 1]} : vector<25x128xf32> to vector<1x128xf32>
    %200 = vector.broadcast %199 : vector<1x128xf32> to vector<4x128xf32>
    %201 = arith.mulf %198, %200 : vector<4x128xf32>
    %c114_i32_36 = arith.constant 114 : i32
    %202 = tpu.dynamic_rotate %138 by %c114_i32_36 dim 1 : vector<4x128xf32>, i32 -> vector<4x128xf32>
    %203 = vector.extract_strided_slice %29 {offsets = [16, 0], sizes = [1, 128], strides = [1, 1]} : vector<25x128xf32> to vector<1x128xf32>
    %204 = vector.broadcast %203 : vector<1x128xf32> to vector<4x128xf32>
    %205 = arith.mulf %202, %204 : vector<4x128xf32>
    %c112_i32_37 = arith.constant 112 : i32
    %206 = tpu.dynamic_rotate %138 by %c112_i32_37 dim 1 : vector<4x128xf32>, i32 -> vector<4x128xf32>
    %207 = vector.extract_strided_slice %29 {offsets = [17, 0], sizes = [1, 128], strides = [1, 1]} : vector<25x128xf32> to vector<1x128xf32>
    %208 = vector.broadcast %207 : vector<1x128xf32> to vector<4x128xf32>
    %209 = arith.mulf %206, %208 : vector<4x128xf32>
    %c110_i32_38 = arith.constant 110 : i32
    %210 = tpu.dynamic_rotate %138 by %c110_i32_38 dim 1 : vector<4x128xf32>, i32 -> vector<4x128xf32>
    %211 = vector.extract_strided_slice %29 {offsets = [18, 0], sizes = [1, 128], strides = [1, 1]} : vector<25x128xf32> to vector<1x128xf32>
    %212 = vector.broadcast %211 : vector<1x128xf32> to vector<4x128xf32>
    %213 = arith.mulf %210, %212 : vector<4x128xf32>
    %c108_i32_39 = arith.constant 108 : i32
    %214 = tpu.dynamic_rotate %138 by %c108_i32_39 dim 1 : vector<4x128xf32>, i32 -> vector<4x128xf32>
    %215 = vector.extract_strided_slice %29 {offsets = [19, 0], sizes = [1, 128], strides = [1, 1]} : vector<25x128xf32> to vector<1x128xf32>
    %216 = vector.broadcast %215 : vector<1x128xf32> to vector<4x128xf32>
    %217 = arith.mulf %214, %216 : vector<4x128xf32>
    %c100_i32_40 = arith.constant 100 : i32
    %218 = tpu.dynamic_rotate %138 by %c100_i32_40 dim 1 : vector<4x128xf32>, i32 -> vector<4x128xf32>
    %219 = vector.extract_strided_slice %29 {offsets = [20, 0], sizes = [1, 128], strides = [1, 1]} : vector<25x128xf32> to vector<1x128xf32>
    %220 = vector.broadcast %219 : vector<1x128xf32> to vector<4x128xf32>
    %221 = arith.mulf %218, %220 : vector<4x128xf32>
    %c98_i32_41 = arith.constant 98 : i32
    %222 = tpu.dynamic_rotate %138 by %c98_i32_41 dim 1 : vector<4x128xf32>, i32 -> vector<4x128xf32>
    %223 = vector.extract_strided_slice %29 {offsets = [21, 0], sizes = [1, 128], strides = [1, 1]} : vector<25x128xf32> to vector<1x128xf32>
    %224 = vector.broadcast %223 : vector<1x128xf32> to vector<4x128xf32>
    %225 = arith.mulf %222, %224 : vector<4x128xf32>
    %c96_i32_42 = arith.constant 96 : i32
    %226 = tpu.dynamic_rotate %138 by %c96_i32_42 dim 1 : vector<4x128xf32>, i32 -> vector<4x128xf32>
    %227 = vector.extract_strided_slice %29 {offsets = [22, 0], sizes = [1, 128], strides = [1, 1]} : vector<25x128xf32> to vector<1x128xf32>
    %228 = vector.broadcast %227 : vector<1x128xf32> to vector<4x128xf32>
    %229 = arith.mulf %226, %228 : vector<4x128xf32>
    %c94_i32_43 = arith.constant 94 : i32
    %230 = tpu.dynamic_rotate %138 by %c94_i32_43 dim 1 : vector<4x128xf32>, i32 -> vector<4x128xf32>
    %231 = vector.extract_strided_slice %29 {offsets = [23, 0], sizes = [1, 128], strides = [1, 1]} : vector<25x128xf32> to vector<1x128xf32>
    %232 = vector.broadcast %231 : vector<1x128xf32> to vector<4x128xf32>
    %233 = arith.mulf %230, %232 : vector<4x128xf32>
    %c92_i32_44 = arith.constant 92 : i32
    %234 = tpu.dynamic_rotate %138 by %c92_i32_44 dim 1 : vector<4x128xf32>, i32 -> vector<4x128xf32>
    %235 = vector.extract_strided_slice %29 {offsets = [24, 0], sizes = [1, 128], strides = [1, 1]} : vector<25x128xf32> to vector<1x128xf32>
    %236 = vector.broadcast %235 : vector<1x128xf32> to vector<4x128xf32>
    %237 = arith.mulf %234, %236 : vector<4x128xf32>
    %238 = tpu.concatenate %142, %146, %150, %154, %158, %162, %166, %170, %174, %178, %182, %186, %189, %193, %197, %201 in 0 : vector<4x128xf32>, vector<4x128xf32>, vector<4x128xf32>, vector<4x128xf32>, vector<4x128xf32>, vector<4x128xf32>, vector<4x128xf32>, vector<4x128xf32>, vector<4x128xf32>, vector<4x128xf32>, vector<4x128xf32>, vector<4x128xf32>, vector<4x128xf32>, vector<4x128xf32>, vector<4x128xf32>, vector<4x128xf32> -> vector<64x128xf32>
    %239 = tpu.concatenate %205, %209, %213, %217, %221, %225, %229, %233, %237 in 0 : vector<4x128xf32>, vector<4x128xf32>, vector<4x128xf32>, vector<4x128xf32>, vector<4x128xf32>, vector<4x128xf32>, vector<4x128xf32>, vector<4x128xf32>, vector<4x128xf32> -> vector<36x128xf32>
    %240 = tpu.concatenate %238, %239 in 0 : vector<64x128xf32>, vector<36x128xf32> -> vector<100x128xf32>
    %c104 = arith.constant 104 : index
    %c0_45 = arith.constant 0 : index
    %241 = vector.load %arg8[%c104, %c0_45] : memref<520x128xf32, #tpu.memory_space<vmem>>, vector<100x128xf32>
    tpu.vector_store %arg8[%c104, %c0_45], %240 {strides = array<i32>} : memref<520x128xf32, #tpu.memory_space<vmem>>, vector<100x128xf32>,
    %c0_46 = arith.constant 0 : index
    %c0_47 = arith.constant 0 : index
    %c0_48 = arith.constant 0 : index
    %242 = vector.load %arg5[%c0_46, %c0_47, %c0_48] : memref<4x20x520xf32, #tpu.memory_space<vmem>>, vector<1x20x520xf32>
    %243 = vector.shape_cast %242 : vector<1x20x520xf32> to vector<20x520xf32>
    %c0_49 = arith.constant 0 : index
    %c0_50 = arith.constant 0 : index
    %244 = vector.load %arg8[%c0_49, %c0_50] : memref<520x128xf32, #tpu.memory_space<vmem>>, vector<520x128xf32>
    %cst_51 = arith.constant dense<0.000000e+00> : vector<20x128xf32>
    %245 = tpu.matmul %243, %244, %cst_51 {dimension_numbers = #tpu.dot_dimension_numbers<[1], [0], [0], [1], [0, 0, 1, 1], [], []>} : vector<20x520xf32>, vector<520x128xf32>, vector<20x128xf32> -> vector<20x128xf32>
    %cst_52 = arith.constant dense<0.000000e+00> : vector<20xf32>
    %246 = vector.multi_reduction <add>, %245, %cst_52 [1] : vector<20x128xf32> to vector<20xf32>
    %247 = vector.shape_cast %246 : vector<20xf32> to vector<20x1xf32>
    %cst_53 = arith.constant 7.812500e-03 : f32
    %248 = vector.broadcast %cst_53 : f32 to vector<20x1xf32>
    %249 = arith.mulf %247, %248 : vector<20x1xf32>
    %250 = vector.broadcast %249 : vector<20x1xf32> to vector<20x128xf32>
    %251 = arith.subf %245, %250 : vector<20x128xf32>
    %252 = arith.mulf %251, %251 : vector<20x128xf32>
    %cst_54 = arith.constant dense<0.000000e+00> : vector<20xf32>
    %253 = vector.multi_reduction <add>, %252, %cst_54 [1] : vector<20x128xf32> to vector<20xf32>
    %254 = vector.shape_cast %253 : vector<20xf32> to vector<20x1xf32>
    %cst_55 = arith.constant 7.812500e-03 : f32
    %255 = vector.broadcast %cst_55 : f32 to vector<20x1xf32>
    %256 = arith.mulf %254, %255 : vector<20x1xf32>
    %cst_56 = arith.constant 9.99999974E-6 : f32
    %257 = vector.broadcast %cst_56 : f32 to vector<20x1xf32>
    %258 = arith.addf %256, %257 : vector<20x1xf32>
    %259 = math.rsqrt %258 : vector<20x1xf32>
    %260 = vector.broadcast %259 : vector<20x1xf32> to vector<20x128xf32>
    %261 = arith.mulf %251, %260 : vector<20x128xf32>
    %cst_57 = arith.constant 0.000000e+00 : f32
    %262 = vector.broadcast %cst_57 : f32 to vector<4x128xf32>
    %cst_58 = arith.constant 0.000000e+00 : f32
    %263 = vector.broadcast %cst_58 : f32 to vector<12x128xf32>
    %c0_59 = arith.constant 0 : index
    %264 = memref.load %arg0[%c0_59] : memref<14xf32, #tpu.memory_space<smem>>
    %c0_60 = arith.constant 0 : index
    %265 = memref.load %arg1[%c0_60] : memref<14xf32, #tpu.memory_space<smem>>
    %266 = arith.mulf %264, %265 : f32
    %267 = vector.extract_strided_slice %261 {offsets = [0, 0], sizes = [4, 128], strides = [1, 1]} : vector<20x128xf32> to vector<4x128xf32>
    %268 = vector.broadcast %266 : f32 to vector<4x128xf32>
    %269 = arith.mulf %268, %267 : vector<4x128xf32>
    %270 = arith.addf %262, %269 : vector<4x128xf32>
    %271 = vector.extract_strided_slice %25 {offsets = [4, 0], sizes = [12, 128], strides = [1, 1]} : vector<16x128xf32> to vector<12x128xf32>
    %272 = vector.broadcast %265 : f32 to vector<12x128xf32>
    %273 = arith.mulf %272, %271 : vector<12x128xf32>
    %274 = arith.addf %263, %273 : vector<12x128xf32>
    %c1 = arith.constant 1 : index
    %275 = memref.load %arg0[%c1] : memref<14xf32, #tpu.memory_space<smem>>
    %c1_61 = arith.constant 1 : index
    %276 = memref.load %arg1[%c1_61] : memref<14xf32, #tpu.memory_space<smem>>
    %277 = arith.mulf %275, %276 : f32
    %278 = vector.extract_strided_slice %261 {offsets = [4, 0], sizes = [4, 128], strides = [1, 1]} : vector<20x128xf32> to vector<4x128xf32>
    %279 = vector.broadcast %277 : f32 to vector<4x128xf32>
    %280 = arith.mulf %279, %278 : vector<4x128xf32>
    %281 = arith.addf %270, %280 : vector<4x128xf32>
    %282 = vector.extract_strided_slice %26 {offsets = [4, 0], sizes = [12, 128], strides = [1, 1]} : vector<16x128xf32> to vector<12x128xf32>
    %283 = vector.broadcast %276 : f32 to vector<12x128xf32>
    %284 = arith.mulf %283, %282 : vector<12x128xf32>
    %285 = arith.addf %274, %284 : vector<12x128xf32>
    %286 = vector.extract_strided_slice %281 {offsets = [0, 0], sizes = [1, 128], strides = [1, 1]} : vector<4x128xf32> to vector<1x128xf32>
    %287 = vector.extract_strided_slice %285 {offsets = [0, 0], sizes = [1, 128], strides = [1, 1]} : vector<12x128xf32> to vector<1x128xf32>
    %288 = vector.extract_strided_slice %285 {offsets = [4, 0], sizes = [1, 128], strides = [1, 1]} : vector<12x128xf32> to vector<1x128xf32>
    %289 = vector.extract_strided_slice %285 {offsets = [8, 0], sizes = [1, 128], strides = [1, 1]} : vector<12x128xf32> to vector<1x128xf32>
    %290 = vector.extract_strided_slice %281 {offsets = [1, 0], sizes = [1, 128], strides = [1, 1]} : vector<4x128xf32> to vector<1x128xf32>
    %291 = vector.extract_strided_slice %285 {offsets = [1, 0], sizes = [1, 128], strides = [1, 1]} : vector<12x128xf32> to vector<1x128xf32>
    %292 = vector.extract_strided_slice %285 {offsets = [5, 0], sizes = [1, 128], strides = [1, 1]} : vector<12x128xf32> to vector<1x128xf32>
    %293 = vector.extract_strided_slice %285 {offsets = [9, 0], sizes = [1, 128], strides = [1, 1]} : vector<12x128xf32> to vector<1x128xf32>
    %294 = vector.extract_strided_slice %281 {offsets = [2, 0], sizes = [1, 128], strides = [1, 1]} : vector<4x128xf32> to vector<1x128xf32>
    %295 = vector.extract_strided_slice %285 {offsets = [2, 0], sizes = [1, 128], strides = [1, 1]} : vector<12x128xf32> to vector<1x128xf32>
    %296 = vector.extract_strided_slice %285 {offsets = [6, 0], sizes = [1, 128], strides = [1, 1]} : vector<12x128xf32> to vector<1x128xf32>
    %297 = vector.extract_strided_slice %285 {offsets = [10, 0], sizes = [1, 128], strides = [1, 1]} : vector<12x128xf32> to vector<1x128xf32>
    %298 = vector.extract_strided_slice %281 {offsets = [3, 0], sizes = [1, 128], strides = [1, 1]} : vector<4x128xf32> to vector<1x128xf32>
    %299 = vector.extract_strided_slice %285 {offsets = [3, 0], sizes = [1, 128], strides = [1, 1]} : vector<12x128xf32> to vector<1x128xf32>
    %300 = vector.extract_strided_slice %285 {offsets = [7, 0], sizes = [1, 128], strides = [1, 1]} : vector<12x128xf32> to vector<1x128xf32>
    %301 = vector.extract_strided_slice %285 {offsets = [11, 0], sizes = [1, 128], strides = [1, 1]} : vector<12x128xf32> to vector<1x128xf32>
    %302 = tpu.concatenate %286, %287, %288, %289, %290, %291, %292, %293, %294, %295, %296, %297, %298, %299, %300, %301 in 0 : vector<1x128xf32>, vector<1x128xf32>, vector<1x128xf32>, vector<1x128xf32>, vector<1x128xf32>, vector<1x128xf32>, vector<1x128xf32>, vector<1x128xf32>, vector<1x128xf32>, vector<1x128xf32>, vector<1x128xf32>, vector<1x128xf32>, vector<1x128xf32>, vector<1x128xf32>, vector<1x128xf32>, vector<1x128xf32> -> vector<16x128xf32>
    %303 = vector.extract_strided_slice %302 {offsets = [0, 0], sizes = [4, 128], strides = [1, 1]} : vector<16x128xf32> to vector<4x128xf32>
    %cst_62 = arith.constant 0.000000e+00 : f32
    %304 = vector.broadcast %cst_62 : f32 to vector<4x128xf32>
    %305 = arith.maximumf %303, %304 : vector<4x128xf32>
    %c36_i32_63 = arith.constant 36 : i32
    %306 = tpu.dynamic_rotate %305 by %c36_i32_63 dim 1 : vector<4x128xf32>, i32 -> vector<4x128xf32>
    %307 = vector.extract_strided_slice %29 {offsets = [0, 0], sizes = [1, 128], strides = [1, 1]} : vector<25x128xf32> to vector<1x128xf32>
    %308 = vector.broadcast %307 : vector<1x128xf32> to vector<4x128xf32>
    %309 = arith.mulf %306, %308 : vector<4x128xf32>
    %c34_i32_64 = arith.constant 34 : i32
    %310 = tpu.dynamic_rotate %305 by %c34_i32_64 dim 1 : vector<4x128xf32>, i32 -> vector<4x128xf32>
    %311 = vector.extract_strided_slice %29 {offsets = [1, 0], sizes = [1, 128], strides = [1, 1]} : vector<25x128xf32> to vector<1x128xf32>
    %312 = vector.broadcast %311 : vector<1x128xf32> to vector<4x128xf32>
    %313 = arith.mulf %310, %312 : vector<4x128xf32>
    %c32_i32_65 = arith.constant 32 : i32
    %314 = tpu.dynamic_rotate %305 by %c32_i32_65 dim 1 : vector<4x128xf32>, i32 -> vector<4x128xf32>
    %315 = vector.extract_strided_slice %29 {offsets = [2, 0], sizes = [1, 128], strides = [1, 1]} : vector<25x128xf32> to vector<1x128xf32>
    %316 = vector.broadcast %315 : vector<1x128xf32> to vector<4x128xf32>
    %317 = arith.mulf %314, %316 : vector<4x128xf32>
    %c30_i32_66 = arith.constant 30 : i32
    %318 = tpu.dynamic_rotate %305 by %c30_i32_66 dim 1 : vector<4x128xf32>, i32 -> vector<4x128xf32>
    %319 = vector.extract_strided_slice %29 {offsets = [3, 0], sizes = [1, 128], strides = [1, 1]} : vector<25x128xf32> to vector<1x128xf32>
    %320 = vector.broadcast %319 : vector<1x128xf32> to vector<4x128xf32>
    %321 = arith.mulf %318, %320 : vector<4x128xf32>
    %c28_i32_67 = arith.constant 28 : i32
    %322 = tpu.dynamic_rotate %305 by %c28_i32_67 dim 1 : vector<4x128xf32>, i32 -> vector<4x128xf32>
    %323 = vector.extract_strided_slice %29 {offsets = [4, 0], sizes = [1, 128], strides = [1, 1]} : vector<25x128xf32> to vector<1x128xf32>
    %324 = vector.broadcast %323 : vector<1x128xf32> to vector<4x128xf32>
    %325 = arith.mulf %322, %324 : vector<4x128xf32>
    %c20_i32_68 = arith.constant 20 : i32
    %326 = tpu.dynamic_rotate %305 by %c20_i32_68 dim 1 : vector<4x128xf32>, i32 -> vector<4x128xf32>
    %327 = vector.extract_strided_slice %29 {offsets = [5, 0], sizes = [1, 128], strides = [1, 1]} : vector<25x128xf32> to vector<1x128xf32>
    %328 = vector.broadcast %327 : vector<1x128xf32> to vector<4x128xf32>
    %329 = arith.mulf %326, %328 : vector<4x128xf32>
    %c18_i32_69 = arith.constant 18 : i32
    %330 = tpu.dynamic_rotate %305 by %c18_i32_69 dim 1 : vector<4x128xf32>, i32 -> vector<4x128xf32>
    %331 = vector.extract_strided_slice %29 {offsets = [6, 0], sizes = [1, 128], strides = [1, 1]} : vector<25x128xf32> to vector<1x128xf32>
    %332 = vector.broadcast %331 : vector<1x128xf32> to vector<4x128xf32>
    %333 = arith.mulf %330, %332 : vector<4x128xf32>
    %c16_i32_70 = arith.constant 16 : i32
    %334 = tpu.dynamic_rotate %305 by %c16_i32_70 dim 1 : vector<4x128xf32>, i32 -> vector<4x128xf32>
    %335 = vector.extract_strided_slice %29 {offsets = [7, 0], sizes = [1, 128], strides = [1, 1]} : vector<25x128xf32> to vector<1x128xf32>
    %336 = vector.broadcast %335 : vector<1x128xf32> to vector<4x128xf32>
    %337 = arith.mulf %334, %336 : vector<4x128xf32>
    %c14_i32_71 = arith.constant 14 : i32
    %338 = tpu.dynamic_rotate %305 by %c14_i32_71 dim 1 : vector<4x128xf32>, i32 -> vector<4x128xf32>
    %339 = vector.extract_strided_slice %29 {offsets = [8, 0], sizes = [1, 128], strides = [1, 1]} : vector<25x128xf32> to vector<1x128xf32>
    %340 = vector.broadcast %339 : vector<1x128xf32> to vector<4x128xf32>
    %341 = arith.mulf %338, %340 : vector<4x128xf32>
    %c12_i32_72 = arith.constant 12 : i32
    %342 = tpu.dynamic_rotate %305 by %c12_i32_72 dim 1 : vector<4x128xf32>, i32 -> vector<4x128xf32>
    %343 = vector.extract_strided_slice %29 {offsets = [9, 0], sizes = [1, 128], strides = [1, 1]} : vector<25x128xf32> to vector<1x128xf32>
    %344 = vector.broadcast %343 : vector<1x128xf32> to vector<4x128xf32>
    %345 = arith.mulf %342, %344 : vector<4x128xf32>
    %c4_i32_73 = arith.constant 4 : i32
    %346 = tpu.dynamic_rotate %305 by %c4_i32_73 dim 1 : vector<4x128xf32>, i32 -> vector<4x128xf32>
    %347 = vector.extract_strided_slice %29 {offsets = [10, 0], sizes = [1, 128], strides = [1, 1]} : vector<25x128xf32> to vector<1x128xf32>
    %348 = vector.broadcast %347 : vector<1x128xf32> to vector<4x128xf32>
    %349 = arith.mulf %346, %348 : vector<4x128xf32>
    %c2_i32_74 = arith.constant 2 : i32
    %350 = tpu.dynamic_rotate %305 by %c2_i32_74 dim 1 : vector<4x128xf32>, i32 -> vector<4x128xf32>
    %351 = vector.extract_strided_slice %29 {offsets = [11, 0], sizes = [1, 128], strides = [1, 1]} : vector<25x128xf32> to vector<1x128xf32>
    %352 = vector.broadcast %351 : vector<1x128xf32> to vector<4x128xf32>
    %353 = arith.mulf %350, %352 : vector<4x128xf32>
    %354 = vector.extract_strided_slice %29 {offsets = [12, 0], sizes = [1, 128], strides = [1, 1]} : vector<25x128xf32> to vector<1x128xf32>
    %355 = vector.broadcast %354 : vector<1x128xf32> to vector<4x128xf32>
    %356 = arith.mulf %305, %355 : vector<4x128xf32>
    %c126_i32_75 = arith.constant 126 : i32
    %357 = tpu.dynamic_rotate %305 by %c126_i32_75 dim 1 : vector<4x128xf32>, i32 -> vector<4x128xf32>
    %358 = vector.extract_strided_slice %29 {offsets = [13, 0], sizes = [1, 128], strides = [1, 1]} : vector<25x128xf32> to vector<1x128xf32>
    %359 = vector.broadcast %358 : vector<1x128xf32> to vector<4x128xf32>
    %360 = arith.mulf %357, %359 : vector<4x128xf32>
    %c124_i32_76 = arith.constant 124 : i32
    %361 = tpu.dynamic_rotate %305 by %c124_i32_76 dim 1 : vector<4x128xf32>, i32 -> vector<4x128xf32>
    %362 = vector.extract_strided_slice %29 {offsets = [14, 0], sizes = [1, 128], strides = [1, 1]} : vector<25x128xf32> to vector<1x128xf32>
    %363 = vector.broadcast %362 : vector<1x128xf32> to vector<4x128xf32>
    %364 = arith.mulf %361, %363 : vector<4x128xf32>
    %c116_i32_77 = arith.constant 116 : i32
    %365 = tpu.dynamic_rotate %305 by %c116_i32_77 dim 1 : vector<4x128xf32>, i32 -> vector<4x128xf32>
    %366 = vector.extract_strided_slice %29 {offsets = [15, 0], sizes = [1, 128], strides = [1, 1]} : vector<25x128xf32> to vector<1x128xf32>
    %367 = vector.broadcast %366 : vector<1x128xf32> to vector<4x128xf32>
    %368 = arith.mulf %365, %367 : vector<4x128xf32>
    %c114_i32_78 = arith.constant 114 : i32
    %369 = tpu.dynamic_rotate %305 by %c114_i32_78 dim 1 : vector<4x128xf32>, i32 -> vector<4x128xf32>
    %370 = vector.extract_strided_slice %29 {offsets = [16, 0], sizes = [1, 128], strides = [1, 1]} : vector<25x128xf32> to vector<1x128xf32>
    %371 = vector.broadcast %370 : vector<1x128xf32> to vector<4x128xf32>
    %372 = arith.mulf %369, %371 : vector<4x128xf32>
    %c112_i32_79 = arith.constant 112 : i32
    %373 = tpu.dynamic_rotate %305 by %c112_i32_79 dim 1 : vector<4x128xf32>, i32 -> vector<4x128xf32>
    %374 = vector.extract_strided_slice %29 {offsets = [17, 0], sizes = [1, 128], strides = [1, 1]} : vector<25x128xf32> to vector<1x128xf32>
    %375 = vector.broadcast %374 : vector<1x128xf32> to vector<4x128xf32>
    %376 = arith.mulf %373, %375 : vector<4x128xf32>
    %c110_i32_80 = arith.constant 110 : i32
    %377 = tpu.dynamic_rotate %305 by %c110_i32_80 dim 1 : vector<4x128xf32>, i32 -> vector<4x128xf32>
    %378 = vector.extract_strided_slice %29 {offsets = [18, 0], sizes = [1, 128], strides = [1, 1]} : vector<25x128xf32> to vector<1x128xf32>
    %379 = vector.broadcast %378 : vector<1x128xf32> to vector<4x128xf32>
    %380 = arith.mulf %377, %379 : vector<4x128xf32>
    %c108_i32_81 = arith.constant 108 : i32
    %381 = tpu.dynamic_rotate %305 by %c108_i32_81 dim 1 : vector<4x128xf32>, i32 -> vector<4x128xf32>
    %382 = vector.extract_strided_slice %29 {offsets = [19, 0], sizes = [1, 128], strides = [1, 1]} : vector<25x128xf32> to vector<1x128xf32>
    %383 = vector.broadcast %382 : vector<1x128xf32> to vector<4x128xf32>
    %384 = arith.mulf %381, %383 : vector<4x128xf32>
    %c100_i32_82 = arith.constant 100 : i32
    %385 = tpu.dynamic_rotate %305 by %c100_i32_82 dim 1 : vector<4x128xf32>, i32 -> vector<4x128xf32>
    %386 = vector.extract_strided_slice %29 {offsets = [20, 0], sizes = [1, 128], strides = [1, 1]} : vector<25x128xf32> to vector<1x128xf32>
    %387 = vector.broadcast %386 : vector<1x128xf32> to vector<4x128xf32>
    %388 = arith.mulf %385, %387 : vector<4x128xf32>
    %c98_i32_83 = arith.constant 98 : i32
    %389 = tpu.dynamic_rotate %305 by %c98_i32_83 dim 1 : vector<4x128xf32>, i32 -> vector<4x128xf32>
    %390 = vector.extract_strided_slice %29 {offsets = [21, 0], sizes = [1, 128], strides = [1, 1]} : vector<25x128xf32> to vector<1x128xf32>
    %391 = vector.broadcast %390 : vector<1x128xf32> to vector<4x128xf32>
    %392 = arith.mulf %389, %391 : vector<4x128xf32>
    %c96_i32_84 = arith.constant 96 : i32
    %393 = tpu.dynamic_rotate %305 by %c96_i32_84 dim 1 : vector<4x128xf32>, i32 -> vector<4x128xf32>
    %394 = vector.extract_strided_slice %29 {offsets = [22, 0], sizes = [1, 128], strides = [1, 1]} : vector<25x128xf32> to vector<1x128xf32>
    %395 = vector.broadcast %394 : vector<1x128xf32> to vector<4x128xf32>
    %396 = arith.mulf %393, %395 : vector<4x128xf32>
    %c94_i32_85 = arith.constant 94 : i32
    %397 = tpu.dynamic_rotate %305 by %c94_i32_85 dim 1 : vector<4x128xf32>, i32 -> vector<4x128xf32>
    %398 = vector.extract_strided_slice %29 {offsets = [23, 0], sizes = [1, 128], strides = [1, 1]} : vector<25x128xf32> to vector<1x128xf32>
    %399 = vector.broadcast %398 : vector<1x128xf32> to vector<4x128xf32>
    %400 = arith.mulf %397, %399 : vector<4x128xf32>
    %c92_i32_86 = arith.constant 92 : i32
    %401 = tpu.dynamic_rotate %305 by %c92_i32_86 dim 1 : vector<4x128xf32>, i32 -> vector<4x128xf32>
    %402 = vector.extract_strided_slice %29 {offsets = [24, 0], sizes = [1, 128], strides = [1, 1]} : vector<25x128xf32> to vector<1x128xf32>
    %403 = vector.broadcast %402 : vector<1x128xf32> to vector<4x128xf32>
    %404 = arith.mulf %401, %403 : vector<4x128xf32>
    %405 = tpu.concatenate %309, %313, %317, %321, %325, %329, %333, %337, %341, %345, %349, %353, %356, %360, %364, %368 in 0 : vector<4x128xf32>, vector<4x128xf32>, vector<4x128xf32>, vector<4x128xf32>, vector<4x128xf32>, vector<4x128xf32>, vector<4x128xf32>, vector<4x128xf32>, vector<4x128xf32>, vector<4x128xf32>, vector<4x128xf32>, vector<4x128xf32>, vector<4x128xf32>, vector<4x128xf32>, vector<4x128xf32>, vector<4x128xf32> -> vector<64x128xf32>
    %406 = tpu.concatenate %372, %376, %380, %384, %388, %392, %396, %400, %404 in 0 : vector<4x128xf32>, vector<4x128xf32>, vector<4x128xf32>, vector<4x128xf32>, vector<4x128xf32>, vector<4x128xf32>, vector<4x128xf32>, vector<4x128xf32>, vector<4x128xf32> -> vector<36x128xf32>
    %407 = tpu.concatenate %405, %406 in 0 : vector<64x128xf32>, vector<36x128xf32> -> vector<100x128xf32>
    %c208 = arith.constant 208 : index
    %c0_87 = arith.constant 0 : index
    %408 = vector.load %arg8[%c208, %c0_87] : memref<520x128xf32, #tpu.memory_space<vmem>>, vector<100x128xf32>
    tpu.vector_store %arg8[%c208, %c0_87], %407 {strides = array<i32>} : memref<520x128xf32, #tpu.memory_space<vmem>>, vector<100x128xf32>,
    %c1_88 = arith.constant 1 : index
    %c0_89 = arith.constant 0 : index
    %c0_90 = arith.constant 0 : index
    %409 = vector.load %arg5[%c1_88, %c0_89, %c0_90] : memref<4x20x520xf32, #tpu.memory_space<vmem>>, vector<1x20x520xf32>
    %410 = vector.shape_cast %409 : vector<1x20x520xf32> to vector<20x520xf32>
    %c0_91 = arith.constant 0 : index
    %c0_92 = arith.constant 0 : index
    %411 = vector.load %arg8[%c0_91, %c0_92] : memref<520x128xf32, #tpu.memory_space<vmem>>, vector<520x128xf32>
    %cst_93 = arith.constant dense<0.000000e+00> : vector<20x128xf32>
    %412 = tpu.matmul %410, %411, %cst_93 {dimension_numbers = #tpu.dot_dimension_numbers<[1], [0], [0], [1], [0, 0, 1, 1], [], []>} : vector<20x520xf32>, vector<520x128xf32>, vector<20x128xf32> -> vector<20x128xf32>
    %cst_94 = arith.constant dense<0.000000e+00> : vector<20xf32>
    %413 = vector.multi_reduction <add>, %412, %cst_94 [1] : vector<20x128xf32> to vector<20xf32>
    %414 = vector.shape_cast %413 : vector<20xf32> to vector<20x1xf32>
    %cst_95 = arith.constant 7.812500e-03 : f32
    %415 = vector.broadcast %cst_95 : f32 to vector<20x1xf32>
    %416 = arith.mulf %414, %415 : vector<20x1xf32>
    %417 = vector.broadcast %416 : vector<20x1xf32> to vector<20x128xf32>
    %418 = arith.subf %412, %417 : vector<20x128xf32>
    %419 = arith.mulf %418, %418 : vector<20x128xf32>
    %cst_96 = arith.constant dense<0.000000e+00> : vector<20xf32>
    %420 = vector.multi_reduction <add>, %419, %cst_96 [1] : vector<20x128xf32> to vector<20xf32>
    %421 = vector.shape_cast %420 : vector<20xf32> to vector<20x1xf32>
    %cst_97 = arith.constant 7.812500e-03 : f32
    %422 = vector.broadcast %cst_97 : f32 to vector<20x1xf32>
    %423 = arith.mulf %421, %422 : vector<20x1xf32>
    %cst_98 = arith.constant 9.99999974E-6 : f32
    %424 = vector.broadcast %cst_98 : f32 to vector<20x1xf32>
    %425 = arith.addf %423, %424 : vector<20x1xf32>
    %426 = math.rsqrt %425 : vector<20x1xf32>
    %427 = vector.broadcast %426 : vector<20x1xf32> to vector<20x128xf32>
    %428 = arith.mulf %418, %427 : vector<20x128xf32>
    %cst_99 = arith.constant 0.000000e+00 : f32
    %429 = vector.broadcast %cst_99 : f32 to vector<4x128xf32>
    %cst_100 = arith.constant 0.000000e+00 : f32
    %430 = vector.broadcast %cst_100 : f32 to vector<12x128xf32>
    %c2 = arith.constant 2 : index
    %431 = memref.load %arg0[%c2] : memref<14xf32, #tpu.memory_space<smem>>
    %c2_101 = arith.constant 2 : index
    %432 = memref.load %arg1[%c2_101] : memref<14xf32, #tpu.memory_space<smem>>
    %433 = arith.mulf %431, %432 : f32
    %434 = vector.extract_strided_slice %428 {offsets = [0, 0], sizes = [4, 128], strides = [1, 1]} : vector<20x128xf32> to vector<4x128xf32>
    %435 = vector.broadcast %433 : f32 to vector<4x128xf32>
    %436 = arith.mulf %435, %434 : vector<4x128xf32>
    %437 = arith.addf %429, %436 : vector<4x128xf32>
    %438 = vector.extract_strided_slice %25 {offsets = [4, 0], sizes = [12, 128], strides = [1, 1]} : vector<16x128xf32> to vector<12x128xf32>
    %439 = vector.broadcast %432 : f32 to vector<12x128xf32>
    %440 = arith.mulf %439, %438 : vector<12x128xf32>
    %441 = arith.addf %430, %440 : vector<12x128xf32>
    %c3 = arith.constant 3 : index
    %442 = memref.load %arg0[%c3] : memref<14xf32, #tpu.memory_space<smem>>
    %c3_102 = arith.constant 3 : index
    %443 = memref.load %arg1[%c3_102] : memref<14xf32, #tpu.memory_space<smem>>
    %444 = arith.mulf %442, %443 : f32
    %445 = vector.extract_strided_slice %428 {offsets = [4, 0], sizes = [4, 128], strides = [1, 1]} : vector<20x128xf32> to vector<4x128xf32>
    %446 = vector.broadcast %444 : f32 to vector<4x128xf32>
    %447 = arith.mulf %446, %445 : vector<4x128xf32>
    %448 = arith.addf %437, %447 : vector<4x128xf32>
    %449 = vector.extract_strided_slice %26 {offsets = [4, 0], sizes = [12, 128], strides = [1, 1]} : vector<16x128xf32> to vector<12x128xf32>
    %450 = vector.broadcast %443 : f32 to vector<12x128xf32>
    %451 = arith.mulf %450, %449 : vector<12x128xf32>
    %452 = arith.addf %441, %451 : vector<12x128xf32>
    %c4 = arith.constant 4 : index
    %453 = memref.load %arg0[%c4] : memref<14xf32, #tpu.memory_space<smem>>
    %c4_103 = arith.constant 4 : index
    %454 = memref.load %arg1[%c4_103] : memref<14xf32, #tpu.memory_space<smem>>
    %455 = arith.mulf %453, %454 : f32
    %456 = vector.extract_strided_slice %428 {offsets = [8, 0], sizes = [4, 128], strides = [1, 1]} : vector<20x128xf32> to vector<4x128xf32>
    %457 = vector.broadcast %455 : f32 to vector<4x128xf32>
    %458 = arith.mulf %457, %456 : vector<4x128xf32>
    %459 = arith.addf %448, %458 : vector<4x128xf32>
    %460 = vector.extract_strided_slice %302 {offsets = [4, 0], sizes = [12, 128], strides = [1, 1]} : vector<16x128xf32> to vector<12x128xf32>
    %461 = vector.broadcast %454 : f32 to vector<12x128xf32>
    %462 = arith.mulf %461, %460 : vector<12x128xf32>
    %463 = arith.addf %452, %462 : vector<12x128xf32>
    %464 = vector.extract_strided_slice %459 {offsets = [0, 0], sizes = [1, 128], strides = [1, 1]} : vector<4x128xf32> to vector<1x128xf32>
    %465 = vector.extract_strided_slice %463 {offsets = [0, 0], sizes = [1, 128], strides = [1, 1]} : vector<12x128xf32> to vector<1x128xf32>
    %466 = vector.extract_strided_slice %463 {offsets = [4, 0], sizes = [1, 128], strides = [1, 1]} : vector<12x128xf32> to vector<1x128xf32>
    %467 = vector.extract_strided_slice %463 {offsets = [8, 0], sizes = [1, 128], strides = [1, 1]} : vector<12x128xf32> to vector<1x128xf32>
    %468 = vector.extract_strided_slice %459 {offsets = [1, 0], sizes = [1, 128], strides = [1, 1]} : vector<4x128xf32> to vector<1x128xf32>
    %469 = vector.extract_strided_slice %463 {offsets = [1, 0], sizes = [1, 128], strides = [1, 1]} : vector<12x128xf32> to vector<1x128xf32>
    %470 = vector.extract_strided_slice %463 {offsets = [5, 0], sizes = [1, 128], strides = [1, 1]} : vector<12x128xf32> to vector<1x128xf32>
    %471 = vector.extract_strided_slice %463 {offsets = [9, 0], sizes = [1, 128], strides = [1, 1]} : vector<12x128xf32> to vector<1x128xf32>
    %472 = vector.extract_strided_slice %459 {offsets = [2, 0], sizes = [1, 128], strides = [1, 1]} : vector<4x128xf32> to vector<1x128xf32>
    %473 = vector.extract_strided_slice %463 {offsets = [2, 0], sizes = [1, 128], strides = [1, 1]} : vector<12x128xf32> to vector<1x128xf32>
    %474 = vector.extract_strided_slice %463 {offsets = [6, 0], sizes = [1, 128], strides = [1, 1]} : vector<12x128xf32> to vector<1x128xf32>
    %475 = vector.extract_strided_slice %463 {offsets = [10, 0], sizes = [1, 128], strides = [1, 1]} : vector<12x128xf32> to vector<1x128xf32>
    %476 = vector.extract_strided_slice %459 {offsets = [3, 0], sizes = [1, 128], strides = [1, 1]} : vector<4x128xf32> to vector<1x128xf32>
    %477 = vector.extract_strided_slice %463 {offsets = [3, 0], sizes = [1, 128], strides = [1, 1]} : vector<12x128xf32> to vector<1x128xf32>
    %478 = vector.extract_strided_slice %463 {offsets = [7, 0], sizes = [1, 128], strides = [1, 1]} : vector<12x128xf32> to vector<1x128xf32>
    %479 = vector.extract_strided_slice %463 {offsets = [11, 0], sizes = [1, 128], strides = [1, 1]} : vector<12x128xf32> to vector<1x128xf32>
    %480 = tpu.concatenate %464, %465, %466, %467, %468, %469, %470, %471, %472, %473, %474, %475, %476, %477, %478, %479 in 0 : vector<1x128xf32>, vector<1x128xf32>, vector<1x128xf32>, vector<1x128xf32>, vector<1x128xf32>, vector<1x128xf32>, vector<1x128xf32>, vector<1x128xf32>, vector<1x128xf32>, vector<1x128xf32>, vector<1x128xf32>, vector<1x128xf32>, vector<1x128xf32>, vector<1x128xf32>, vector<1x128xf32>, vector<1x128xf32> -> vector<16x128xf32>
    %481 = vector.extract_strided_slice %480 {offsets = [0, 0], sizes = [4, 128], strides = [1, 1]} : vector<16x128xf32> to vector<4x128xf32>
    %cst_104 = arith.constant 0.000000e+00 : f32
    %482 = vector.broadcast %cst_104 : f32 to vector<4x128xf32>
    %483 = arith.maximumf %481, %482 : vector<4x128xf32>
    %c36_i32_105 = arith.constant 36 : i32
    %484 = tpu.dynamic_rotate %483 by %c36_i32_105 dim 1 : vector<4x128xf32>, i32 -> vector<4x128xf32>
    %485 = vector.extract_strided_slice %29 {offsets = [0, 0], sizes = [1, 128], strides = [1, 1]} : vector<25x128xf32> to vector<1x128xf32>
    %486 = vector.broadcast %485 : vector<1x128xf32> to vector<4x128xf32>
    %487 = arith.mulf %484, %486 : vector<4x128xf32>
    %c34_i32_106 = arith.constant 34 : i32
    %488 = tpu.dynamic_rotate %483 by %c34_i32_106 dim 1 : vector<4x128xf32>, i32 -> vector<4x128xf32>
    %489 = vector.extract_strided_slice %29 {offsets = [1, 0], sizes = [1, 128], strides = [1, 1]} : vector<25x128xf32> to vector<1x128xf32>
    %490 = vector.broadcast %489 : vector<1x128xf32> to vector<4x128xf32>
    %491 = arith.mulf %488, %490 : vector<4x128xf32>
    %c32_i32_107 = arith.constant 32 : i32
    %492 = tpu.dynamic_rotate %483 by %c32_i32_107 dim 1 : vector<4x128xf32>, i32 -> vector<4x128xf32>
    %493 = vector.extract_strided_slice %29 {offsets = [2, 0], sizes = [1, 128], strides = [1, 1]} : vector<25x128xf32> to vector<1x128xf32>
    %494 = vector.broadcast %493 : vector<1x128xf32> to vector<4x128xf32>
    %495 = arith.mulf %492, %494 : vector<4x128xf32>
    %c30_i32_108 = arith.constant 30 : i32
    %496 = tpu.dynamic_rotate %483 by %c30_i32_108 dim 1 : vector<4x128xf32>, i32 -> vector<4x128xf32>
    %497 = vector.extract_strided_slice %29 {offsets = [3, 0], sizes = [1, 128], strides = [1, 1]} : vector<25x128xf32> to vector<1x128xf32>
    %498 = vector.broadcast %497 : vector<1x128xf32> to vector<4x128xf32>
    %499 = arith.mulf %496, %498 : vector<4x128xf32>
    %c28_i32_109 = arith.constant 28 : i32
    %500 = tpu.dynamic_rotate %483 by %c28_i32_109 dim 1 : vector<4x128xf32>, i32 -> vector<4x128xf32>
    %501 = vector.extract_strided_slice %29 {offsets = [4, 0], sizes = [1, 128], strides = [1, 1]} : vector<25x128xf32> to vector<1x128xf32>
    %502 = vector.broadcast %501 : vector<1x128xf32> to vector<4x128xf32>
    %503 = arith.mulf %500, %502 : vector<4x128xf32>
    %c20_i32_110 = arith.constant 20 : i32
    %504 = tpu.dynamic_rotate %483 by %c20_i32_110 dim 1 : vector<4x128xf32>, i32 -> vector<4x128xf32>
    %505 = vector.extract_strided_slice %29 {offsets = [5, 0], sizes = [1, 128], strides = [1, 1]} : vector<25x128xf32> to vector<1x128xf32>
    %506 = vector.broadcast %505 : vector<1x128xf32> to vector<4x128xf32>
    %507 = arith.mulf %504, %506 : vector<4x128xf32>
    %c18_i32_111 = arith.constant 18 : i32
    %508 = tpu.dynamic_rotate %483 by %c18_i32_111 dim 1 : vector<4x128xf32>, i32 -> vector<4x128xf32>
    %509 = vector.extract_strided_slice %29 {offsets = [6, 0], sizes = [1, 128], strides = [1, 1]} : vector<25x128xf32> to vector<1x128xf32>
    %510 = vector.broadcast %509 : vector<1x128xf32> to vector<4x128xf32>
    %511 = arith.mulf %508, %510 : vector<4x128xf32>
    %c16_i32_112 = arith.constant 16 : i32
    %512 = tpu.dynamic_rotate %483 by %c16_i32_112 dim 1 : vector<4x128xf32>, i32 -> vector<4x128xf32>
    %513 = vector.extract_strided_slice %29 {offsets = [7, 0], sizes = [1, 128], strides = [1, 1]} : vector<25x128xf32> to vector<1x128xf32>
    %514 = vector.broadcast %513 : vector<1x128xf32> to vector<4x128xf32>
    %515 = arith.mulf %512, %514 : vector<4x128xf32>
    %c14_i32_113 = arith.constant 14 : i32
    %516 = tpu.dynamic_rotate %483 by %c14_i32_113 dim 1 : vector<4x128xf32>, i32 -> vector<4x128xf32>
    %517 = vector.extract_strided_slice %29 {offsets = [8, 0], sizes = [1, 128], strides = [1, 1]} : vector<25x128xf32> to vector<1x128xf32>
    %518 = vector.broadcast %517 : vector<1x128xf32> to vector<4x128xf32>
    %519 = arith.mulf %516, %518 : vector<4x128xf32>
    %c12_i32_114 = arith.constant 12 : i32
    %520 = tpu.dynamic_rotate %483 by %c12_i32_114 dim 1 : vector<4x128xf32>, i32 -> vector<4x128xf32>
    %521 = vector.extract_strided_slice %29 {offsets = [9, 0], sizes = [1, 128], strides = [1, 1]} : vector<25x128xf32> to vector<1x128xf32>
    %522 = vector.broadcast %521 : vector<1x128xf32> to vector<4x128xf32>
    %523 = arith.mulf %520, %522 : vector<4x128xf32>
    %c4_i32_115 = arith.constant 4 : i32
    %524 = tpu.dynamic_rotate %483 by %c4_i32_115 dim 1 : vector<4x128xf32>, i32 -> vector<4x128xf32>
    %525 = vector.extract_strided_slice %29 {offsets = [10, 0], sizes = [1, 128], strides = [1, 1]} : vector<25x128xf32> to vector<1x128xf32>
    %526 = vector.broadcast %525 : vector<1x128xf32> to vector<4x128xf32>
    %527 = arith.mulf %524, %526 : vector<4x128xf32>
    %c2_i32_116 = arith.constant 2 : i32
    %528 = tpu.dynamic_rotate %483 by %c2_i32_116 dim 1 : vector<4x128xf32>, i32 -> vector<4x128xf32>
    %529 = vector.extract_strided_slice %29 {offsets = [11, 0], sizes = [1, 128], strides = [1, 1]} : vector<25x128xf32> to vector<1x128xf32>
    %530 = vector.broadcast %529 : vector<1x128xf32> to vector<4x128xf32>
    %531 = arith.mulf %528, %530 : vector<4x128xf32>
    %532 = vector.extract_strided_slice %29 {offsets = [12, 0], sizes = [1, 128], strides = [1, 1]} : vector<25x128xf32> to vector<1x128xf32>
    %533 = vector.broadcast %532 : vector<1x128xf32> to vector<4x128xf32>
    %534 = arith.mulf %483, %533 : vector<4x128xf32>
    %c126_i32_117 = arith.constant 126 : i32
    %535 = tpu.dynamic_rotate %483 by %c126_i32_117 dim 1 : vector<4x128xf32>, i32 -> vector<4x128xf32>
    %536 = vector.extract_strided_slice %29 {offsets = [13, 0], sizes = [1, 128], strides = [1, 1]} : vector<25x128xf32> to vector<1x128xf32>
    %537 = vector.broadcast %536 : vector<1x128xf32> to vector<4x128xf32>
    %538 = arith.mulf %535, %537 : vector<4x128xf32>
    %c124_i32_118 = arith.constant 124 : i32
    %539 = tpu.dynamic_rotate %483 by %c124_i32_118 dim 1 : vector<4x128xf32>, i32 -> vector<4x128xf32>
    %540 = vector.extract_strided_slice %29 {offsets = [14, 0], sizes = [1, 128], strides = [1, 1]} : vector<25x128xf32> to vector<1x128xf32>
    %541 = vector.broadcast %540 : vector<1x128xf32> to vector<4x128xf32>
    %542 = arith.mulf %539, %541 : vector<4x128xf32>
    %c116_i32_119 = arith.constant 116 : i32
    %543 = tpu.dynamic_rotate %483 by %c116_i32_119 dim 1 : vector<4x128xf32>, i32 -> vector<4x128xf32>
    %544 = vector.extract_strided_slice %29 {offsets = [15, 0], sizes = [1, 128], strides = [1, 1]} : vector<25x128xf32> to vector<1x128xf32>
    %545 = vector.broadcast %544 : vector<1x128xf32> to vector<4x128xf32>
    %546 = arith.mulf %543, %545 : vector<4x128xf32>
    %c114_i32_120 = arith.constant 114 : i32
    %547 = tpu.dynamic_rotate %483 by %c114_i32_120 dim 1 : vector<4x128xf32>, i32 -> vector<4x128xf32>
    %548 = vector.extract_strided_slice %29 {offsets = [16, 0], sizes = [1, 128], strides = [1, 1]} : vector<25x128xf32> to vector<1x128xf32>
    %549 = vector.broadcast %548 : vector<1x128xf32> to vector<4x128xf32>
    %550 = arith.mulf %547, %549 : vector<4x128xf32>
    %c112_i32_121 = arith.constant 112 : i32
    %551 = tpu.dynamic_rotate %483 by %c112_i32_121 dim 1 : vector<4x128xf32>, i32 -> vector<4x128xf32>
    %552 = vector.extract_strided_slice %29 {offsets = [17, 0], sizes = [1, 128], strides = [1, 1]} : vector<25x128xf32> to vector<1x128xf32>
    %553 = vector.broadcast %552 : vector<1x128xf32> to vector<4x128xf32>
    %554 = arith.mulf %551, %553 : vector<4x128xf32>
    %c110_i32_122 = arith.constant 110 : i32
    %555 = tpu.dynamic_rotate %483 by %c110_i32_122 dim 1 : vector<4x128xf32>, i32 -> vector<4x128xf32>
    %556 = vector.extract_strided_slice %29 {offsets = [18, 0], sizes = [1, 128], strides = [1, 1]} : vector<25x128xf32> to vector<1x128xf32>
    %557 = vector.broadcast %556 : vector<1x128xf32> to vector<4x128xf32>
    %558 = arith.mulf %555, %557 : vector<4x128xf32>
    %c108_i32_123 = arith.constant 108 : i32
    %559 = tpu.dynamic_rotate %483 by %c108_i32_123 dim 1 : vector<4x128xf32>, i32 -> vector<4x128xf32>
    %560 = vector.extract_strided_slice %29 {offsets = [19, 0], sizes = [1, 128], strides = [1, 1]} : vector<25x128xf32> to vector<1x128xf32>
    %561 = vector.broadcast %560 : vector<1x128xf32> to vector<4x128xf32>
    %562 = arith.mulf %559, %561 : vector<4x128xf32>
    %c100_i32_124 = arith.constant 100 : i32
    %563 = tpu.dynamic_rotate %483 by %c100_i32_124 dim 1 : vector<4x128xf32>, i32 -> vector<4x128xf32>
    %564 = vector.extract_strided_slice %29 {offsets = [20, 0], sizes = [1, 128], strides = [1, 1]} : vector<25x128xf32> to vector<1x128xf32>
    %565 = vector.broadcast %564 : vector<1x128xf32> to vector<4x128xf32>
    %566 = arith.mulf %563, %565 : vector<4x128xf32>
    %c98_i32_125 = arith.constant 98 : i32
    %567 = tpu.dynamic_rotate %483 by %c98_i32_125 dim 1 : vector<4x128xf32>, i32 -> vector<4x128xf32>
    %568 = vector.extract_strided_slice %29 {offsets = [21, 0], sizes = [1, 128], strides = [1, 1]} : vector<25x128xf32> to vector<1x128xf32>
    %569 = vector.broadcast %568 : vector<1x128xf32> to vector<4x128xf32>
    %570 = arith.mulf %567, %569 : vector<4x128xf32>
    %c96_i32_126 = arith.constant 96 : i32
    %571 = tpu.dynamic_rotate %483 by %c96_i32_126 dim 1 : vector<4x128xf32>, i32 -> vector<4x128xf32>
    %572 = vector.extract_strided_slice %29 {offsets = [22, 0], sizes = [1, 128], strides = [1, 1]} : vector<25x128xf32> to vector<1x128xf32>
    %573 = vector.broadcast %572 : vector<1x128xf32> to vector<4x128xf32>
    %574 = arith.mulf %571, %573 : vector<4x128xf32>
    %c94_i32_127 = arith.constant 94 : i32
    %575 = tpu.dynamic_rotate %483 by %c94_i32_127 dim 1 : vector<4x128xf32>, i32 -> vector<4x128xf32>
    %576 = vector.extract_strided_slice %29 {offsets = [23, 0], sizes = [1, 128], strides = [1, 1]} : vector<25x128xf32> to vector<1x128xf32>
    %577 = vector.broadcast %576 : vector<1x128xf32> to vector<4x128xf32>
    %578 = arith.mulf %575, %577 : vector<4x128xf32>
    %c92_i32_128 = arith.constant 92 : i32
    %579 = tpu.dynamic_rotate %483 by %c92_i32_128 dim 1 : vector<4x128xf32>, i32 -> vector<4x128xf32>
    %580 = vector.extract_strided_slice %29 {offsets = [24, 0], sizes = [1, 128], strides = [1, 1]} : vector<25x128xf32> to vector<1x128xf32>
    %581 = vector.broadcast %580 : vector<1x128xf32> to vector<4x128xf32>
    %582 = arith.mulf %579, %581 : vector<4x128xf32>
    %583 = tpu.concatenate %487, %491, %495, %499, %503, %507, %511, %515, %519, %523, %527, %531, %534, %538, %542, %546 in 0 : vector<4x128xf32>, vector<4x128xf32>, vector<4x128xf32>, vector<4x128xf32>, vector<4x128xf32>, vector<4x128xf32>, vector<4x128xf32>, vector<4x128xf32>, vector<4x128xf32>, vector<4x128xf32>, vector<4x128xf32>, vector<4x128xf32>, vector<4x128xf32>, vector<4x128xf32>, vector<4x128xf32>, vector<4x128xf32> -> vector<64x128xf32>
    %584 = tpu.concatenate %550, %554, %558, %562, %566, %570, %574, %578, %582 in 0 : vector<4x128xf32>, vector<4x128xf32>, vector<4x128xf32>, vector<4x128xf32>, vector<4x128xf32>, vector<4x128xf32>, vector<4x128xf32>, vector<4x128xf32>, vector<4x128xf32> -> vector<36x128xf32>
    %585 = tpu.concatenate %583, %584 in 0 : vector<64x128xf32>, vector<36x128xf32> -> vector<100x128xf32>
    %c312 = arith.constant 312 : index
    %c0_129 = arith.constant 0 : index
    %586 = vector.load %arg8[%c312, %c0_129] : memref<520x128xf32, #tpu.memory_space<vmem>>, vector<100x128xf32>
    tpu.vector_store %arg8[%c312, %c0_129], %585 {strides = array<i32>} : memref<520x128xf32, #tpu.memory_space<vmem>>, vector<100x128xf32>,
    %c2_130 = arith.constant 2 : index
    %c0_131 = arith.constant 0 : index
    %c0_132 = arith.constant 0 : index
    %587 = vector.load %arg5[%c2_130, %c0_131, %c0_132] : memref<4x20x520xf32, #tpu.memory_space<vmem>>, vector<1x20x520xf32>
    %588 = vector.shape_cast %587 : vector<1x20x520xf32> to vector<20x520xf32>
    %c0_133 = arith.constant 0 : index
    %c0_134 = arith.constant 0 : index
    %589 = vector.load %arg8[%c0_133, %c0_134] : memref<520x128xf32, #tpu.memory_space<vmem>>, vector<520x128xf32>
    %cst_135 = arith.constant dense<0.000000e+00> : vector<20x128xf32>
    %590 = tpu.matmul %588, %589, %cst_135 {dimension_numbers = #tpu.dot_dimension_numbers<[1], [0], [0], [1], [0, 0, 1, 1], [], []>} : vector<20x520xf32>, vector<520x128xf32>, vector<20x128xf32> -> vector<20x128xf32>
    %cst_136 = arith.constant dense<0.000000e+00> : vector<20xf32>
    %591 = vector.multi_reduction <add>, %590, %cst_136 [1] : vector<20x128xf32> to vector<20xf32>
    %592 = vector.shape_cast %591 : vector<20xf32> to vector<20x1xf32>
    %cst_137 = arith.constant 7.812500e-03 : f32
    %593 = vector.broadcast %cst_137 : f32 to vector<20x1xf32>
    %594 = arith.mulf %592, %593 : vector<20x1xf32>
    %595 = vector.broadcast %594 : vector<20x1xf32> to vector<20x128xf32>
    %596 = arith.subf %590, %595 : vector<20x128xf32>
    %597 = arith.mulf %596, %596 : vector<20x128xf32>
    %cst_138 = arith.constant dense<0.000000e+00> : vector<20xf32>
    %598 = vector.multi_reduction <add>, %597, %cst_138 [1] : vector<20x128xf32> to vector<20xf32>
    %599 = vector.shape_cast %598 : vector<20xf32> to vector<20x1xf32>
    %cst_139 = arith.constant 7.812500e-03 : f32
    %600 = vector.broadcast %cst_139 : f32 to vector<20x1xf32>
    %601 = arith.mulf %599, %600 : vector<20x1xf32>
    %cst_140 = arith.constant 9.99999974E-6 : f32
    %602 = vector.broadcast %cst_140 : f32 to vector<20x1xf32>
    %603 = arith.addf %601, %602 : vector<20x1xf32>
    %604 = math.rsqrt %603 : vector<20x1xf32>
    %605 = vector.broadcast %604 : vector<20x1xf32> to vector<20x128xf32>
    %606 = arith.mulf %596, %605 : vector<20x128xf32>
    %cst_141 = arith.constant 0.000000e+00 : f32
    %607 = vector.broadcast %cst_141 : f32 to vector<4x128xf32>
    %cst_142 = arith.constant 0.000000e+00 : f32
    %608 = vector.broadcast %cst_142 : f32 to vector<12x128xf32>
    %c5 = arith.constant 5 : index
    %609 = memref.load %arg0[%c5] : memref<14xf32, #tpu.memory_space<smem>>
    %c5_143 = arith.constant 5 : index
    %610 = memref.load %arg1[%c5_143] : memref<14xf32, #tpu.memory_space<smem>>
    %611 = arith.mulf %609, %610 : f32
    %612 = vector.extract_strided_slice %606 {offsets = [0, 0], sizes = [4, 128], strides = [1, 1]} : vector<20x128xf32> to vector<4x128xf32>
    %613 = vector.broadcast %611 : f32 to vector<4x128xf32>
    %614 = arith.mulf %613, %612 : vector<4x128xf32>
    %615 = arith.addf %607, %614 : vector<4x128xf32>
    %616 = vector.extract_strided_slice %25 {offsets = [4, 0], sizes = [12, 128], strides = [1, 1]} : vector<16x128xf32> to vector<12x128xf32>
    %617 = vector.broadcast %610 : f32 to vector<12x128xf32>
    %618 = arith.mulf %617, %616 : vector<12x128xf32>
    %619 = arith.addf %608, %618 : vector<12x128xf32>
    %c6 = arith.constant 6 : index
    %620 = memref.load %arg0[%c6] : memref<14xf32, #tpu.memory_space<smem>>
    %c6_144 = arith.constant 6 : index
    %621 = memref.load %arg1[%c6_144] : memref<14xf32, #tpu.memory_space<smem>>
    %622 = arith.mulf %620, %621 : f32
    %623 = vector.extract_strided_slice %606 {offsets = [4, 0], sizes = [4, 128], strides = [1, 1]} : vector<20x128xf32> to vector<4x128xf32>
    %624 = vector.broadcast %622 : f32 to vector<4x128xf32>
    %625 = arith.mulf %624, %623 : vector<4x128xf32>
    %626 = arith.addf %615, %625 : vector<4x128xf32>
    %627 = vector.extract_strided_slice %26 {offsets = [4, 0], sizes = [12, 128], strides = [1, 1]} : vector<16x128xf32> to vector<12x128xf32>
    %628 = vector.broadcast %621 : f32 to vector<12x128xf32>
    %629 = arith.mulf %628, %627 : vector<12x128xf32>
    %630 = arith.addf %619, %629 : vector<12x128xf32>
    %c7 = arith.constant 7 : index
    %631 = memref.load %arg0[%c7] : memref<14xf32, #tpu.memory_space<smem>>
    %c7_145 = arith.constant 7 : index
    %632 = memref.load %arg1[%c7_145] : memref<14xf32, #tpu.memory_space<smem>>
    %633 = arith.mulf %631, %632 : f32
    %634 = vector.extract_strided_slice %606 {offsets = [8, 0], sizes = [4, 128], strides = [1, 1]} : vector<20x128xf32> to vector<4x128xf32>
    %635 = vector.broadcast %633 : f32 to vector<4x128xf32>
    %636 = arith.mulf %635, %634 : vector<4x128xf32>
    %637 = arith.addf %626, %636 : vector<4x128xf32>
    %638 = vector.extract_strided_slice %302 {offsets = [4, 0], sizes = [12, 128], strides = [1, 1]} : vector<16x128xf32> to vector<12x128xf32>
    %639 = vector.broadcast %632 : f32 to vector<12x128xf32>
    %640 = arith.mulf %639, %638 : vector<12x128xf32>
    %641 = arith.addf %630, %640 : vector<12x128xf32>
    %c8 = arith.constant 8 : index
    %642 = memref.load %arg0[%c8] : memref<14xf32, #tpu.memory_space<smem>>
    %c8_146 = arith.constant 8 : index
    %643 = memref.load %arg1[%c8_146] : memref<14xf32, #tpu.memory_space<smem>>
    %644 = arith.mulf %642, %643 : f32
    %645 = vector.extract_strided_slice %606 {offsets = [12, 0], sizes = [4, 128], strides = [1, 1]} : vector<20x128xf32> to vector<4x128xf32>
    %646 = vector.broadcast %644 : f32 to vector<4x128xf32>
    %647 = arith.mulf %646, %645 : vector<4x128xf32>
    %648 = arith.addf %637, %647 : vector<4x128xf32>
    %649 = vector.extract_strided_slice %480 {offsets = [4, 0], sizes = [12, 128], strides = [1, 1]} : vector<16x128xf32> to vector<12x128xf32>
    %650 = vector.broadcast %643 : f32 to vector<12x128xf32>
    %651 = arith.mulf %650, %649 : vector<12x128xf32>
    %652 = arith.addf %641, %651 : vector<12x128xf32>
    %653 = vector.extract_strided_slice %648 {offsets = [0, 0], sizes = [1, 128], strides = [1, 1]} : vector<4x128xf32> to vector<1x128xf32>
    %654 = vector.extract_strided_slice %652 {offsets = [0, 0], sizes = [1, 128], strides = [1, 1]} : vector<12x128xf32> to vector<1x128xf32>
    %655 = vector.extract_strided_slice %652 {offsets = [4, 0], sizes = [1, 128], strides = [1, 1]} : vector<12x128xf32> to vector<1x128xf32>
    %656 = vector.extract_strided_slice %652 {offsets = [8, 0], sizes = [1, 128], strides = [1, 1]} : vector<12x128xf32> to vector<1x128xf32>
    %657 = vector.extract_strided_slice %648 {offsets = [1, 0], sizes = [1, 128], strides = [1, 1]} : vector<4x128xf32> to vector<1x128xf32>
    %658 = vector.extract_strided_slice %652 {offsets = [1, 0], sizes = [1, 128], strides = [1, 1]} : vector<12x128xf32> to vector<1x128xf32>
    %659 = vector.extract_strided_slice %652 {offsets = [5, 0], sizes = [1, 128], strides = [1, 1]} : vector<12x128xf32> to vector<1x128xf32>
    %660 = vector.extract_strided_slice %652 {offsets = [9, 0], sizes = [1, 128], strides = [1, 1]} : vector<12x128xf32> to vector<1x128xf32>
    %661 = vector.extract_strided_slice %648 {offsets = [2, 0], sizes = [1, 128], strides = [1, 1]} : vector<4x128xf32> to vector<1x128xf32>
    %662 = vector.extract_strided_slice %652 {offsets = [2, 0], sizes = [1, 128], strides = [1, 1]} : vector<12x128xf32> to vector<1x128xf32>
    %663 = vector.extract_strided_slice %652 {offsets = [6, 0], sizes = [1, 128], strides = [1, 1]} : vector<12x128xf32> to vector<1x128xf32>
    %664 = vector.extract_strided_slice %652 {offsets = [10, 0], sizes = [1, 128], strides = [1, 1]} : vector<12x128xf32> to vector<1x128xf32>
    %665 = vector.extract_strided_slice %648 {offsets = [3, 0], sizes = [1, 128], strides = [1, 1]} : vector<4x128xf32> to vector<1x128xf32>
    %666 = vector.extract_strided_slice %652 {offsets = [3, 0], sizes = [1, 128], strides = [1, 1]} : vector<12x128xf32> to vector<1x128xf32>
    %667 = vector.extract_strided_slice %652 {offsets = [7, 0], sizes = [1, 128], strides = [1, 1]} : vector<12x128xf32> to vector<1x128xf32>
    %668 = vector.extract_strided_slice %652 {offsets = [11, 0], sizes = [1, 128], strides = [1, 1]} : vector<12x128xf32> to vector<1x128xf32>
    %669 = tpu.concatenate %653, %654, %655, %656, %657, %658, %659, %660, %661, %662, %663, %664, %665, %666, %667, %668 in 0 : vector<1x128xf32>, vector<1x128xf32>, vector<1x128xf32>, vector<1x128xf32>, vector<1x128xf32>, vector<1x128xf32>, vector<1x128xf32>, vector<1x128xf32>, vector<1x128xf32>, vector<1x128xf32>, vector<1x128xf32>, vector<1x128xf32>, vector<1x128xf32>, vector<1x128xf32>, vector<1x128xf32>, vector<1x128xf32> -> vector<16x128xf32>
    %670 = vector.extract_strided_slice %669 {offsets = [0, 0], sizes = [4, 128], strides = [1, 1]} : vector<16x128xf32> to vector<4x128xf32>
    %cst_147 = arith.constant 0.000000e+00 : f32
    %671 = vector.broadcast %cst_147 : f32 to vector<4x128xf32>
    %672 = arith.maximumf %670, %671 : vector<4x128xf32>
    %c36_i32_148 = arith.constant 36 : i32
    %673 = tpu.dynamic_rotate %672 by %c36_i32_148 dim 1 : vector<4x128xf32>, i32 -> vector<4x128xf32>
    %674 = vector.extract_strided_slice %29 {offsets = [0, 0], sizes = [1, 128], strides = [1, 1]} : vector<25x128xf32> to vector<1x128xf32>
    %675 = vector.broadcast %674 : vector<1x128xf32> to vector<4x128xf32>
    %676 = arith.mulf %673, %675 : vector<4x128xf32>
    %c34_i32_149 = arith.constant 34 : i32
    %677 = tpu.dynamic_rotate %672 by %c34_i32_149 dim 1 : vector<4x128xf32>, i32 -> vector<4x128xf32>
    %678 = vector.extract_strided_slice %29 {offsets = [1, 0], sizes = [1, 128], strides = [1, 1]} : vector<25x128xf32> to vector<1x128xf32>
    %679 = vector.broadcast %678 : vector<1x128xf32> to vector<4x128xf32>
    %680 = arith.mulf %677, %679 : vector<4x128xf32>
    %c32_i32_150 = arith.constant 32 : i32
    %681 = tpu.dynamic_rotate %672 by %c32_i32_150 dim 1 : vector<4x128xf32>, i32 -> vector<4x128xf32>
    %682 = vector.extract_strided_slice %29 {offsets = [2, 0], sizes = [1, 128], strides = [1, 1]} : vector<25x128xf32> to vector<1x128xf32>
    %683 = vector.broadcast %682 : vector<1x128xf32> to vector<4x128xf32>
    %684 = arith.mulf %681, %683 : vector<4x128xf32>
    %c30_i32_151 = arith.constant 30 : i32
    %685 = tpu.dynamic_rotate %672 by %c30_i32_151 dim 1 : vector<4x128xf32>, i32 -> vector<4x128xf32>
    %686 = vector.extract_strided_slice %29 {offsets = [3, 0], sizes = [1, 128], strides = [1, 1]} : vector<25x128xf32> to vector<1x128xf32>
    %687 = vector.broadcast %686 : vector<1x128xf32> to vector<4x128xf32>
    %688 = arith.mulf %685, %687 : vector<4x128xf32>
    %c28_i32_152 = arith.constant 28 : i32
    %689 = tpu.dynamic_rotate %672 by %c28_i32_152 dim 1 : vector<4x128xf32>, i32 -> vector<4x128xf32>
    %690 = vector.extract_strided_slice %29 {offsets = [4, 0], sizes = [1, 128], strides = [1, 1]} : vector<25x128xf32> to vector<1x128xf32>
    %691 = vector.broadcast %690 : vector<1x128xf32> to vector<4x128xf32>
    %692 = arith.mulf %689, %691 : vector<4x128xf32>
    %c20_i32_153 = arith.constant 20 : i32
    %693 = tpu.dynamic_rotate %672 by %c20_i32_153 dim 1 : vector<4x128xf32>, i32 -> vector<4x128xf32>
    %694 = vector.extract_strided_slice %29 {offsets = [5, 0], sizes = [1, 128], strides = [1, 1]} : vector<25x128xf32> to vector<1x128xf32>
    %695 = vector.broadcast %694 : vector<1x128xf32> to vector<4x128xf32>
    %696 = arith.mulf %693, %695 : vector<4x128xf32>
    %c18_i32_154 = arith.constant 18 : i32
    %697 = tpu.dynamic_rotate %672 by %c18_i32_154 dim 1 : vector<4x128xf32>, i32 -> vector<4x128xf32>
    %698 = vector.extract_strided_slice %29 {offsets = [6, 0], sizes = [1, 128], strides = [1, 1]} : vector<25x128xf32> to vector<1x128xf32>
    %699 = vector.broadcast %698 : vector<1x128xf32> to vector<4x128xf32>
    %700 = arith.mulf %697, %699 : vector<4x128xf32>
    %c16_i32_155 = arith.constant 16 : i32
    %701 = tpu.dynamic_rotate %672 by %c16_i32_155 dim 1 : vector<4x128xf32>, i32 -> vector<4x128xf32>
    %702 = vector.extract_strided_slice %29 {offsets = [7, 0], sizes = [1, 128], strides = [1, 1]} : vector<25x128xf32> to vector<1x128xf32>
    %703 = vector.broadcast %702 : vector<1x128xf32> to vector<4x128xf32>
    %704 = arith.mulf %701, %703 : vector<4x128xf32>
    %c14_i32_156 = arith.constant 14 : i32
    %705 = tpu.dynamic_rotate %672 by %c14_i32_156 dim 1 : vector<4x128xf32>, i32 -> vector<4x128xf32>
    %706 = vector.extract_strided_slice %29 {offsets = [8, 0], sizes = [1, 128], strides = [1, 1]} : vector<25x128xf32> to vector<1x128xf32>
    %707 = vector.broadcast %706 : vector<1x128xf32> to vector<4x128xf32>
    %708 = arith.mulf %705, %707 : vector<4x128xf32>
    %c12_i32_157 = arith.constant 12 : i32
    %709 = tpu.dynamic_rotate %672 by %c12_i32_157 dim 1 : vector<4x128xf32>, i32 -> vector<4x128xf32>
    %710 = vector.extract_strided_slice %29 {offsets = [9, 0], sizes = [1, 128], strides = [1, 1]} : vector<25x128xf32> to vector<1x128xf32>
    %711 = vector.broadcast %710 : vector<1x128xf32> to vector<4x128xf32>
    %712 = arith.mulf %709, %711 : vector<4x128xf32>
    %c4_i32_158 = arith.constant 4 : i32
    %713 = tpu.dynamic_rotate %672 by %c4_i32_158 dim 1 : vector<4x128xf32>, i32 -> vector<4x128xf32>
    %714 = vector.extract_strided_slice %29 {offsets = [10, 0], sizes = [1, 128], strides = [1, 1]} : vector<25x128xf32> to vector<1x128xf32>
    %715 = vector.broadcast %714 : vector<1x128xf32> to vector<4x128xf32>
    %716 = arith.mulf %713, %715 : vector<4x128xf32>
    %c2_i32_159 = arith.constant 2 : i32
    %717 = tpu.dynamic_rotate %672 by %c2_i32_159 dim 1 : vector<4x128xf32>, i32 -> vector<4x128xf32>
    %718 = vector.extract_strided_slice %29 {offsets = [11, 0], sizes = [1, 128], strides = [1, 1]} : vector<25x128xf32> to vector<1x128xf32>
    %719 = vector.broadcast %718 : vector<1x128xf32> to vector<4x128xf32>
    %720 = arith.mulf %717, %719 : vector<4x128xf32>
    %721 = vector.extract_strided_slice %29 {offsets = [12, 0], sizes = [1, 128], strides = [1, 1]} : vector<25x128xf32> to vector<1x128xf32>
    %722 = vector.broadcast %721 : vector<1x128xf32> to vector<4x128xf32>
    %723 = arith.mulf %672, %722 : vector<4x128xf32>
    %c126_i32_160 = arith.constant 126 : i32
    %724 = tpu.dynamic_rotate %672 by %c126_i32_160 dim 1 : vector<4x128xf32>, i32 -> vector<4x128xf32>
    %725 = vector.extract_strided_slice %29 {offsets = [13, 0], sizes = [1, 128], strides = [1, 1]} : vector<25x128xf32> to vector<1x128xf32>
    %726 = vector.broadcast %725 : vector<1x128xf32> to vector<4x128xf32>
    %727 = arith.mulf %724, %726 : vector<4x128xf32>
    %c124_i32_161 = arith.constant 124 : i32
    %728 = tpu.dynamic_rotate %672 by %c124_i32_161 dim 1 : vector<4x128xf32>, i32 -> vector<4x128xf32>
    %729 = vector.extract_strided_slice %29 {offsets = [14, 0], sizes = [1, 128], strides = [1, 1]} : vector<25x128xf32> to vector<1x128xf32>
    %730 = vector.broadcast %729 : vector<1x128xf32> to vector<4x128xf32>
    %731 = arith.mulf %728, %730 : vector<4x128xf32>
    %c116_i32_162 = arith.constant 116 : i32
    %732 = tpu.dynamic_rotate %672 by %c116_i32_162 dim 1 : vector<4x128xf32>, i32 -> vector<4x128xf32>
    %733 = vector.extract_strided_slice %29 {offsets = [15, 0], sizes = [1, 128], strides = [1, 1]} : vector<25x128xf32> to vector<1x128xf32>
    %734 = vector.broadcast %733 : vector<1x128xf32> to vector<4x128xf32>
    %735 = arith.mulf %732, %734 : vector<4x128xf32>
    %c114_i32_163 = arith.constant 114 : i32
    %736 = tpu.dynamic_rotate %672 by %c114_i32_163 dim 1 : vector<4x128xf32>, i32 -> vector<4x128xf32>
    %737 = vector.extract_strided_slice %29 {offsets = [16, 0], sizes = [1, 128], strides = [1, 1]} : vector<25x128xf32> to vector<1x128xf32>
    %738 = vector.broadcast %737 : vector<1x128xf32> to vector<4x128xf32>
    %739 = arith.mulf %736, %738 : vector<4x128xf32>
    %c112_i32_164 = arith.constant 112 : i32
    %740 = tpu.dynamic_rotate %672 by %c112_i32_164 dim 1 : vector<4x128xf32>, i32 -> vector<4x128xf32>
    %741 = vector.extract_strided_slice %29 {offsets = [17, 0], sizes = [1, 128], strides = [1, 1]} : vector<25x128xf32> to vector<1x128xf32>
    %742 = vector.broadcast %741 : vector<1x128xf32> to vector<4x128xf32>
    %743 = arith.mulf %740, %742 : vector<4x128xf32>
    %c110_i32_165 = arith.constant 110 : i32
    %744 = tpu.dynamic_rotate %672 by %c110_i32_165 dim 1 : vector<4x128xf32>, i32 -> vector<4x128xf32>
    %745 = vector.extract_strided_slice %29 {offsets = [18, 0], sizes = [1, 128], strides = [1, 1]} : vector<25x128xf32> to vector<1x128xf32>
    %746 = vector.broadcast %745 : vector<1x128xf32> to vector<4x128xf32>
    %747 = arith.mulf %744, %746 : vector<4x128xf32>
    %c108_i32_166 = arith.constant 108 : i32
    %748 = tpu.dynamic_rotate %672 by %c108_i32_166 dim 1 : vector<4x128xf32>, i32 -> vector<4x128xf32>
    %749 = vector.extract_strided_slice %29 {offsets = [19, 0], sizes = [1, 128], strides = [1, 1]} : vector<25x128xf32> to vector<1x128xf32>
    %750 = vector.broadcast %749 : vector<1x128xf32> to vector<4x128xf32>
    %751 = arith.mulf %748, %750 : vector<4x128xf32>
    %c100_i32_167 = arith.constant 100 : i32
    %752 = tpu.dynamic_rotate %672 by %c100_i32_167 dim 1 : vector<4x128xf32>, i32 -> vector<4x128xf32>
    %753 = vector.extract_strided_slice %29 {offsets = [20, 0], sizes = [1, 128], strides = [1, 1]} : vector<25x128xf32> to vector<1x128xf32>
    %754 = vector.broadcast %753 : vector<1x128xf32> to vector<4x128xf32>
    %755 = arith.mulf %752, %754 : vector<4x128xf32>
    %c98_i32_168 = arith.constant 98 : i32
    %756 = tpu.dynamic_rotate %672 by %c98_i32_168 dim 1 : vector<4x128xf32>, i32 -> vector<4x128xf32>
    %757 = vector.extract_strided_slice %29 {offsets = [21, 0], sizes = [1, 128], strides = [1, 1]} : vector<25x128xf32> to vector<1x128xf32>
    %758 = vector.broadcast %757 : vector<1x128xf32> to vector<4x128xf32>
    %759 = arith.mulf %756, %758 : vector<4x128xf32>
    %c96_i32_169 = arith.constant 96 : i32
    %760 = tpu.dynamic_rotate %672 by %c96_i32_169 dim 1 : vector<4x128xf32>, i32 -> vector<4x128xf32>
    %761 = vector.extract_strided_slice %29 {offsets = [22, 0], sizes = [1, 128], strides = [1, 1]} : vector<25x128xf32> to vector<1x128xf32>
    %762 = vector.broadcast %761 : vector<1x128xf32> to vector<4x128xf32>
    %763 = arith.mulf %760, %762 : vector<4x128xf32>
    %c94_i32_170 = arith.constant 94 : i32
    %764 = tpu.dynamic_rotate %672 by %c94_i32_170 dim 1 : vector<4x128xf32>, i32 -> vector<4x128xf32>
    %765 = vector.extract_strided_slice %29 {offsets = [23, 0], sizes = [1, 128], strides = [1, 1]} : vector<25x128xf32> to vector<1x128xf32>
    %766 = vector.broadcast %765 : vector<1x128xf32> to vector<4x128xf32>
    %767 = arith.mulf %764, %766 : vector<4x128xf32>
    %c92_i32_171 = arith.constant 92 : i32
    %768 = tpu.dynamic_rotate %672 by %c92_i32_171 dim 1 : vector<4x128xf32>, i32 -> vector<4x128xf32>
    %769 = vector.extract_strided_slice %29 {offsets = [24, 0], sizes = [1, 128], strides = [1, 1]} : vector<25x128xf32> to vector<1x128xf32>
    %770 = vector.broadcast %769 : vector<1x128xf32> to vector<4x128xf32>
    %771 = arith.mulf %768, %770 : vector<4x128xf32>
    %772 = tpu.concatenate %676, %680, %684, %688, %692, %696, %700, %704, %708, %712, %716, %720, %723, %727, %731, %735 in 0 : vector<4x128xf32>, vector<4x128xf32>, vector<4x128xf32>, vector<4x128xf32>, vector<4x128xf32>, vector<4x128xf32>, vector<4x128xf32>, vector<4x128xf32>, vector<4x128xf32>, vector<4x128xf32>, vector<4x128xf32>, vector<4x128xf32>, vector<4x128xf32>, vector<4x128xf32>, vector<4x128xf32>, vector<4x128xf32> -> vector<64x128xf32>
    %773 = tpu.concatenate %739, %743, %747, %751, %755, %759, %763, %767, %771 in 0 : vector<4x128xf32>, vector<4x128xf32>, vector<4x128xf32>, vector<4x128xf32>, vector<4x128xf32>, vector<4x128xf32>, vector<4x128xf32>, vector<4x128xf32>, vector<4x128xf32> -> vector<36x128xf32>
    %774 = tpu.concatenate %772, %773 in 0 : vector<64x128xf32>, vector<36x128xf32> -> vector<100x128xf32>
    %c416 = arith.constant 416 : index
    %c0_172 = arith.constant 0 : index
    %775 = vector.load %arg8[%c416, %c0_172] : memref<520x128xf32, #tpu.memory_space<vmem>>, vector<100x128xf32>
    tpu.vector_store %arg8[%c416, %c0_172], %774 {strides = array<i32>} : memref<520x128xf32, #tpu.memory_space<vmem>>, vector<100x128xf32>,
    %c3_173 = arith.constant 3 : index
    %c0_174 = arith.constant 0 : index
    %c0_175 = arith.constant 0 : index
    %776 = vector.load %arg5[%c3_173, %c0_174, %c0_175] : memref<4x20x520xf32, #tpu.memory_space<vmem>>, vector<1x20x520xf32>
    %777 = vector.shape_cast %776 : vector<1x20x520xf32> to vector<20x520xf32>
    %c0_176 = arith.constant 0 : index
    %c0_177 = arith.constant 0 : index
    %778 = vector.load %arg8[%c0_176, %c0_177] : memref<520x128xf32, #tpu.memory_space<vmem>>, vector<520x128xf32>
    %cst_178 = arith.constant dense<0.000000e+00> : vector<20x128xf32>
    %779 = tpu.matmul %777, %778, %cst_178 {dimension_numbers = #tpu.dot_dimension_numbers<[1], [0], [0], [1], [0, 0, 1, 1], [], []>} : vector<20x520xf32>, vector<520x128xf32>, vector<20x128xf32> -> vector<20x128xf32>
    %cst_179 = arith.constant dense<0.000000e+00> : vector<20xf32>
    %780 = vector.multi_reduction <add>, %779, %cst_179 [1] : vector<20x128xf32> to vector<20xf32>
    %781 = vector.shape_cast %780 : vector<20xf32> to vector<20x1xf32>
    %cst_180 = arith.constant 7.812500e-03 : f32
    %782 = vector.broadcast %cst_180 : f32 to vector<20x1xf32>
    %783 = arith.mulf %781, %782 : vector<20x1xf32>
    %784 = vector.broadcast %783 : vector<20x1xf32> to vector<20x128xf32>
    %785 = arith.subf %779, %784 : vector<20x128xf32>
    %786 = arith.mulf %785, %785 : vector<20x128xf32>
    %cst_181 = arith.constant dense<0.000000e+00> : vector<20xf32>
    %787 = vector.multi_reduction <add>, %786, %cst_181 [1] : vector<20x128xf32> to vector<20xf32>
    %788 = vector.shape_cast %787 : vector<20xf32> to vector<20x1xf32>
    %cst_182 = arith.constant 7.812500e-03 : f32
    %789 = vector.broadcast %cst_182 : f32 to vector<20x1xf32>
    %790 = arith.mulf %788, %789 : vector<20x1xf32>
    %cst_183 = arith.constant 9.99999974E-6 : f32
    %791 = vector.broadcast %cst_183 : f32 to vector<20x1xf32>
    %792 = arith.addf %790, %791 : vector<20x1xf32>
    %793 = math.rsqrt %792 : vector<20x1xf32>
    %794 = vector.broadcast %793 : vector<20x1xf32> to vector<20x128xf32>
    %795 = arith.mulf %785, %794 : vector<20x128xf32>
    %cst_184 = arith.constant 0.000000e+00 : f32
    %796 = vector.broadcast %cst_184 : f32 to vector<4x128xf32>
    %cst_185 = arith.constant 0.000000e+00 : f32
    %797 = vector.broadcast %cst_185 : f32 to vector<12x128xf32>
    %c9 = arith.constant 9 : index
    %798 = memref.load %arg0[%c9] : memref<14xf32, #tpu.memory_space<smem>>
    %c9_186 = arith.constant 9 : index
    %799 = memref.load %arg1[%c9_186] : memref<14xf32, #tpu.memory_space<smem>>
    %800 = arith.mulf %798, %799 : f32
    %801 = vector.extract_strided_slice %795 {offsets = [0, 0], sizes = [4, 128], strides = [1, 1]} : vector<20x128xf32> to vector<4x128xf32>
    %802 = vector.broadcast %800 : f32 to vector<4x128xf32>
    %803 = arith.mulf %802, %801 : vector<4x128xf32>
    %804 = arith.addf %796, %803 : vector<4x128xf32>
    %805 = vector.extract_strided_slice %25 {offsets = [4, 0], sizes = [12, 128], strides = [1, 1]} : vector<16x128xf32> to vector<12x128xf32>
    %806 = vector.broadcast %799 : f32 to vector<12x128xf32>
    %807 = arith.mulf %806, %805 : vector<12x128xf32>
    %808 = arith.addf %797, %807 : vector<12x128xf32>
    %c10 = arith.constant 10 : index
    %809 = memref.load %arg0[%c10] : memref<14xf32, #tpu.memory_space<smem>>
    %c10_187 = arith.constant 10 : index
    %810 = memref.load %arg1[%c10_187] : memref<14xf32, #tpu.memory_space<smem>>
    %811 = arith.mulf %809, %810 : f32
    %812 = vector.extract_strided_slice %795 {offsets = [4, 0], sizes = [4, 128], strides = [1, 1]} : vector<20x128xf32> to vector<4x128xf32>
    %813 = vector.broadcast %811 : f32 to vector<4x128xf32>
    %814 = arith.mulf %813, %812 : vector<4x128xf32>
    %815 = arith.addf %804, %814 : vector<4x128xf32>
    %816 = vector.extract_strided_slice %26 {offsets = [4, 0], sizes = [12, 128], strides = [1, 1]} : vector<16x128xf32> to vector<12x128xf32>
    %817 = vector.broadcast %810 : f32 to vector<12x128xf32>
    %818 = arith.mulf %817, %816 : vector<12x128xf32>
    %819 = arith.addf %808, %818 : vector<12x128xf32>
    %c11 = arith.constant 11 : index
    %820 = memref.load %arg0[%c11] : memref<14xf32, #tpu.memory_space<smem>>
    %c11_188 = arith.constant 11 : index
    %821 = memref.load %arg1[%c11_188] : memref<14xf32, #tpu.memory_space<smem>>
    %822 = arith.mulf %820, %821 : f32
    %823 = vector.extract_strided_slice %795 {offsets = [8, 0], sizes = [4, 128], strides = [1, 1]} : vector<20x128xf32> to vector<4x128xf32>
    %824 = vector.broadcast %822 : f32 to vector<4x128xf32>
    %825 = arith.mulf %824, %823 : vector<4x128xf32>
    %826 = arith.addf %815, %825 : vector<4x128xf32>
    %827 = vector.extract_strided_slice %302 {offsets = [4, 0], sizes = [12, 128], strides = [1, 1]} : vector<16x128xf32> to vector<12x128xf32>
    %828 = vector.broadcast %821 : f32 to vector<12x128xf32>
    %829 = arith.mulf %828, %827 : vector<12x128xf32>
    %830 = arith.addf %819, %829 : vector<12x128xf32>
    %c12 = arith.constant 12 : index
    %831 = memref.load %arg0[%c12] : memref<14xf32, #tpu.memory_space<smem>>
    %c12_189 = arith.constant 12 : index
    %832 = memref.load %arg1[%c12_189] : memref<14xf32, #tpu.memory_space<smem>>
    %833 = arith.mulf %831, %832 : f32
    %834 = vector.extract_strided_slice %795 {offsets = [12, 0], sizes = [4, 128], strides = [1, 1]} : vector<20x128xf32> to vector<4x128xf32>
    %835 = vector.broadcast %833 : f32 to vector<4x128xf32>
    %836 = arith.mulf %835, %834 : vector<4x128xf32>
    %837 = arith.addf %826, %836 : vector<4x128xf32>
    %838 = vector.extract_strided_slice %480 {offsets = [4, 0], sizes = [12, 128], strides = [1, 1]} : vector<16x128xf32> to vector<12x128xf32>
    %839 = vector.broadcast %832 : f32 to vector<12x128xf32>
    %840 = arith.mulf %839, %838 : vector<12x128xf32>
    %841 = arith.addf %830, %840 : vector<12x128xf32>
    %c13 = arith.constant 13 : index
    %842 = memref.load %arg0[%c13] : memref<14xf32, #tpu.memory_space<smem>>
    %c13_190 = arith.constant 13 : index
    %843 = memref.load %arg1[%c13_190] : memref<14xf32, #tpu.memory_space<smem>>
    %844 = arith.mulf %842, %843 : f32
    %845 = vector.extract_strided_slice %795 {offsets = [16, 0], sizes = [4, 128], strides = [1, 1]} : vector<20x128xf32> to vector<4x128xf32>
    %846 = vector.broadcast %844 : f32 to vector<4x128xf32>
    %847 = arith.mulf %846, %845 : vector<4x128xf32>
    %848 = arith.addf %837, %847 : vector<4x128xf32>
    %849 = vector.extract_strided_slice %669 {offsets = [4, 0], sizes = [12, 128], strides = [1, 1]} : vector<16x128xf32> to vector<12x128xf32>
    %850 = vector.broadcast %843 : f32 to vector<12x128xf32>
    %851 = arith.mulf %850, %849 : vector<12x128xf32>
    %852 = arith.addf %841, %851 : vector<12x128xf32>
    %853 = vector.extract_strided_slice %848 {offsets = [0, 0], sizes = [1, 128], strides = [1, 1]} : vector<4x128xf32> to vector<1x128xf32>
    %854 = vector.extract_strided_slice %852 {offsets = [0, 0], sizes = [1, 128], strides = [1, 1]} : vector<12x128xf32> to vector<1x128xf32>
    %855 = vector.extract_strided_slice %852 {offsets = [4, 0], sizes = [1, 128], strides = [1, 1]} : vector<12x128xf32> to vector<1x128xf32>
    %856 = vector.extract_strided_slice %852 {offsets = [8, 0], sizes = [1, 128], strides = [1, 1]} : vector<12x128xf32> to vector<1x128xf32>
    %857 = vector.extract_strided_slice %848 {offsets = [1, 0], sizes = [1, 128], strides = [1, 1]} : vector<4x128xf32> to vector<1x128xf32>
    %858 = vector.extract_strided_slice %852 {offsets = [1, 0], sizes = [1, 128], strides = [1, 1]} : vector<12x128xf32> to vector<1x128xf32>
    %859 = vector.extract_strided_slice %852 {offsets = [5, 0], sizes = [1, 128], strides = [1, 1]} : vector<12x128xf32> to vector<1x128xf32>
    %860 = vector.extract_strided_slice %852 {offsets = [9, 0], sizes = [1, 128], strides = [1, 1]} : vector<12x128xf32> to vector<1x128xf32>
    %861 = vector.extract_strided_slice %848 {offsets = [2, 0], sizes = [1, 128], strides = [1, 1]} : vector<4x128xf32> to vector<1x128xf32>
    %862 = vector.extract_strided_slice %852 {offsets = [2, 0], sizes = [1, 128], strides = [1, 1]} : vector<12x128xf32> to vector<1x128xf32>
    %863 = vector.extract_strided_slice %852 {offsets = [6, 0], sizes = [1, 128], strides = [1, 1]} : vector<12x128xf32> to vector<1x128xf32>
    %864 = vector.extract_strided_slice %852 {offsets = [10, 0], sizes = [1, 128], strides = [1, 1]} : vector<12x128xf32> to vector<1x128xf32>
    %865 = vector.extract_strided_slice %848 {offsets = [3, 0], sizes = [1, 128], strides = [1, 1]} : vector<4x128xf32> to vector<1x128xf32>
    %866 = vector.extract_strided_slice %852 {offsets = [3, 0], sizes = [1, 128], strides = [1, 1]} : vector<12x128xf32> to vector<1x128xf32>
    %867 = vector.extract_strided_slice %852 {offsets = [7, 0], sizes = [1, 128], strides = [1, 1]} : vector<12x128xf32> to vector<1x128xf32>
    %868 = vector.extract_strided_slice %852 {offsets = [11, 0], sizes = [1, 128], strides = [1, 1]} : vector<12x128xf32> to vector<1x128xf32>
    %869 = tpu.concatenate %853, %854, %855, %856, %857, %858, %859, %860, %861, %862, %863, %864, %865, %866, %867, %868 in 0 : vector<1x128xf32>, vector<1x128xf32>, vector<1x128xf32>, vector<1x128xf32>, vector<1x128xf32>, vector<1x128xf32>, vector<1x128xf32>, vector<1x128xf32>, vector<1x128xf32>, vector<1x128xf32>, vector<1x128xf32>, vector<1x128xf32>, vector<1x128xf32>, vector<1x128xf32>, vector<1x128xf32>, vector<1x128xf32> -> vector<16x128xf32>
    %870 = tpu.concatenate %302, %480, %669, %869 in 0 : vector<16x128xf32>, vector<16x128xf32>, vector<16x128xf32>, vector<16x128xf32> -> vector<64x128xf32>
    %c0_191 = arith.constant 0 : index
    %c0_192 = arith.constant 0 : index
    %871 = vector.load %arg7[%c0_191, %c0_192] : memref<64x128xf32, #tpu.memory_space<vmem>>, vector<64x128xf32>
    tpu.vector_store %arg7[%c0_191, %c0_192], %870 {strides = array<i32>} : memref<64x128xf32, #tpu.memory_space<vmem>>, vector<64x128xf32>,
    return
  }
}

</mosaic_0001>

<llo_original>
// kernel: _lambda_.1
$region0: #{_lambda_.1}
  #allocation0 [shape = 'u32[]', space=smem, size = 0x4, offset = 0x4, fixed_abs, tag = 'smem constant byte address 0x4 - core index']
  #allocation1 [shape = 'u32[72,128]{1,0:T(1,128)}', space=vmem, size = 0x9000, scoped, tag = 'internal scratch']
  #allocation2 [shape = 'f32[520,128]{1,0:T(8,128)}', space=vmem, size = 0x41000, scoped, tag = 'scratch operand']
  %s0 = inlined_call_operand.vmem [shape: f32[14], index: 0, kind: input, shape index: {}]
  %s1 = inlined_call_operand.vmem [shape: f32[14], index: 1, kind: input, shape index: {}]
  %s2 = inlined_call_operand.vmem [shape: f32[16,128], index: 2, kind: input, shape index: {}]
  %s3 = inlined_call_operand.vmem [shape: f32[16,128], index: 3, kind: input, shape index: {}]
  %s4 = inlined_call_operand.vmem [shape: f32[32,32], index: 4, kind: input, shape index: {}]
  %s5 = inlined_call_operand.hbm [shape: f32[4,20,520], index: 5, kind: input, shape index: {}]
  %s6 = inlined_call_operand.vmem [shape: f32[25,128], index: 6, kind: input, shape index: {}]
  %s7 = inlined_call_operand.vmem [shape: f32[64,128], index: 7, kind: output, shape index: {}]
  %s8 = sld [smem:[#allocation0]]
  $region50: #{_lambda_.1} parent=0
    _
  %s10 = ssub.s32 1, %s8
  %s11 = scalar_select 0, %s10, %s8
  $region1: #{_lambda_.1} parent=0
    #allocation3 [shape = 'u8[512]{0}', space=smem, size = 0x200, scoped, tag = 'input window, operand 0, single buffered']
    #allocation4 [shape = 's32[1]{0}', space=sflag, size = 0x4, scoped, tag = 'scoped memory for _lambda_.1']
    #allocation5 [shape = 's32[1]{0}', space=sflag, size = 0x4, scoped, tag = 'scoped memory for _lambda_.1']
    #allocation6 [shape = 'u8[512]{0}', space=smem, size = 0x200, scoped, tag = 'input window, operand 1, single buffered']
    #allocation7 [shape = 's32[1]{0}', space=sflag, size = 0x4, scoped, tag = 'scoped memory for _lambda_.1']
    #allocation8 [shape = 'u8[245760]{0}', space=vmem, size = 0x3c000, scoped, tag = 'input window, operand 5, single buffered']
    %12 = vsyncpa [#allocation5], 0
    %13 = vsyncpa [#allocation7], 0
    %14 = vsyncpa [#allocation4], 0
    // Predicated region
    $region2: #{_lambda_.1} parent=1 // pred_check
      _
    $region3: #{_lambda_.1} parent=1 // pred_check_branch
      %16 = sbr.rel (0) target = $region5
    $region4: #{_lambda_.1} parent=1 // pred_region
      %18 = vsyncadd [#allocation5], 0
      %s20 = sshll.u32 %s0, 4
      %s21 = int_to_ptr.vmem [resolvable:$true] %s20
      %23 = dma.vmem_to_smem %s21, 16, [#allocation3], [#allocation5]
    $region5: #{_lambda_.1} parent=1 // pred_fallthru
      _
    // Predicated region
    $region6: #{_lambda_.1} parent=1 // pred_check
      _
    $region7: #{_lambda_.1} parent=1 // pred_check_branch
      %25 = sbr.rel (0) target = $region9
    $region8: #{_lambda_.1} parent=1 // pred_region
      %27 = vsyncadd [#allocation7], 0
      %s29 = sshll.u32 %s1, 4
      %s30 = int_to_ptr.vmem [resolvable:$true] %s29
      %32 = dma.vmem_to_smem %s30, 16, [#allocation6], [#allocation7]
    $region9: #{_lambda_.1} parent=1 // pred_fallthru
      _
    // Predicated region
    $region10: #{_lambda_.1} parent=1 // pred_check
      _
    $region11: #{_lambda_.1} parent=1 // pred_check_branch
      %34 = sbr.rel (0) target = $region13
    $region12: #{_lambda_.1} parent=1 // pred_region
      _
    $region13: #{_lambda_.1} parent=1 // pred_fallthru
      _
    // Predicated region
    $region14: #{_lambda_.1} parent=1 // pred_check
      _
    $region15: #{_lambda_.1} parent=1 // pred_check_branch
      %36 = sbr.rel (0) target = $region17
    $region16: #{_lambda_.1} parent=1 // pred_region
      _
    $region17: #{_lambda_.1} parent=1 // pred_fallthru
      _
    // Predicated region
    $region18: #{_lambda_.1} parent=1 // pred_check
      _
    $region19: #{_lambda_.1} parent=1 // pred_check_branch
      %38 = sbr.rel (0) target = $region21
    $region20: #{_lambda_.1} parent=1 // pred_region
      _
    $region21: #{_lambda_.1} parent=1 // pred_fallthru
      _
    // Predicated region
    $region22: #{_lambda_.1} parent=1 // pred_check
      _
    $region23: #{_lambda_.1} parent=1 // pred_check_branch
      %40 = sbr.rel (0) target = $region25
    $region24: #{_lambda_.1} parent=1 // pred_region
      %42 = vsyncadd [#allocation4], 0
      %s43 = sshll.u32 %s5, 4
      %s44 = int_to_ptr.hbm [resolvable:$true] %s43
      %s45 = sshll.u32 [#allocation8], 4
      %s46 = int_to_ptr.vmem [resolvable:$true] %s45
      %51 = dma.hbm_to_vmem [thread:$0]  %s44, 7680, %s46, [#allocation4], 640, 640, 40
    $region25: #{_lambda_.1} parent=1 // pred_fallthru
      _
    // Predicated region
    $region26: #{_lambda_.1} parent=1 // pred_check
      _
    $region27: #{_lambda_.1} parent=1 // pred_check_branch
      %53 = sbr.rel (0) target = $region29
    $region28: #{_lambda_.1} parent=1 // pred_region
      _
    $region29: #{_lambda_.1} parent=1 // pred_fallthru
      _
    // Predicated region
    $region30: #{_lambda_.1} parent=1 // pred_check
      _
    $region31: #{_lambda_.1} parent=1 // pred_check_branch
      %55 = sbr.rel (0) target = $region33
    $region32: #{_lambda_.1} parent=1 // pred_region
      %57 = dma.done [#allocation5], 16
    $region33: #{_lambda_.1} parent=1 // pred_fallthru
      _
    // Predicated region
    $region34: #{_lambda_.1} parent=1 // pred_check
      _
    $region35: #{_lambda_.1} parent=1 // pred_check_branch
      %59 = sbr.rel (0) target = $region37
    $region36: #{_lambda_.1} parent=1 // pred_region
      %61 = dma.done [#allocation7], 16
    $region37: #{_lambda_.1} parent=1 // pred_fallthru
      _
    // Predicated region
    $region38: #{_lambda_.1} parent=1 // pred_check
      _
    $region39: #{_lambda_.1} parent=1 // pred_check_branch
      %63 = sbr.rel (0) target = $region41
    $region40: #{_lambda_.1} parent=1 // pred_region
      %65 = dma.done [#allocation4], 7680
    $region41: #{_lambda_.1} parent=1 // pred_fallthru
      _
    %66 = sfence
    %v67 = vld [vmem:[%s2] sm:$0xff]
    %v68 = vld [vmem:[%s2 + $0x8] sm:$0xff]
    %v69 = vmax.f32 %v67, 0.0
    %v70 = vmax.f32 %v68, 0.0
    %v71 = vld [vmem:[%s3] sm:$0xff]
    %v72 = vld [vmem:[%s3 + $0x8] sm:$0xff]
    %v73 = vmax.f32 %v71, 0.0
    %v74 = vmax.f32 %v72, 0.0
    %v75 = vld [vmem:[%s4] sm:$0xff]
    %v76 = vld [vmem:[%s4 + $0x8] sm:$0xff]
    %v77 = vld [vmem:[%s4 + $0x10] sm:$0xff]
    %v78 = vld [vmem:[%s4 + $0x18] sm:$0xff]
    %vm79 = vcmask 261120
    %v81 = vsel %vm79, %v75, 0
    %v84 = vsel %vm79, %v76, 0
    %v87 = vsel %vm79, %v77, 0
    %v90 = vsel %vm79, %v78, 0
    %92 = vmatpush.msra.mxu0 0.0
    %93 = vmatpush.msra.mxu0 0.0
    %94 = vmatpush.msra.mxu0 0.0
    %95 = vmatpush.msra.mxu0 0.0
    %96 = vmatpush.msra.mxu0 0.0
    %97 = vmatpush.msra.mxu0 0.0
    %98 = vmatpush.msra.mxu0 0.0
    %99 = vmatpush.msra.mxu0 0.0
    %100 = vmatpush.msra.mxu0 0.0
    %101 = vmatpush.msra.mxu0 0.0
    %102 = vmatpush.msra.mxu0 0.0
    %103 = vmatpush.msra.mxu0 0.0
    %104 = vmatpush.msra.mxu0 %v74
    %105 = vmatpush.msra.mxu0 %v73
    %106 = vmatpush.msra.mxu0 %v70
    %107 = vmatpush.msra.mxu0 %v69
    %108 = vmatmul.f32.gmra.mxu0 %v81
    %v109 = vpop.f32.mrf.mxu0
    %v110 = vadd.f32 0.0, %v109
    %111 = vmatmul.f32.gmra.mxu0 %v84
    %v112 = vpop.f32.mrf.mxu0
    %v113 = vadd.f32 0.0, %v112
    %114 = vmatmul.f32.gmra.mxu0 %v87
    %v115 = vpop.f32.mrf.mxu0
    %v116 = vadd.f32 0.0, %v115
    %117 = vmatmul.f32.gmra.mxu0 %v90
    %v118 = vpop.f32.mrf.mxu0
    %v119 = vadd.f32 0.0, %v118
    %120 = vdwg.mxu0
    %121 = vadd.xlane.f32.xlu0 %v110
    %v122 = vpop.xlane.xlu0 %121
    %123 = vadd.xlane.f32.xlu0 %v113
    %v124 = vpop.xlane.xlu0 %123
    %125 = vadd.xlane.f32.xlu0 %v116
    %v126 = vpop.xlane.xlu0 %125
    %127 = vadd.xlane.f32.xlu0 %v119
    %v128 = vpop.xlane.xlu0 %127
    %v129 = vmul.f32 %v122, 0.0078125
    %v130 = vmul.f32 %v124, 0.0078125
    %v131 = vmul.f32 %v126, 0.0078125
    %v132 = vmul.f32 %v128, 0.0078125
    %v133 = vsub.f32 %v110, %v129
    %v134 = vsub.f32 %v113, %v130
    %v135 = vsub.f32 %v116, %v131
    %v136 = vsub.f32 %v119, %v132
    %v137 = vmul.f32 %v133, %v133
    %v138 = vmul.f32 %v134, %v134
    %v139 = vmul.f32 %v135, %v135
    %v140 = vmul.f32 %v136, %v136
    %141 = vadd.xlane.f32.xlu0 %v137
    %v142 = vpop.xlane.xlu0 %141
    %143 = vadd.xlane.f32.xlu0 %v138
    %v144 = vpop.xlane.xlu0 %143
    %145 = vadd.xlane.f32.xlu0 %v139
    %v146 = vpop.xlane.xlu0 %145
    %147 = vadd.xlane.f32.xlu0 %v140
    %v148 = vpop.xlane.xlu0 %147
    %v149 = vmul.f32 %v142, 0.0078125
    %v150 = vmul.f32 %v144, 0.0078125
    %v151 = vmul.f32 %v146, 0.0078125
    %v152 = vmul.f32 %v148, 0.0078125
    %v153 = vadd.f32 %v149, 1e-05
    %v154 = vadd.f32 %v150, 1e-05
    %v155 = vadd.f32 %v151, 1e-05
    %v156 = vadd.f32 %v152, 1e-05
    %v157 = vrsqrt.pop %v153
    %v158 = vmul.f32 %v157, %v153
    %v159 = vmul.f32 %v158, %v157
    %v160 = vmul.f32 0.5, %v159
    %v161 = vsub.f32 1.5, %v160
    %v162 = vmul.f32 %v157, %v161
    %vm163 = vweird.f32 %v153
    %vm164 = vweird.f32 %v157
    %vm165 = vmor %vm163, %vm164
    %v166 = vsel %vm165, %v157, %v162
    %v167 = vrsqrt.pop %v154
    %v168 = vmul.f32 %v167, %v154
    %v169 = vmul.f32 %v168, %v167
    %v170 = vmul.f32 0.5, %v169
    %v171 = vsub.f32 1.5, %v170
    %v172 = vmul.f32 %v167, %v171
    %vm173 = vweird.f32 %v154
    %vm174 = vweird.f32 %v167
    %vm175 = vmor %vm173, %vm174
    %v176 = vsel %vm175, %v167, %v172
    %v177 = vrsqrt.pop %v155
    %v178 = vmul.f32 %v177, %v155
    %v179 = vmul.f32 %v178, %v177
    %v180 = vmul.f32 0.5, %v179
    %v181 = vsub.f32 1.5, %v180
    %v182 = vmul.f32 %v177, %v181
    %vm183 = vweird.f32 %v155
    %vm184 = vweird.f32 %v177
    %vm185 = vmor %vm183, %vm184
    %v186 = vsel %vm185, %v177, %v182
    %v187 = vrsqrt.pop %v156
    %v188 = vmul.f32 %v187, %v156
    %v189 = vmul.f32 %v188, %v187
    %v190 = vmul.f32 0.5, %v189
    %v191 = vsub.f32 1.5, %v190
    %v192 = vmul.f32 %v187, %v191
    %vm193 = vweird.f32 %v156
    %vm194 = vweird.f32 %v187
    %vm195 = vmor %vm193, %vm194
    %v196 = vsel %vm195, %v187, %v192
    %v197 = vmul.f32 %v133, %v166
    %v198 = vmul.f32 %v134, %v176
    %v199 = vmul.f32 %v135, %v186
    %v200 = vmul.f32 %v136, %v196
    %201 = vst [vmem:[#allocation2] sm:$0xff] 0.0
    %202 = vst [vmem:[#allocation2 + $0x8] sm:$0xff] 0.0
    %203 = vst [vmem:[#allocation2 + $0x10] sm:$0xff] 0.0
    %204 = vst [vmem:[#allocation2 + $0x18] sm:$0xff] 0.0
    %205 = vst [vmem:[#allocation2 + $0x20] sm:$0xff] 0.0
    %206 = vst [vmem:[#allocation2 + $0x28] sm:$0xff] 0.0
    %207 = vst [vmem:[#allocation2 + $0x30] sm:$0xff] 0.0
    %208 = vst [vmem:[#allocation2 + $0x38] sm:$0xff] 0.0
    %209 = vst [vmem:[#allocation2 + $0x40] sm:$0xff] 0.0
    %210 = vst [vmem:[#allocation2 + $0x48] sm:$0xff] 0.0
    %211 = vst [vmem:[#allocation2 + $0x50] sm:$0xff] 0.0
    %212 = vst [vmem:[#allocation2 + $0x58] sm:$0xff] 0.0
    %213 = vst [vmem:[#allocation2 + $0x60] sm:$0xff] 0.0
    %214 = vst [vmem:[#allocation2 + $0x68] sm:$0xff] 0.0
    %215 = vst [vmem:[#allocation2 + $0x70] sm:$0xff] 0.0
    %216 = vst [vmem:[#allocation2 + $0x78] sm:$0xff] 0.0
    %217 = vst [vmem:[#allocation2 + $0x80] sm:$0xff] 0.0
    %218 = vst [vmem:[#allocation2 + $0x88] sm:$0xff] 0.0
    %219 = vst [vmem:[#allocation2 + $0x90] sm:$0xff] 0.0
    %220 = vst [vmem:[#allocation2 + $0x98] sm:$0xff] 0.0
    %221 = vst [vmem:[#allocation2 + $0xa0] sm:$0xff] 0.0
    %222 = vst [vmem:[#allocation2 + $0xa8] sm:$0xff] 0.0
    %223 = vst [vmem:[#allocation2 + $0xb0] sm:$0xff] 0.0
    %224 = vst [vmem:[#allocation2 + $0xb8] sm:$0xff] 0.0
    %225 = vst [vmem:[#allocation2 + $0xc0] sm:$0xff] 0.0
    %226 = vst [vmem:[#allocation2 + $0xc8] sm:$0xff] 0.0
    %227 = vst [vmem:[#allocation2 + $0xd0] sm:$0xff] 0.0
    %228 = vst [vmem:[#allocation2 + $0xd8] sm:$0xff] 0.0
    %229 = vst [vmem:[#allocation2 + $0xe0] sm:$0xff] 0.0
    %230 = vst [vmem:[#allocation2 + $0xe8] sm:$0xff] 0.0
    %231 = vst [vmem:[#allocation2 + $0xf0] sm:$0xff] 0.0
    %232 = vst [vmem:[#allocation2 + $0xf8] sm:$0xff] 0.0
    %233 = vst [vmem:[#allocation2 + $0x100] sm:$0xff] 0.0
    %234 = vst [vmem:[#allocation2 + $0x108] sm:$0xff] 0.0
    %235 = vst [vmem:[#allocation2 + $0x110] sm:$0xff] 0.0
    %236 = vst [vmem:[#allocation2 + $0x118] sm:$0xff] 0.0
    %237 = vst [vmem:[#allocation2 + $0x120] sm:$0xff] 0.0
    %238 = vst [vmem:[#allocation2 + $0x128] sm:$0xff] 0.0
    %239 = vst [vmem:[#allocation2 + $0x130] sm:$0xff] 0.0
    %240 = vst [vmem:[#allocation2 + $0x138] sm:$0xff] 0.0
    %241 = vst [vmem:[#allocation2 + $0x140] sm:$0xff] 0.0
    %242 = vst [vmem:[#allocation2 + $0x148] sm:$0xff] 0.0
    %243 = vst [vmem:[#allocation2 + $0x150] sm:$0xff] 0.0
    %244 = vst [vmem:[#allocation2 + $0x158] sm:$0xff] 0.0
    %245 = vst [vmem:[#allocation2 + $0x160] sm:$0xff] 0.0
    %246 = vst [vmem:[#allocation2 + $0x168] sm:$0xff] 0.0
    %247 = vst [vmem:[#allocation2 + $0x170] sm:$0xff] 0.0
    %248 = vst [vmem:[#allocation2 + $0x178] sm:$0xff] 0.0
    %249 = vst [vmem:[#allocation2 + $0x180] sm:$0xff] 0.0
    %250 = vst [vmem:[#allocation2 + $0x188] sm:$0xff] 0.0
    %251 = vst [vmem:[#allocation2 + $0x190] sm:$0xff] 0.0
    %252 = vst [vmem:[#allocation2 + $0x198] sm:$0xff] 0.0
    %253 = vst [vmem:[#allocation2 + $0x1a0] sm:$0xff] 0.0
    %254 = vst [vmem:[#allocation2 + $0x1a8] sm:$0xff] 0.0
    %255 = vst [vmem:[#allocation2 + $0x1b0] sm:$0xff] 0.0
    %256 = vst [vmem:[#allocation2 + $0x1b8] sm:$0xff] 0.0
    %257 = vst [vmem:[#allocation2 + $0x1c0] sm:$0xff] 0.0
    %258 = vst [vmem:[#allocation2 + $0x1c8] sm:$0xff] 0.0
    %259 = vst [vmem:[#allocation2 + $0x1d0] sm:$0xff] 0.0
    %260 = vst [vmem:[#allocation2 + $0x1d8] sm:$0xff] 0.0
    %261 = vst [vmem:[#allocation2 + $0x1e0] sm:$0xff] 0.0
    %262 = vst [vmem:[#allocation2 + $0x1e8] sm:$0xff] 0.0
    %263 = vst [vmem:[#allocation2 + $0x1f0] sm:$0xff] 0.0
    %264 = vst [vmem:[#allocation2 + $0x1f8] sm:$0xff] 0.0
    %265 = vst [vmem:[#allocation2 + $0x200] sm:$0xff] 0.0
    %v266 = vld [vmem:[%s6] sm:$0xff]
    %v267 = vld [vmem:[%s6 + $0x8] sm:$0xff]
    %v268 = vld [vmem:[%s6 + $0x10] sm:$0xff]
    %v269 = vld [vmem:[%s6 + $0x18] sm:$0x1]
    %v270 = vmax.f32 %v197, 0.0
    %271 = vrot.lane.b32.xlu0 %v270, 36
    %v272 = vpop.permute.xlu0 %271
    %v273 = vperm.slane %v266, 0
    %v274 = vmul.f32 %v272, %v273
    %275 = vrot.lane.b32.xlu0 %v270, 34
    %v276 = vpop.permute.xlu0 %275
    %v277 = vperm.slane %v266, 1
    %v278 = vmul.f32 %v276, %v277
    %279 = vrot.lane.b32.xlu0 %v270, 32
    %v280 = vpop.permute.xlu0 %279
    %v281 = vperm.slane %v266, 2
    %v282 = vmul.f32 %v280, %v281
    %283 = vrot.lane.b32.xlu0 %v270, 30
    %v284 = vpop.permute.xlu0 %283
    %v285 = vperm.slane %v266, 3
    %v286 = vmul.f32 %v284, %v285
    %287 = vrot.lane.b32.xlu0 %v270, 28
    %v288 = vpop.permute.xlu0 %287
    %v289 = vperm.slane %v266, 4
    %v290 = vmul.f32 %v288, %v289
    %291 = vrot.lane.b32.xlu0 %v270, 20
    %v292 = vpop.permute.xlu0 %291
    %v293 = vperm.slane %v266, 5
    %v294 = vmul.f32 %v292, %v293
    %295 = vrot.lane.b32.xlu0 %v270, 18
    %v296 = vpop.permute.xlu0 %295
    %v297 = vperm.slane %v266, 6
    %v298 = vmul.f32 %v296, %v297
    %299 = vrot.lane.b32.xlu0 %v270, 16
    %v300 = vpop.permute.xlu0 %299
    %v301 = vperm.slane %v266, 7
    %v302 = vmul.f32 %v300, %v301
    %303 = vrot.lane.b32.xlu0 %v270, 14
    %v304 = vpop.permute.xlu0 %303
    %v305 = vperm.slane %v267, 0
    %v306 = vmul.f32 %v304, %v305
    %307 = vrot.lane.b32.xlu0 %v270, 12
    %v308 = vpop.permute.xlu0 %307
    %v309 = vperm.slane %v267, 1
    %v310 = vmul.f32 %v308, %v309
    %311 = vrot.lane.b32.xlu0 %v270, 4
    %v312 = vpop.permute.xlu0 %311
    %v313 = vperm.slane %v267, 2
    %v314 = vmul.f32 %v312, %v313
    %315 = vrot.lane.b32.xlu0 %v270, 2
    %v316 = vpop.permute.xlu0 %315
    %v317 = vperm.slane %v267, 3
    %v318 = vmul.f32 %v316, %v317
    %v319 = vperm.slane %v267, 4
    %v320 = vmul.f32 %v270, %v319
    %321 = vrot.lane.b32.xlu0 %v270, 126
    %v322 = vpop.permute.xlu0 %321
    %v323 = vperm.slane %v267, 5
    %v324 = vmul.f32 %v322, %v323
    %325 = vrot.lane.b32.xlu0 %v270, 124
    %v326 = vpop.permute.xlu0 %325
    %v327 = vperm.slane %v267, 6
    %v328 = vmul.f32 %v326, %v327
    %329 = vrot.lane.b32.xlu0 %v270, 116
    %v330 = vpop.permute.xlu0 %329
    %v331 = vperm.slane %v267, 7
    %v332 = vmul.f32 %v330, %v331
    %333 = vrot.lane.b32.xlu0 %v270, 114
    %v334 = vpop.permute.xlu0 %333
    %v335 = vperm.slane %v268, 0
    %v336 = vmul.f32 %v334, %v335
    %337 = vrot.lane.b32.xlu0 %v270, 112
    %v338 = vpop.permute.xlu0 %337
    %v339 = vperm.slane %v268, 1
    %v340 = vmul.f32 %v338, %v339
    %341 = vrot.lane.b32.xlu0 %v270, 110
    %v342 = vpop.permute.xlu0 %341
    %v343 = vperm.slane %v268, 2
    %v344 = vmul.f32 %v342, %v343
    %345 = vrot.lane.b32.xlu0 %v270, 108
    %v346 = vpop.permute.xlu0 %345
    %v347 = vperm.slane %v268, 3
    %v348 = vmul.f32 %v346, %v347
    %349 = vrot.lane.b32.xlu0 %v270, 100
    %v350 = vpop.permute.xlu0 %349
    %v351 = vperm.slane %v268, 4
    %v352 = vmul.f32 %v350, %v351
    %353 = vrot.lane.b32.xlu0 %v270, 98
    %v354 = vpop.permute.xlu0 %353
    %v355 = vperm.slane %v268, 5
    %v356 = vmul.f32 %v354, %v355
    %357 = vrot.lane.b32.xlu0 %v270, 96
    %v358 = vpop.permute.xlu0 %357
    %v359 = vperm.slane %v268, 6
    %v360 = vmul.f32 %v358, %v359
    %361 = vrot.lane.b32.xlu0 %v270, 94
    %v362 = vpop.permute.xlu0 %361
    %v363 = vperm.slane %v268, 7
    %v364 = vmul.f32 %v362, %v363
    %365 = vrot.lane.b32.xlu0 %v270, 92
    %v366 = vpop.permute.xlu0 %365
    %v367 = vperm.slane %v269, 0
    %v368 = vmul.f32 %v366, %v367
    %v370 = vrot.slane %v278, 4
    %v373 = vrot.slane %v286, 4
    %v376 = vrot.slane %v294, 4
    %v379 = vrot.slane %v302, 4
    %v382 = vrot.slane %v310, 4
    %v385 = vrot.slane %v318, 4
    %v388 = vrot.slane %v324, 4
    %v391 = vrot.slane %v332, 4
    %vm393 = vcmask 1043456
    %v394 = vsel %vm393, %v274, %v370
    %v395 = vsel %vm393, %v282, %v373
    %v396 = vsel %vm393, %v290, %v376
    %v397 = vsel %vm393, %v298, %v379
    %v398 = vsel %vm393, %v306, %v382
    %v399 = vsel %vm393, %v314, %v385
    %v400 = vsel %vm393, %v320, %v388
    %v401 = vsel %vm393, %v328, %v391
    %v403 = vrot.slane %v340, 4
    %v406 = vrot.slane %v348, 4
    %v409 = vrot.slane %v356, 4
    %v412 = vrot.slane %v364, 4
    %v414 = vsel %vm393, %v336, %v403
    %v415 = vsel %vm393, %v344, %v406
    %v416 = vsel %vm393, %v352, %v409
    %v417 = vsel %vm393, %v360, %v412
    %418 = vst [vmem:[#allocation2] sm:$0xff] %v394
    %419 = vst [vmem:[#allocation2 + $0x8] sm:$0xff] %v395
    %420 = vst [vmem:[#allocation2 + $0x10] sm:$0xff] %v396
    %421 = vst [vmem:[#allocation2 + $0x18] sm:$0xff] %v397
    %422 = vst [vmem:[#allocation2 + $0x20] sm:$0xff] %v398
    %423 = vst [vmem:[#allocation2 + $0x28] sm:$0xff] %v399
    %424 = vst [vmem:[#allocation2 + $0x30] sm:$0xff] %v400
    %425 = vst [vmem:[#allocation2 + $0x38] sm:$0xff] %v401
    %426 = vst [vmem:[#allocation2 + $0x40] sm:$0xff] %v414
    %427 = vst [vmem:[#allocation2 + $0x48] sm:$0xff] %v415
    %428 = vst [vmem:[#allocation2 + $0x50] sm:$0xff] %v416
    %429 = vst [vmem:[#allocation2 + $0x58] sm:$0xff] %v417
    %430 = vst [vmem:[#allocation2 + $0x60] sm:$0xf] %v368
    %v431 = vmax.f32 %v199, 0.0
    %432 = vrot.lane.b32.xlu0 %v431, 36
    %v433 = vpop.permute.xlu0 %432
    %v434 = vmul.f32 %v433, %v273
    %435 = vrot.lane.b32.xlu0 %v431, 34
    %v436 = vpop.permute.xlu0 %435
    %v437 = vmul.f32 %v436, %v277
    %438 = vrot.lane.b32.xlu0 %v431, 32
    %v439 = vpop.permute.xlu0 %438
    %v440 = vmul.f32 %v439, %v281
    %441 = vrot.lane.b32.xlu0 %v431, 30
    %v442 = vpop.permute.xlu0 %441
    %v443 = vmul.f32 %v442, %v285
    %444 = vrot.lane.b32.xlu0 %v431, 28
    %v445 = vpop.permute.xlu0 %444
    %v446 = vmul.f32 %v445, %v289
    %447 = vrot.lane.b32.xlu0 %v431, 20
    %v448 = vpop.permute.xlu0 %447
    %v449 = vmul.f32 %v448, %v293
    %450 = vrot.lane.b32.xlu0 %v431, 18
    %v451 = vpop.permute.xlu0 %450
    %v452 = vmul.f32 %v451, %v297
    %453 = vrot.lane.b32.xlu0 %v431, 16
    %v454 = vpop.permute.xlu0 %453
    %v455 = vmul.f32 %v454, %v301
    %456 = vrot.lane.b32.xlu0 %v431, 14
    %v457 = vpop.permute.xlu0 %456
    %v458 = vmul.f32 %v457, %v305
    %459 = vrot.lane.b32.xlu0 %v431, 12
    %v460 = vpop.permute.xlu0 %459
    %v461 = vmul.f32 %v460, %v309
    %462 = vrot.lane.b32.xlu0 %v431, 4
    %v463 = vpop.permute.xlu0 %462
    %v464 = vmul.f32 %v463, %v313
    %465 = vrot.lane.b32.xlu0 %v431, 2
    %v466 = vpop.permute.xlu0 %465
    %v467 = vmul.f32 %v466, %v317
    %v468 = vmul.f32 %v431, %v319
    %469 = vrot.lane.b32.xlu0 %v431, 126
    %v470 = vpop.permute.xlu0 %469
    %v471 = vmul.f32 %v470, %v323
    %472 = vrot.lane.b32.xlu0 %v431, 124
    %v473 = vpop.permute.xlu0 %472
    %v474 = vmul.f32 %v473, %v327
    %475 = vrot.lane.b32.xlu0 %v431, 116
    %v476 = vpop.permute.xlu0 %475
    %v477 = vmul.f32 %v476, %v331
    %478 = vrot.lane.b32.xlu0 %v431, 114
    %v479 = vpop.permute.xlu0 %478
    %v480 = vmul.f32 %v479, %v335
    %481 = vrot.lane.b32.xlu0 %v431, 112
    %v482 = vpop.permute.xlu0 %481
    %v483 = vmul.f32 %v482, %v339
    %484 = vrot.lane.b32.xlu0 %v431, 110
    %v485 = vpop.permute.xlu0 %484
    %v486 = vmul.f32 %v485, %v343
    %487 = vrot.lane.b32.xlu0 %v431, 108
    %v488 = vpop.permute.xlu0 %487
    %v489 = vmul.f32 %v488, %v347
    %490 = vrot.lane.b32.xlu0 %v431, 100
    %v491 = vpop.permute.xlu0 %490
    %v492 = vmul.f32 %v491, %v351
    %493 = vrot.lane.b32.xlu0 %v431, 98
    %v494 = vpop.permute.xlu0 %493
    %v495 = vmul.f32 %v494, %v355
    %496 = vrot.lane.b32.xlu0 %v431, 96
    %v497 = vpop.permute.xlu0 %496
    %v498 = vmul.f32 %v497, %v359
    %499 = vrot.lane.b32.xlu0 %v431, 94
    %v500 = vpop.permute.xlu0 %499
    %v501 = vmul.f32 %v500, %v363
    %502 = vrot.lane.b32.xlu0 %v431, 92
    %v503 = vpop.permute.xlu0 %502
    %v504 = vmul.f32 %v503, %v367
    %v506 = vrot.slane %v437, 4
    %v509 = vrot.slane %v443, 4
    %v512 = vrot.slane %v449, 4
    %v515 = vrot.slane %v455, 4
    %v518 = vrot.slane %v461, 4
    %v521 = vrot.slane %v467, 4
    %v524 = vrot.slane %v471, 4
    %v527 = vrot.slane %v477, 4
    %v529 = vsel %vm393, %v434, %v506
    %v530 = vsel %vm393, %v440, %v509
    %v531 = vsel %vm393, %v446, %v512
    %v532 = vsel %vm393, %v452, %v515
    %v533 = vsel %vm393, %v458, %v518
    %v534 = vsel %vm393, %v464, %v521
    %v535 = vsel %vm393, %v468, %v524
    %v536 = vsel %vm393, %v474, %v527
    %v538 = vrot.slane %v483, 4
    %v541 = vrot.slane %v489, 4
    %v544 = vrot.slane %v495, 4
    %v547 = vrot.slane %v501, 4
    %v549 = vsel %vm393, %v480, %v538
    %v550 = vsel %vm393, %v486, %v541
    %v551 = vsel %vm393, %v492, %v544
    %v552 = vsel %vm393, %v498, %v547
    %553 = vst [vmem:[#allocation2 + $0x68] sm:$0xff] %v529
    %554 = vst [vmem:[#allocation2 + $0x70] sm:$0xff] %v530
    %555 = vst [vmem:[#allocation2 + $0x78] sm:$0xff] %v531
    %556 = vst [vmem:[#allocation2 + $0x80] sm:$0xff] %v532
    %557 = vst [vmem:[#allocation2 + $0x88] sm:$0xff] %v533
    %558 = vst [vmem:[#allocation2 + $0x90] sm:$0xff] %v534
    %559 = vst [vmem:[#allocation2 + $0x98] sm:$0xff] %v535
    %560 = vst [vmem:[#allocation2 + $0xa0] sm:$0xff] %v536
    %561 = vst [vmem:[#allocation2 + $0xa8] sm:$0xff] %v549
    %562 = vst [vmem:[#allocation2 + $0xb0] sm:$0xff] %v550
    %563 = vst [vmem:[#allocation2 + $0xb8] sm:$0xff] %v551
    %564 = vst [vmem:[#allocation2 + $0xc0] sm:$0xff] %v552
    %565 = vst [vmem:[#allocation2 + $0xc8] sm:$0xf] %v504
    %v566 = vld [vmem:[#allocation8] sm:$0xff]
    %v567 = vld [vmem:[#allocation8 + $0x8] sm:$0xff]
    %v568 = vld [vmem:[#allocation8 + $0x10] sm:$0xff]
    %v569 = vld [vmem:[#allocation8 + $0x18] sm:$0xff]
    %v570 = vld [vmem:[#allocation8 + $0x20] sm:$0xff]
    %v571 = vld [vmem:[#allocation8 + $0x28] sm:$0xff]
    %v572 = vld [vmem:[#allocation8 + $0x30] sm:$0xff]
    %v573 = vld [vmem:[#allocation8 + $0x38] sm:$0xff]
    %v574 = vld [vmem:[#allocation8 + $0x40] sm:$0xff]
    %v575 = vld [vmem:[#allocation8 + $0x48] sm:$0xff]
    %v576 = vld [vmem:[#allocation8 + $0x50] sm:$0xf]
    %v577 = vld [vmem:[#allocation8 + $0x58] sm:$0xf]
    %v578 = vld [vmem:[#allocation8 + $0x60] sm:$0xf]
    %v579 = vld [vmem:[#allocation8 + $0x68] sm:$0xf]
    %v580 = vld [vmem:[#allocation8 + $0x70] sm:$0xf]
    %v581 = vld [vmem:[#allocation2] sm:$0xff]
    %v582 = vld [vmem:[#allocation2 + $0x8] sm:$0xff]
    %v583 = vld [vmem:[#allocation2 + $0x10] sm:$0xff]
    %v584 = vld [vmem:[#allocation2 + $0x18] sm:$0xff]
    %v585 = vld [vmem:[#allocation2 + $0x20] sm:$0xff]
    %v586 = vld [vmem:[#allocation2 + $0x28] sm:$0xff]
    %v587 = vld [vmem:[#allocation2 + $0x30] sm:$0xff]
    %v588 = vld [vmem:[#allocation2 + $0x38] sm:$0xff]
    %v589 = vld [vmem:[#allocation2 + $0x40] sm:$0xff]
    %v590 = vld [vmem:[#allocation2 + $0x48] sm:$0xff]
    %v591 = vld [vmem:[#allocation2 + $0x50] sm:$0xff]
    %v592 = vld [vmem:[#allocation2 + $0x58] sm:$0xff]
    %v593 = vld [vmem:[#allocation2 + $0x60] sm:$0xff]
    %v594 = vld [vmem:[#allocation2 + $0x68] sm:$0xff]
    %v595 = vld [vmem:[#allocation2 + $0x70] sm:$0xff]
    %v596 = vld [vmem:[#allocation2 + $0x78] sm:$0xff]
    %v597 = vld [vmem:[#allocation2 + $0x80] sm:$0xff]
    %v598 = vld [vmem:[#allocation2 + $0x88] sm:$0xff]
    %v599 = vld [vmem:[#allocation2 + $0x90] sm:$0xff]
    %v600 = vld [vmem:[#allocation2 + $0x98] sm:$0xff]
    %v601 = vld [vmem:[#allocation2 + $0xa0] sm:$0xff]
    %v602 = vld [vmem:[#allocation2 + $0xa8] sm:$0xff]
    %v603 = vld [vmem:[#allocation2 + $0xb0] sm:$0xff]
    %v604 = vld [vmem:[#allocation2 + $0xb8] sm:$0xff]
    %v605 = vld [vmem:[#allocation2 + $0xc0] sm:$0xff]
    %v606 = vld [vmem:[#allocation2 + $0xc8] sm:$0xff]
    %v607 = vld [vmem:[#allocation2 + $0xd0] sm:$0xff]
    %v608 = vld [vmem:[#allocation2 + $0xd8] sm:$0xff]
    %v609 = vld [vmem:[#allocation2 + $0xe0] sm:$0xff]
    %v610 = vld [vmem:[#allocation2 + $0xe8] sm:$0xff]
    %v611 = vld [vmem:[#allocation2 + $0xf0] sm:$0xff]
    %v612 = vld [vmem:[#allocation2 + $0xf8] sm:$0xff]
    %v613 = vld [vmem:[#allocation2 + $0x100] sm:$0xff]
    %v614 = vld [vmem:[#allocation2 + $0x108] sm:$0xff]
    %v615 = vld [vmem:[#allocation2 + $0x110] sm:$0xff]
    %v616 = vld [vmem:[#allocation2 + $0x118] sm:$0xff]
    %v617 = vld [vmem:[#allocation2 + $0x120] sm:$0xff]
    %v618 = vld [vmem:[#allocation2 + $0x128] sm:$0xff]
    %v619 = vld [vmem:[#allocation2 + $0x130] sm:$0xff]
    %v620 = vld [vmem:[#allocation2 + $0x138] sm:$0xff]
    %v621 = vld [vmem:[#allocation2 + $0x140] sm:$0xff]
    %v622 = vld [vmem:[#allocation2 + $0x148] sm:$0xff]
    %v623 = vld [vmem:[#allocation2 + $0x150] sm:$0xff]
    %v624 = vld [vmem:[#allocation2 + $0x158] sm:$0xff]
    %v625 = vld [vmem:[#allocation2 + $0x160] sm:$0xff]
    %v626 = vld [vmem:[#allocation2 + $0x168] sm:$0xff]
    %v627 = vld [vmem:[#allocation2 + $0x170] sm:$0xff]
    %v628 = vld [vmem:[#allocation2 + $0x178] sm:$0xff]
    %v629 = vld [vmem:[#allocation2 + $0x180] sm:$0xff]
    %v630 = vld [vmem:[#allocation2 + $0x188] sm:$0xff]
    %v631 = vld [vmem:[#allocation2 + $0x190] sm:$0xff]
    %v632 = vld [vmem:[#allocation2 + $0x198] sm:$0xff]
    %v633 = vld [vmem:[#allocation2 + $0x1a0] sm:$0xff]
    %v634 = vld [vmem:[#allocation2 + $0x1a8] sm:$0xff]
    %v635 = vld [vmem:[#allocation2 + $0x1b0] sm:$0xff]
    %v636 = vld [vmem:[#allocation2 + $0x1b8] sm:$0xff]
    %v637 = vld [vmem:[#allocation2 + $0x1c0] sm:$0xff]
    %v638 = vld [vmem:[#allocation2 + $0x1c8] sm:$0xff]
    %v639 = vld [vmem:[#allocation2 + $0x1d0] sm:$0xff]
    %v640 = vld [vmem:[#allocation2 + $0x1d8] sm:$0xff]
    %v641 = vld [vmem:[#allocation2 + $0x1e0] sm:$0xff]
    %v642 = vld [vmem:[#allocation2 + $0x1e8] sm:$0xff]
    %v643 = vld [vmem:[#allocation2 + $0x1f0] sm:$0xff]
    %v644 = vld [vmem:[#allocation2 + $0x1f8] sm:$0xff]
    %v645 = vld [vmem:[#allocation2 + $0x200] sm:$0xff]
    %vm646 = vcmask 64512
    %v648 = vsel %vm646, %v570, 0
    %v651 = vsel %vm646, %v575, 0
    %v654 = vsel %vm646, %v580, 0
    %656 = vmatpush.msra.mxu0 %v596
    %657 = vmatpush.msra.mxu0 %v595
    %658 = vmatpush.msra.mxu0 %v594
    %659 = vmatpush.msra.mxu0 %v593
    %660 = vmatpush.msra.mxu0 %v592
    %661 = vmatpush.msra.mxu0 %v591
    %662 = vmatpush.msra.mxu0 %v590
    %663 = vmatpush.msra.mxu0 %v589
    %664 = vmatpush.msra.mxu0 %v588
    %665 = vmatpush.msra.mxu0 %v587
    %666 = vmatpush.msra.mxu0 %v586
    %667 = vmatpush.msra.mxu0 %v585
    %668 = vmatpush.msra.mxu0 %v584
    %669 = vmatpush.msra.mxu0 %v583
    %670 = vmatpush.msra.mxu0 %v582
    %671 = vmatpush.msra.mxu0 %v581
    %672 = vmatmul.f32.gmra.mxu0 %v566
    %v673 = vpop.f32.mrf.mxu0
    %v674 = vadd.f32 0.0, %v673
    %675 = vmatmul.f32.gmra.mxu0 %v571
    %v676 = vpop.f32.mrf.mxu0
    %677 = vmatmul.f32.gmra.mxu0 %v576
    %v678 = vpop.f32.mrf.mxu0
    %679 = vdwg.mxu0
    %680 = vmatpush.msra.mxu0 %v612
    %681 = vmatpush.msra.mxu0 %v611
    %682 = vmatpush.msra.mxu0 %v610
    %683 = vmatpush.msra.mxu0 %v609
    %684 = vmatpush.msra.mxu0 %v608
    %685 = vmatpush.msra.mxu0 %v607
    %686 = vmatpush.msra.mxu0 %v606
    %687 = vmatpush.msra.mxu0 %v605
    %688 = vmatpush.msra.mxu0 %v604
    %689 = vmatpush.msra.mxu0 %v603
    %690 = vmatpush.msra.mxu0 %v602
    %691 = vmatpush.msra.mxu0 %v601
    %692 = vmatpush.msra.mxu0 %v600
    %693 = vmatpush.msra.mxu0 %v599
    %694 = vmatpush.msra.mxu0 %v598
    %695 = vmatpush.msra.mxu0 %v597
    %696 = vmatmul.f32.gmra.mxu0 %v567
    %v697 = vpop.f32.mrf.mxu0
    %v698 = vadd.f32 %v674, %v697
    %699 = vmatmul.f32.gmra.mxu0 %v572
    %v700 = vpop.f32.mrf.mxu0
    %701 = vmatmul.f32.gmra.mxu0 %v577
    %v702 = vpop.f32.mrf.mxu0
    %703 = vdwg.mxu0
    %704 = vmatpush.msra.mxu0 %v628
    %705 = vmatpush.msra.mxu0 %v627
    %706 = vmatpush.msra.mxu0 %v626
    %707 = vmatpush.msra.mxu0 %v625
    %708 = vmatpush.msra.mxu0 %v624
    %709 = vmatpush.msra.mxu0 %v623
    %710 = vmatpush.msra.mxu0 %v622
    %711 = vmatpush.msra.mxu0 %v621
    %712 = vmatpush.msra.mxu0 %v620
    %713 = vmatpush.msra.mxu0 %v619
    %714 = vmatpush.msra.mxu0 %v618
    %715 = vmatpush.msra.mxu0 %v617
    %716 = vmatpush.msra.mxu0 %v616
    %717 = vmatpush.msra.mxu0 %v615
    %718 = vmatpush.msra.mxu0 %v614
    %719 = vmatpush.msra.mxu0 %v613
    %720 = vmatmul.f32.gmra.mxu0 %v568
    %v721 = vpop.f32.mrf.mxu0
    %v722 = vadd.f32 %v698, %v721
    %723 = vmatmul.f32.gmra.mxu0 %v573
    %v724 = vpop.f32.mrf.mxu0
    %725 = vmatmul.f32.gmra.mxu0 %v578
    %v726 = vpop.f32.mrf.mxu0
    %727 = vdwg.mxu0
    %728 = vmatpush.msra.mxu0 %v644
    %729 = vmatpush.msra.mxu0 %v643
    %730 = vmatpush.msra.mxu0 %v642
    %731 = vmatpush.msra.mxu0 %v641
    %732 = vmatpush.msra.mxu0 %v640
    %733 = vmatpush.msra.mxu0 %v639
    %734 = vmatpush.msra.mxu0 %v638
    %735 = vmatpush.msra.mxu0 %v637
    %736 = vmatpush.msra.mxu0 %v636
    %737 = vmatpush.msra.mxu0 %v635
    %738 = vmatpush.msra.mxu0 %v634
    %739 = vmatpush.msra.mxu0 %v633
    %740 = vmatpush.msra.mxu0 %v632
    %741 = vmatpush.msra.mxu0 %v631
    %742 = vmatpush.msra.mxu0 %v630
    %743 = vmatpush.msra.mxu0 %v629
    %744 = vmatmul.f32.gmra.mxu0 %v569
    %v745 = vpop.f32.mrf.mxu0
    %v746 = vadd.f32 %v722, %v745
    %747 = vmatmul.f32.gmra.mxu0 %v574
    %v748 = vpop.f32.mrf.mxu0
    %749 = vmatmul.f32.gmra.mxu0 %v579
    %v750 = vpop.f32.mrf.mxu0
    %751 = vdwg.mxu0
    %752 = vmatpush.msra.mxu0 0.0
    %753 = vmatpush.msra.mxu0 0.0
    %754 = vmatpush.msra.mxu0 0.0
    %755 = vmatpush.msra.mxu0 0.0
    %756 = vmatpush.msra.mxu0 0.0
    %757 = vmatpush.msra.mxu0 0.0
    %758 = vmatpush.msra.mxu0 0.0
    %759 = vmatpush.msra.mxu0 0.0
    %760 = vmatpush.msra.mxu0 0.0
    %761 = vmatpush.msra.mxu0 0.0
    %762 = vmatpush.msra.mxu0 0.0
    %763 = vmatpush.msra.mxu0 0.0
    %764 = vmatpush.msra.mxu0 0.0
    %765 = vmatpush.msra.mxu0 0.0
    %766 = vmatpush.msra.mxu0 0.0
    %767 = vmatpush.msra.mxu0 %v645
    %768 = vmatmul.f32.gmra.mxu0 %v648
    %v769 = vpop.f32.mrf.mxu0
    %v770 = vadd.f32 %v746, %v769
    %771 = vmatmul.f32.gmra.mxu0 %v651
    %v772 = vpop.f32.mrf.mxu0
    %773 = vmatmul.f32.gmra.mxu0 %v654
    %v774 = vpop.f32.mrf.mxu0
    %775 = vdwg.mxu0
    %776 = vadd.xlane.f32.xlu0 %v770
    %v777 = vpop.xlane.xlu0 %776
    %v778 = vmul.f32 %v777, 0.0078125
    %v779 = vsub.f32 %v770, %v778
    %v780 = vmul.f32 %v779, %v779
    %781 = vadd.xlane.f32.xlu0 %v780
    %v782 = vpop.xlane.xlu0 %781
    %v783 = vmul.f32 %v782, 0.0078125
    %v784 = vadd.f32 %v783, 1e-05
    %v785 = vrsqrt.pop %v784
    %v786 = vmul.f32 %v785, %v784
    %v787 = vmul.f32 %v786, %v785
    %v788 = vmul.f32 0.5, %v787
    %v789 = vsub.f32 1.5, %v788
    %v790 = vmul.f32 %v785, %v789
    %vm791 = vweird.f32 %v784
    %vm792 = vweird.f32 %v785
    %vm793 = vmor %vm791, %vm792
    %v794 = vsel %vm793, %v785, %v790
    %v795 = vmul.f32 %v779, %v794
    %s796 = sld [smem:[#allocation3]]
    %s797 = sld [smem:[#allocation6]]
    %s798 = smul.f32 %s796, %s797
    %v799 = vstv %s798
    %v800 = vmul.f32 %v799, %v795
    %v801 = vadd.f32 %v800, 0.0
    %v802 = vstv %s797
    %v803 = vmul.f32 %v802, %v197
    %v804 = vmul.f32 %v802, %v198
    %v805 = vadd.f32 %v803, 0.0
    %v806 = vadd.f32 %v804, 0.0
    %s807 = sld [smem:[#allocation3 + $0x1]]
    %s808 = sld [smem:[#allocation6 + $0x1]]
    %s809 = smul.f32 %s807, %s808
    %v810 = vstv %s809
    %v811 = vmul.f32 %v810, %v795
    %v813 = vrot.slane %v811, 4
    %v815 = vadd.f32 %v801, %v813
    %v816 = vstv %s808
    %v817 = vmul.f32 %v816, %v199
    %v818 = vmul.f32 %v816, %v200
    %v819 = vadd.f32 %v805, %v817
    %v820 = vadd.f32 %v806, %v818
    %v822 = vrot.slane %v819, 3
    %v825 = vrot.slane %v820, 6
    %v827 = vrot.slane %v820, 1
    %v830 = vrot.slane %v815, 5
    %v832 = vrot.slane %v820, 3
    %v834 = vrot.slane %v815, 2
    %v836 = vrot.slane %v819, 5
    %v838 = vrot.slane %v815, 7
    %v840 = vrot.slane %v819, 2
    %v842 = vrot.slane %v820, 5
    %vm844 = vcmask 1040384
    %v845 = vsel %vm844, %v815, %v822
    %vm846 = vcmask 1041408
    %v847 = vsel %vm846, %v845, %v825
    %vm848 = vcmask 1042432
    %v849 = vsel %vm848, %v847, %v827
    %v850 = vsel %vm393, %v849, %v830
    %vm851 = vcmask 1044480
    %v852 = vsel %vm851, %v850, %v819
    %vm853 = vcmask 1045504
    %v854 = vsel %vm853, %v852, %v832
    %vm855 = vcmask 1046528
    %v856 = vsel %vm855, %v854, %v825
    %v857 = vsel %vm844, %v834, %v836
    %v858 = vsel %vm846, %v857, %v820
    %v859 = vsel %vm848, %v858, %v832
    %v860 = vsel %vm393, %v859, %v838
    %v861 = vsel %vm851, %v860, %v840
    %v862 = vsel %vm853, %v861, %v842
    %v863 = vsel %vm855, %v862, %v820
    %v864 = vmax.f32 %v856, 0.0
    %865 = vrot.lane.b32.xlu0 %v864, 36
    %v866 = vpop.permute.xlu0 %865
    %v867 = vmul.f32 %v866, %v273
    %868 = vrot.lane.b32.xlu0 %v864, 34
    %v869 = vpop.permute.xlu0 %868
    %v870 = vmul.f32 %v869, %v277
    %871 = vrot.lane.b32.xlu0 %v864, 32
    %v872 = vpop.permute.xlu0 %871
    %v873 = vmul.f32 %v872, %v281
    %874 = vrot.lane.b32.xlu0 %v864, 30
    %v875 = vpop.permute.xlu0 %874
    %v876 = vmul.f32 %v875, %v285
    %877 = vrot.lane.b32.xlu0 %v864, 28
    %v878 = vpop.permute.xlu0 %877
    %v879 = vmul.f32 %v878, %v289
    %880 = vrot.lane.b32.xlu0 %v864, 20
    %v881 = vpop.permute.xlu0 %880
    %v882 = vmul.f32 %v881, %v293
    %883 = vrot.lane.b32.xlu0 %v864, 18
    %v884 = vpop.permute.xlu0 %883
    %v885 = vmul.f32 %v884, %v297
    %886 = vrot.lane.b32.xlu0 %v864, 16
    %v887 = vpop.permute.xlu0 %886
    %v888 = vmul.f32 %v887, %v301
    %889 = vrot.lane.b32.xlu0 %v864, 14
    %v890 = vpop.permute.xlu0 %889
    %v891 = vmul.f32 %v890, %v305
    %892 = vrot.lane.b32.xlu0 %v864, 12
    %v893 = vpop.permute.xlu0 %892
    %v894 = vmul.f32 %v893, %v309
    %895 = vrot.lane.b32.xlu0 %v864, 4
    %v896 = vpop.permute.xlu0 %895
    %v897 = vmul.f32 %v896, %v313
    %898 = vrot.lane.b32.xlu0 %v864, 2
    %v899 = vpop.permute.xlu0 %898
    %v900 = vmul.f32 %v899, %v317
    %v901 = vmul.f32 %v864, %v319
    %902 = vrot.lane.b32.xlu0 %v864, 126
    %v903 = vpop.permute.xlu0 %902
    %v904 = vmul.f32 %v903, %v323
    %905 = vrot.lane.b32.xlu0 %v864, 124
    %v906 = vpop.permute.xlu0 %905
    %v907 = vmul.f32 %v906, %v327
    %908 = vrot.lane.b32.xlu0 %v864, 116
    %v909 = vpop.permute.xlu0 %908
    %v910 = vmul.f32 %v909, %v331
    %911 = vrot.lane.b32.xlu0 %v864, 114
    %v912 = vpop.permute.xlu0 %911
    %v913 = vmul.f32 %v912, %v335
    %914 = vrot.lane.b32.xlu0 %v864, 112
    %v915 = vpop.permute.xlu0 %914
    %v916 = vmul.f32 %v915, %v339
    %917 = vrot.lane.b32.xlu0 %v864, 110
    %v918 = vpop.permute.xlu0 %917
    %v919 = vmul.f32 %v918, %v343
    %920 = vrot.lane.b32.xlu0 %v864, 108
    %v921 = vpop.permute.xlu0 %920
    %v922 = vmul.f32 %v921, %v347
    %923 = vrot.lane.b32.xlu0 %v864, 100
    %v924 = vpop.permute.xlu0 %923
    %v925 = vmul.f32 %v924, %v351
    %926 = vrot.lane.b32.xlu0 %v864, 98
    %v927 = vpop.permute.xlu0 %926
    %v928 = vmul.f32 %v927, %v355
    %929 = vrot.lane.b32.xlu0 %v864, 96
    %v930 = vpop.permute.xlu0 %929
    %v931 = vmul.f32 %v930, %v359
    %932 = vrot.lane.b32.xlu0 %v864, 94
    %v933 = vpop.permute.xlu0 %932
    %v934 = vmul.f32 %v933, %v363
    %935 = vrot.lane.b32.xlu0 %v864, 92
    %v936 = vpop.permute.xlu0 %935
    %v937 = vmul.f32 %v936, %v367
    %v939 = vrot.slane %v870, 4
    %v942 = vrot.slane %v876, 4
    %v945 = vrot.slane %v882, 4
    %v948 = vrot.slane %v888, 4
    %v951 = vrot.slane %v894, 4
    %v954 = vrot.slane %v900, 4
    %v957 = vrot.slane %v904, 4
    %v960 = vrot.slane %v910, 4
    %v962 = vsel %vm393, %v867, %v939
    %v963 = vsel %vm393, %v873, %v942
    %v964 = vsel %vm393, %v879, %v945
    %v965 = vsel %vm393, %v885, %v948
    %v966 = vsel %vm393, %v891, %v951
    %v967 = vsel %vm393, %v897, %v954
    %v968 = vsel %vm393, %v901, %v957
    %v969 = vsel %vm393, %v907, %v960
    %v971 = vrot.slane %v916, 4
    %v974 = vrot.slane %v922, 4
    %v977 = vrot.slane %v928, 4
    %v980 = vrot.slane %v934, 4
    %v982 = vsel %vm393, %v913, %v971
    %v983 = vsel %vm393, %v919, %v974
    %v984 = vsel %vm393, %v925, %v977
    %v985 = vsel %vm393, %v931, %v980
    %986 = vst [vmem:[#allocation2 + $0xd0] sm:$0xff] %v962
    %987 = vst [vmem:[#allocation2 + $0xd8] sm:$0xff] %v963
    %988 = vst [vmem:[#allocation2 + $0xe0] sm:$0xff] %v964
    %989 = vst [vmem:[#allocation2 + $0xe8] sm:$0xff] %v965
    %990 = vst [vmem:[#allocation2 + $0xf0] sm:$0xff] %v966
    %991 = vst [vmem:[#allocation2 + $0xf8] sm:$0xff] %v967
    %992 = vst [vmem:[#allocation2 + $0x100] sm:$0xff] %v968
    %993 = vst [vmem:[#allocation2 + $0x108] sm:$0xff] %v969
    %994 = vst [vmem:[#allocation2 + $0x110] sm:$0xff] %v982
    %995 = vst [vmem:[#allocation2 + $0x118] sm:$0xff] %v983
    %996 = vst [vmem:[#allocation2 + $0x120] sm:$0xff] %v984
    %997 = vst [vmem:[#allocation2 + $0x128] sm:$0xff] %v985
    %998 = vst [vmem:[#allocation2 + $0x130] sm:$0xf] %v937
    %s999 = scalar_lea.vmem [#allocation8], 120
    %v1000 = vld [vmem:[%s999] sm:$0xff]
    %v1001 = vld [vmem:[%s999 + $0x8] sm:$0xff]
    %v1002 = vld [vmem:[%s999 + $0x10] sm:$0xff]
    %v1003 = vld [vmem:[%s999 + $0x18] sm:$0xff]
    %v1004 = vld [vmem:[%s999 + $0x20] sm:$0xff]
    %v1005 = vld [vmem:[%s999 + $0x28] sm:$0xff]
    %v1006 = vld [vmem:[%s999 + $0x30] sm:$0xff]
    %v1007 = vld [vmem:[%s999 + $0x38] sm:$0xff]
    %v1008 = vld [vmem:[%s999 + $0x40] sm:$0xff]
    %v1009 = vld [vmem:[%s999 + $0x48] sm:$0xff]
    %v1010 = vld [vmem:[%s999 + $0x50] sm:$0xf]
    %v1011 = vld [vmem:[%s999 + $0x58] sm:$0xf]
    %v1012 = vld [vmem:[%s999 + $0x60] sm:$0xf]
    %v1013 = vld [vmem:[%s999 + $0x68] sm:$0xf]
    %v1014 = vld [vmem:[%s999 + $0x70] sm:$0xf]
    %v1015 = vld [vmem:[#allocation2] sm:$0xff]
    %v1016 = vld [vmem:[#allocation2 + $0x8] sm:$0xff]
    %v1017 = vld [vmem:[#allocation2 + $0x10] sm:$0xff]
    %v1018 = vld [vmem:[#allocation2 + $0x18] sm:$0xff]
    %v1019 = vld [vmem:[#allocation2 + $0x20] sm:$0xff]
    %v1020 = vld [vmem:[#allocation2 + $0x28] sm:$0xff]
    %v1021 = vld [vmem:[#allocation2 + $0x30] sm:$0xff]
    %v1022 = vld [vmem:[#allocation2 + $0x38] sm:$0xff]
    %v1023 = vld [vmem:[#allocation2 + $0x40] sm:$0xff]
    %v1024 = vld [vmem:[#allocation2 + $0x48] sm:$0xff]
    %v1025 = vld [vmem:[#allocation2 + $0x50] sm:$0xff]
    %v1026 = vld [vmem:[#allocation2 + $0x58] sm:$0xff]
    %v1027 = vld [vmem:[#allocation2 + $0x60] sm:$0xff]
    %v1028 = vld [vmem:[#allocation2 + $0x68] sm:$0xff]
    %v1029 = vld [vmem:[#allocation2 + $0x70] sm:$0xff]
    %v1030 = vld [vmem:[#allocation2 + $0x78] sm:$0xff]
    %v1031 = vld [vmem:[#allocation2 + $0x80] sm:$0xff]
    %v1032 = vld [vmem:[#allocation2 + $0x88] sm:$0xff]
    %v1033 = vld [vmem:[#allocation2 + $0x90] sm:$0xff]
    %v1034 = vld [vmem:[#allocation2 + $0x98] sm:$0xff]
    %v1035 = vld [vmem:[#allocation2 + $0xa0] sm:$0xff]
    %v1036 = vld [vmem:[#allocation2 + $0xa8] sm:$0xff]
    %v1037 = vld [vmem:[#allocation2 + $0xb0] sm:$0xff]
    %v1038 = vld [vmem:[#allocation2 + $0xb8] sm:$0xff]
    %v1039 = vld [vmem:[#allocation2 + $0xc0] sm:$0xff]
    %v1040 = vld [vmem:[#allocation2 + $0xc8] sm:$0xff]
    %v1041 = vld [vmem:[#allocation2 + $0xd0] sm:$0xff]
    %v1042 = vld [vmem:[#allocation2 + $0xd8] sm:$0xff]
    %v1043 = vld [vmem:[#allocation2 + $0xe0] sm:$0xff]
    %v1044 = vld [vmem:[#allocation2 + $0xe8] sm:$0xff]
    %v1045 = vld [vmem:[#allocation2 + $0xf0] sm:$0xff]
    %v1046 = vld [vmem:[#allocation2 + $0xf8] sm:$0xff]
    %v1047 = vld [vmem:[#allocation2 + $0x100] sm:$0xff]
    %v1048 = vld [vmem:[#allocation2 + $0x108] sm:$0xff]
    %v1049 = vld [vmem:[#allocation2 + $0x110] sm:$0xff]
    %v1050 = vld [vmem:[#allocation2 + $0x118] sm:$0xff]
    %v1051 = vld [vmem:[#allocation2 + $0x120] sm:$0xff]
    %v1052 = vld [vmem:[#allocation2 + $0x128] sm:$0xff]
    %v1053 = vld [vmem:[#allocation2 + $0x130] sm:$0xff]
    %v1054 = vld [vmem:[#allocation2 + $0x138] sm:$0xff]
    %v1055 = vld [vmem:[#allocation2 + $0x140] sm:$0xff]
    %v1056 = vld [vmem:[#allocation2 + $0x148] sm:$0xff]
    %v1057 = vld [vmem:[#allocation2 + $0x150] sm:$0xff]
    %v1058 = vld [vmem:[#allocation2 + $0x158] sm:$0xff]
    %v1059 = vld [vmem:[#allocation2 + $0x160] sm:$0xff]
    %v1060 = vld [vmem:[#allocation2 + $0x168] sm:$0xff]
    %v1061 = vld [vmem:[#allocation2 + $0x170] sm:$0xff]
    %v1062 = vld [vmem:[#allocation2 + $0x178] sm:$0xff]
    %v1063 = vld [vmem:[#allocation2 + $0x180] sm:$0xff]
    %v1064 = vld [vmem:[#allocation2 + $0x188] sm:$0xff]
    %v1065 = vld [vmem:[#allocation2 + $0x190] sm:$0xff]
    %v1066 = vld [vmem:[#allocation2 + $0x198] sm:$0xff]
    %v1067 = vld [vmem:[#allocation2 + $0x1a0] sm:$0xff]
    %v1068 = vld [vmem:[#allocation2 + $0x1a8] sm:$0xff]
    %v1069 = vld [vmem:[#allocation2 + $0x1b0] sm:$0xff]
    %v1070 = vld [vmem:[#allocation2 + $0x1b8] sm:$0xff]
    %v1071 = vld [vmem:[#allocation2 + $0x1c0] sm:$0xff]
    %v1072 = vld [vmem:[#allocation2 + $0x1c8] sm:$0xff]
    %v1073 = vld [vmem:[#allocation2 + $0x1d0] sm:$0xff]
    %v1074 = vld [vmem:[#allocation2 + $0x1d8] sm:$0xff]
    %v1075 = vld [vmem:[#allocation2 + $0x1e0] sm:$0xff]
    %v1076 = vld [vmem:[#allocation2 + $0x1e8] sm:$0xff]
    %v1077 = vld [vmem:[#allocation2 + $0x1f0] sm:$0xff]
    %v1078 = vld [vmem:[#allocation2 + $0x1f8] sm:$0xff]
    %v1079 = vld [vmem:[#allocation2 + $0x200] sm:$0xff]
    %v1081 = vsel %vm646, %v1004, 0
    %v1084 = vsel %vm646, %v1009, 0
    %v1087 = vsel %vm646, %v1014, 0
    %1089 = vmatpush.msra.mxu0 %v1030
    %1090 = vmatpush.msra.mxu0 %v1029
    %1091 = vmatpush.msra.mxu0 %v1028
    %1092 = vmatpush.msra.mxu0 %v1027
    %1093 = vmatpush.msra.mxu0 %v1026
    %1094 = vmatpush.msra.mxu0 %v1025
    %1095 = vmatpush.msra.mxu0 %v1024
    %1096 = vmatpush.msra.mxu0 %v1023
    %1097 = vmatpush.msra.mxu0 %v1022
    %1098 = vmatpush.msra.mxu0 %v1021
    %1099 = vmatpush.msra.mxu0 %v1020
    %1100 = vmatpush.msra.mxu0 %v1019
    %1101 = vmatpush.msra.mxu0 %v1018
    %1102 = vmatpush.msra.mxu0 %v1017
    %1103 = vmatpush.msra.mxu0 %v1016
    %1104 = vmatpush.msra.mxu0 %v1015
    %1105 = vmatmul.f32.gmra.mxu0 %v1000
    %v1106 = vpop.f32.mrf.mxu0
    %v1107 = vadd.f32 0.0, %v1106
    %1108 = vmatmul.f32.gmra.mxu0 %v1005
    %v1109 = vpop.f32.mrf.mxu0
    %v1110 = vadd.f32 0.0, %v1109
    %1111 = vmatmul.f32.gmra.mxu0 %v1010
    %v1112 = vpop.f32.mrf.mxu0
    %1113 = vdwg.mxu0
    %1114 = vmatpush.msra.mxu0 %v1046
    %1115 = vmatpush.msra.mxu0 %v1045
    %1116 = vmatpush.msra.mxu0 %v1044
    %1117 = vmatpush.msra.mxu0 %v1043
    %1118 = vmatpush.msra.mxu0 %v1042
    %1119 = vmatpush.msra.mxu0 %v1041
    %1120 = vmatpush.msra.mxu0 %v1040
    %1121 = vmatpush.msra.mxu0 %v1039
    %1122 = vmatpush.msra.mxu0 %v1038
    %1123 = vmatpush.msra.mxu0 %v1037
    %1124 = vmatpush.msra.mxu0 %v1036
    %1125 = vmatpush.msra.mxu0 %v1035
    %1126 = vmatpush.msra.mxu0 %v1034
    %1127 = vmatpush.msra.mxu0 %v1033
    %1128 = vmatpush.msra.mxu0 %v1032
    %1129 = vmatpush.msra.mxu0 %v1031
    %1130 = vmatmul.f32.gmra.mxu0 %v1001
    %v1131 = vpop.f32.mrf.mxu0
    %v1132 = vadd.f32 %v1107, %v1131
    %1133 = vmatmul.f32.gmra.mxu0 %v1006
    %v1134 = vpop.f32.mrf.mxu0
    %v1135 = vadd.f32 %v1110, %v1134
    %1136 = vmatmul.f32.gmra.mxu0 %v1011
    %v1137 = vpop.f32.mrf.mxu0
    %1138 = vdwg.mxu0
    %1139 = vmatpush.msra.mxu0 %v1062
    %1140 = vmatpush.msra.mxu0 %v1061
    %1141 = vmatpush.msra.mxu0 %v1060
    %1142 = vmatpush.msra.mxu0 %v1059
    %1143 = vmatpush.msra.mxu0 %v1058
    %1144 = vmatpush.msra.mxu0 %v1057
    %1145 = vmatpush.msra.mxu0 %v1056
    %1146 = vmatpush.msra.mxu0 %v1055
    %1147 = vmatpush.msra.mxu0 %v1054
    %1148 = vmatpush.msra.mxu0 %v1053
    %1149 = vmatpush.msra.mxu0 %v1052
    %1150 = vmatpush.msra.mxu0 %v1051
    %1151 = vmatpush.msra.mxu0 %v1050
    %1152 = vmatpush.msra.mxu0 %v1049
    %1153 = vmatpush.msra.mxu0 %v1048
    %1154 = vmatpush.msra.mxu0 %v1047
    %1155 = vmatmul.f32.gmra.mxu0 %v1002
    %v1156 = vpop.f32.mrf.mxu0
    %v1157 = vadd.f32 %v1132, %v1156
    %1158 = vmatmul.f32.gmra.mxu0 %v1007
    %v1159 = vpop.f32.mrf.mxu0
    %v1160 = vadd.f32 %v1135, %v1159
    %1161 = vmatmul.f32.gmra.mxu0 %v1012
    %v1162 = vpop.f32.mrf.mxu0
    %1163 = vdwg.mxu0
    %1164 = vmatpush.msra.mxu0 %v1078
    %1165 = vmatpush.msra.mxu0 %v1077
    %1166 = vmatpush.msra.mxu0 %v1076
    %1167 = vmatpush.msra.mxu0 %v1075
    %1168 = vmatpush.msra.mxu0 %v1074
    %1169 = vmatpush.msra.mxu0 %v1073
    %1170 = vmatpush.msra.mxu0 %v1072
    %1171 = vmatpush.msra.mxu0 %v1071
    %1172 = vmatpush.msra.mxu0 %v1070
    %1173 = vmatpush.msra.mxu0 %v1069
    %1174 = vmatpush.msra.mxu0 %v1068
    %1175 = vmatpush.msra.mxu0 %v1067
    %1176 = vmatpush.msra.mxu0 %v1066
    %1177 = vmatpush.msra.mxu0 %v1065
    %1178 = vmatpush.msra.mxu0 %v1064
    %1179 = vmatpush.msra.mxu0 %v1063
    %1180 = vmatmul.f32.gmra.mxu0 %v1003
    %v1181 = vpop.f32.mrf.mxu0
    %v1182 = vadd.f32 %v1157, %v1181
    %1183 = vmatmul.f32.gmra.mxu0 %v1008
    %v1184 = vpop.f32.mrf.mxu0
    %v1185 = vadd.f32 %v1160, %v1184
    %1186 = vmatmul.f32.gmra.mxu0 %v1013
    %v1187 = vpop.f32.mrf.mxu0
    %1188 = vdwg.mxu0
    %1189 = vmatpush.msra.mxu0 0.0
    %1190 = vmatpush.msra.mxu0 0.0
    %1191 = vmatpush.msra.mxu0 0.0
    %1192 = vmatpush.msra.mxu0 0.0
    %1193 = vmatpush.msra.mxu0 0.0
    %1194 = vmatpush.msra.mxu0 0.0
    %1195 = vmatpush.msra.mxu0 0.0
    %1196 = vmatpush.msra.mxu0 0.0
    %1197 = vmatpush.msra.mxu0 0.0
    %1198 = vmatpush.msra.mxu0 0.0
    %1199 = vmatpush.msra.mxu0 0.0
    %1200 = vmatpush.msra.mxu0 0.0
    %1201 = vmatpush.msra.mxu0 0.0
    %1202 = vmatpush.msra.mxu0 0.0
    %1203 = vmatpush.msra.mxu0 0.0
    %1204 = vmatpush.msra.mxu0 %v1079
    %1205 = vmatmul.f32.gmra.mxu0 %v1081
    %v1206 = vpop.f32.mrf.mxu0
    %v1207 = vadd.f32 %v1182, %v1206
    %1208 = vmatmul.f32.gmra.mxu0 %v1084
    %v1209 = vpop.f32.mrf.mxu0
    %v1210 = vadd.f32 %v1185, %v1209
    %1211 = vmatmul.f32.gmra.mxu0 %v1087
    %v1212 = vpop.f32.mrf.mxu0
    %1213 = vdwg.mxu0
    %1214 = vadd.xlane.f32.xlu0 %v1207
    %v1215 = vpop.xlane.xlu0 %1214
    %1216 = vadd.xlane.f32.xlu0 %v1210
    %v1217 = vpop.xlane.xlu0 %1216
    %v1218 = vmul.f32 %v1215, 0.0078125
    %v1219 = vmul.f32 %v1217, 0.0078125
    %v1220 = vsub.f32 %v1207, %v1218
    %v1221 = vsub.f32 %v1210, %v1219
    %v1222 = vmul.f32 %v1220, %v1220
    %v1223 = vmul.f32 %v1221, %v1221
    %1224 = vadd.xlane.f32.xlu0 %v1222
    %v1225 = vpop.xlane.xlu0 %1224
    %1226 = vadd.xlane.f32.xlu0 %v1223
    %v1227 = vpop.xlane.xlu0 %1226
    %v1228 = vmul.f32 %v1225, 0.0078125
    %v1229 = vmul.f32 %v1227, 0.0078125
    %v1230 = vadd.f32 %v1228, 1e-05
    %v1231 = vadd.f32 %v1229, 1e-05
    %v1232 = vrsqrt.pop %v1230
    %v1233 = vmul.f32 %v1232, %v1230
    %v1234 = vmul.f32 %v1233, %v1232
    %v1235 = vmul.f32 0.5, %v1234
    %v1236 = vsub.f32 1.5, %v1235
    %v1237 = vmul.f32 %v1232, %v1236
    %vm1238 = vweird.f32 %v1230
    %vm1239 = vweird.f32 %v1232
    %vm1240 = vmor %vm1238, %vm1239
    %v1241 = vsel %vm1240, %v1232, %v1237
    %v1242 = vrsqrt.pop %v1231
    %v1243 = vmul.f32 %v1242, %v1231
    %v1244 = vmul.f32 %v1243, %v1242
    %v1245 = vmul.f32 0.5, %v1244
    %v1246 = vsub.f32 1.5, %v1245
    %v1247 = vmul.f32 %v1242, %v1246
    %vm1248 = vweird.f32 %v1231
    %vm1249 = vweird.f32 %v1242
    %vm1250 = vmor %vm1248, %vm1249
    %v1251 = vsel %vm1250, %v1242, %v1247
    %v1252 = vmul.f32 %v1220, %v1241
    %v1253 = vmul.f32 %v1221, %v1251
    %s1254 = sld [smem:[#allocation3 + $0x2]]
    %s1255 = sld [smem:[#allocation6 + $0x2]]
    %s1256 = smul.f32 %s1254, %s1255
    %v1257 = vstv %s1256
    %v1258 = vmul.f32 %v1257, %v1252
    %v1259 = vadd.f32 %v1258, 0.0
    %v1260 = vstv %s1255
    %v1261 = vmul.f32 %v1260, %v197
    %v1262 = vmul.f32 %v1260, %v198
    %v1263 = vadd.f32 %v1261, 0.0
    %v1264 = vadd.f32 %v1262, 0.0
    %s1265 = sld [smem:[#allocation3 + $0x3]]
    %s1266 = sld [smem:[#allocation6 + $0x3]]
    %s1267 = smul.f32 %s1265, %s1266
    %v1268 = vstv %s1267
    %v1269 = vmul.f32 %v1268, %v1252
    %v1271 = vrot.slane %v1269, 4
    %v1273 = vadd.f32 %v1259, %v1271
    %v1274 = vstv %s1266
    %v1275 = vmul.f32 %v1274, %v199
    %v1276 = vmul.f32 %v1274, %v200
    %v1277 = vadd.f32 %v1263, %v1275
    %v1278 = vadd.f32 %v1264, %v1276
    %s1279 = sld [smem:[#allocation3 + $0x4]]
    %s1280 = sld [smem:[#allocation6 + $0x4]]
    %s1281 = smul.f32 %s1279, %s1280
    %v1282 = vstv %s1281
    %v1283 = vmul.f32 %v1282, %v1253
    %v1284 = vadd.f32 %v1273, %v1283
    %v1285 = vstv %s1280
    %v1286 = vmul.f32 %v1285, %v856
    %v1287 = vmul.f32 %v1285, %v863
    %v1288 = vadd.f32 %v1277, %v1286
    %v1289 = vadd.f32 %v1278, %v1287
    %v1291 = vrot.slane %v1288, 3
    %v1294 = vrot.slane %v1289, 6
    %v1296 = vrot.slane %v1289, 1
    %v1299 = vrot.slane %v1284, 5
    %v1301 = vrot.slane %v1289, 3
    %v1303 = vrot.slane %v1284, 2
    %v1305 = vrot.slane %v1288, 5
    %v1307 = vrot.slane %v1284, 7
    %v1309 = vrot.slane %v1288, 2
    %v1311 = vrot.slane %v1289, 5
    %v1313 = vsel %vm844, %v1284, %v1291
    %v1314 = vsel %vm846, %v1313, %v1294
    %v1315 = vsel %vm848, %v1314, %v1296
    %v1316 = vsel %vm393, %v1315, %v1299
    %v1317 = vsel %vm851, %v1316, %v1288
    %v1318 = vsel %vm853, %v1317, %v1301
    %v1319 = vsel %vm855, %v1318, %v1294
    %v1320 = vsel %vm844, %v1303, %v1305
    %v1321 = vsel %vm846, %v1320, %v1289
    %v1322 = vsel %vm848, %v1321, %v1301
    %v1323 = vsel %vm393, %v1322, %v1307
    %v1324 = vsel %vm851, %v1323, %v1309
    %v1325 = vsel %vm853, %v1324, %v1311
    %v1326 = vsel %vm855, %v1325, %v1289
    %v1327 = vmax.f32 %v1319, 0.0
    %1328 = vrot.lane.b32.xlu0 %v1327, 36
    %v1329 = vpop.permute.xlu0 %1328
    %v1330 = vmul.f32 %v1329, %v273
    %1331 = vrot.lane.b32.xlu0 %v1327, 34
    %v1332 = vpop.permute.xlu0 %1331
    %v1333 = vmul.f32 %v1332, %v277
    %1334 = vrot.lane.b32.xlu0 %v1327, 32
    %v1335 = vpop.permute.xlu0 %1334
    %v1336 = vmul.f32 %v1335, %v281
    %1337 = vrot.lane.b32.xlu0 %v1327, 30
    %v1338 = vpop.permute.xlu0 %1337
    %v1339 = vmul.f32 %v1338, %v285
    %1340 = vrot.lane.b32.xlu0 %v1327, 28
    %v1341 = vpop.permute.xlu0 %1340
    %v1342 = vmul.f32 %v1341, %v289
    %1343 = vrot.lane.b32.xlu0 %v1327, 20
    %v1344 = vpop.permute.xlu0 %1343
    %v1345 = vmul.f32 %v1344, %v293
    %1346 = vrot.lane.b32.xlu0 %v1327, 18
    %v1347 = vpop.permute.xlu0 %1346
    %v1348 = vmul.f32 %v1347, %v297
    %1349 = vrot.lane.b32.xlu0 %v1327, 16
    %v1350 = vpop.permute.xlu0 %1349
    %v1351 = vmul.f32 %v1350, %v301
    %1352 = vrot.lane.b32.xlu0 %v1327, 14
    %v1353 = vpop.permute.xlu0 %1352
    %v1354 = vmul.f32 %v1353, %v305
    %1355 = vrot.lane.b32.xlu0 %v1327, 12
    %v1356 = vpop.permute.xlu0 %1355
    %v1357 = vmul.f32 %v1356, %v309
    %1358 = vrot.lane.b32.xlu0 %v1327, 4
    %v1359 = vpop.permute.xlu0 %1358
    %v1360 = vmul.f32 %v1359, %v313
    %1361 = vrot.lane.b32.xlu0 %v1327, 2
    %v1362 = vpop.permute.xlu0 %1361
    %v1363 = vmul.f32 %v1362, %v317
    %v1364 = vmul.f32 %v1327, %v319
    %1365 = vrot.lane.b32.xlu0 %v1327, 126
    %v1366 = vpop.permute.xlu0 %1365
    %v1367 = vmul.f32 %v1366, %v323
    %1368 = vrot.lane.b32.xlu0 %v1327, 124
    %v1369 = vpop.permute.xlu0 %1368
    %v1370 = vmul.f32 %v1369, %v327
    %1371 = vrot.lane.b32.xlu0 %v1327, 116
    %v1372 = vpop.permute.xlu0 %1371
    %v1373 = vmul.f32 %v1372, %v331
    %1374 = vrot.lane.b32.xlu0 %v1327, 114
    %v1375 = vpop.permute.xlu0 %1374
    %v1376 = vmul.f32 %v1375, %v335
    %1377 = vrot.lane.b32.xlu0 %v1327, 112
    %v1378 = vpop.permute.xlu0 %1377
    %v1379 = vmul.f32 %v1378, %v339
    %1380 = vrot.lane.b32.xlu0 %v1327, 110
    %v1381 = vpop.permute.xlu0 %1380
    %v1382 = vmul.f32 %v1381, %v343
    %1383 = vrot.lane.b32.xlu0 %v1327, 108
    %v1384 = vpop.permute.xlu0 %1383
    %v1385 = vmul.f32 %v1384, %v347
    %1386 = vrot.lane.b32.xlu0 %v1327, 100
    %v1387 = vpop.permute.xlu0 %1386
    %v1388 = vmul.f32 %v1387, %v351
    %1389 = vrot.lane.b32.xlu0 %v1327, 98
    %v1390 = vpop.permute.xlu0 %1389
    %v1391 = vmul.f32 %v1390, %v355
    %1392 = vrot.lane.b32.xlu0 %v1327, 96
    %v1393 = vpop.permute.xlu0 %1392
    %v1394 = vmul.f32 %v1393, %v359
    %1395 = vrot.lane.b32.xlu0 %v1327, 94
    %v1396 = vpop.permute.xlu0 %1395
    %v1397 = vmul.f32 %v1396, %v363
    %1398 = vrot.lane.b32.xlu0 %v1327, 92
    %v1399 = vpop.permute.xlu0 %1398
    %v1400 = vmul.f32 %v1399, %v367
    %v1402 = vrot.slane %v1333, 4
    %v1405 = vrot.slane %v1339, 4
    %v1408 = vrot.slane %v1345, 4
    %v1411 = vrot.slane %v1351, 4
    %v1414 = vrot.slane %v1357, 4
    %v1417 = vrot.slane %v1363, 4
    %v1420 = vrot.slane %v1367, 4
    %v1423 = vrot.slane %v1373, 4
    %v1425 = vsel %vm393, %v1330, %v1402
    %v1426 = vsel %vm393, %v1336, %v1405
    %v1427 = vsel %vm393, %v1342, %v1408
    %v1428 = vsel %vm393, %v1348, %v1411
    %v1429 = vsel %vm393, %v1354, %v1414
    %v1430 = vsel %vm393, %v1360, %v1417
    %v1431 = vsel %vm393, %v1364, %v1420
    %v1432 = vsel %vm393, %v1370, %v1423
    %v1434 = vrot.slane %v1379, 4
    %v1437 = vrot.slane %v1385, 4
    %v1440 = vrot.slane %v1391, 4
    %v1443 = vrot.slane %v1397, 4
    %v1445 = vsel %vm393, %v1376, %v1434
    %v1446 = vsel %vm393, %v1382, %v1437
    %v1447 = vsel %vm393, %v1388, %v1440
    %v1448 = vsel %vm393, %v1394, %v1443
    %1449 = vst [vmem:[#allocation2 + $0x138] sm:$0xff] %v1425
    %1450 = vst [vmem:[#allocation2 + $0x140] sm:$0xff] %v1426
    %1451 = vst [vmem:[#allocation2 + $0x148] sm:$0xff] %v1427
    %1452 = vst [vmem:[#allocation2 + $0x150] sm:$0xff] %v1428
    %1453 = vst [vmem:[#allocation2 + $0x158] sm:$0xff] %v1429
    %1454 = vst [vmem:[#allocation2 + $0x160] sm:$0xff] %v1430
    %1455 = vst [vmem:[#allocation2 + $0x168] sm:$0xff] %v1431
    %1456 = vst [vmem:[#allocation2 + $0x170] sm:$0xff] %v1432
    %1457 = vst [vmem:[#allocation2 + $0x178] sm:$0xff] %v1445
    %1458 = vst [vmem:[#allocation2 + $0x180] sm:$0xff] %v1446
    %1459 = vst [vmem:[#allocation2 + $0x188] sm:$0xff] %v1447
    %1460 = vst [vmem:[#allocation2 + $0x190] sm:$0xff] %v1448
    %1461 = vst [vmem:[#allocation2 + $0x198] sm:$0xf] %v1400
    %s1462 = scalar_lea.vmem [#allocation8], 240
    %v1463 = vld [vmem:[%s1462] sm:$0xff]
    %v1464 = vld [vmem:[%s1462 + $0x8] sm:$0xff]
    %v1465 = vld [vmem:[%s1462 + $0x10] sm:$0xff]
    %v1466 = vld [vmem:[%s1462 + $0x18] sm:$0xff]
    %v1467 = vld [vmem:[%s1462 + $0x20] sm:$0xff]
    %v1468 = vld [vmem:[%s1462 + $0x28] sm:$0xff]
    %v1469 = vld [vmem:[%s1462 + $0x30] sm:$0xff]
    %v1470 = vld [vmem:[%s1462 + $0x38] sm:$0xff]
    %v1471 = vld [vmem:[%s1462 + $0x40] sm:$0xff]
    %v1472 = vld [vmem:[%s1462 + $0x48] sm:$0xff]
    %v1473 = vld [vmem:[%s1462 + $0x50] sm:$0xf]
    %v1474 = vld [vmem:[%s1462 + $0x58] sm:$0xf]
    %v1475 = vld [vmem:[%s1462 + $0x60] sm:$0xf]
    %v1476 = vld [vmem:[%s1462 + $0x68] sm:$0xf]
    %v1477 = vld [vmem:[%s1462 + $0x70] sm:$0xf]
    %v1478 = vld [vmem:[#allocation2] sm:$0xff]
    %v1479 = vld [vmem:[#allocation2 + $0x8] sm:$0xff]
    %v1480 = vld [vmem:[#allocation2 + $0x10] sm:$0xff]
    %v1481 = vld [vmem:[#allocation2 + $0x18] sm:$0xff]
    %v1482 = vld [vmem:[#allocation2 + $0x20] sm:$0xff]
    %v1483 = vld [vmem:[#allocation2 + $0x28] sm:$0xff]
    %v1484 = vld [vmem:[#allocation2 + $0x30] sm:$0xff]
    %v1485 = vld [vmem:[#allocation2 + $0x38] sm:$0xff]
    %v1486 = vld [vmem:[#allocation2 + $0x40] sm:$0xff]
    %v1487 = vld [vmem:[#allocation2 + $0x48] sm:$0xff]
    %v1488 = vld [vmem:[#allocation2 + $0x50] sm:$0xff]
    %v1489 = vld [vmem:[#allocation2 + $0x58] sm:$0xff]
    %v1490 = vld [vmem:[#allocation2 + $0x60] sm:$0xff]
    %v1491 = vld [vmem:[#allocation2 + $0x68] sm:$0xff]
    %v1492 = vld [vmem:[#allocation2 + $0x70] sm:$0xff]
    %v1493 = vld [vmem:[#allocation2 + $0x78] sm:$0xff]
    %v1494 = vld [vmem:[#allocation2 + $0x80] sm:$0xff]
    %v1495 = vld [vmem:[#allocation2 + $0x88] sm:$0xff]
    %v1496 = vld [vmem:[#allocation2 + $0x90] sm:$0xff]
    %v1497 = vld [vmem:[#allocation2 + $0x98] sm:$0xff]
    %v1498 = vld [vmem:[#allocation2 + $0xa0] sm:$0xff]
    %v1499 = vld [vmem:[#allocation2 + $0xa8] sm:$0xff]
    %v1500 = vld [vmem:[#allocation2 + $0xb0] sm:$0xff]
    %v1501 = vld [vmem:[#allocation2 + $0xb8] sm:$0xff]
    %v1502 = vld [vmem:[#allocation2 + $0xc0] sm:$0xff]
    %v1503 = vld [vmem:[#allocation2 + $0xc8] sm:$0xff]
    %v1504 = vld [vmem:[#allocation2 + $0xd0] sm:$0xff]
    %v1505 = vld [vmem:[#allocation2 + $0xd8] sm:$0xff]
    %v1506 = vld [vmem:[#allocation2 + $0xe0] sm:$0xff]
    %v1507 = vld [vmem:[#allocation2 + $0xe8] sm:$0xff]
    %v1508 = vld [vmem:[#allocation2 + $0xf0] sm:$0xff]
    %v1509 = vld [vmem:[#allocation2 + $0xf8] sm:$0xff]
    %v1510 = vld [vmem:[#allocation2 + $0x100] sm:$0xff]
    %v1511 = vld [vmem:[#allocation2 + $0x108] sm:$0xff]
    %v1512 = vld [vmem:[#allocation2 + $0x110] sm:$0xff]
    %v1513 = vld [vmem:[#allocation2 + $0x118] sm:$0xff]
    %v1514 = vld [vmem:[#allocation2 + $0x120] sm:$0xff]
    %v1515 = vld [vmem:[#allocation2 + $0x128] sm:$0xff]
    %v1516 = vld [vmem:[#allocation2 + $0x130] sm:$0xff]
    %v1517 = vld [vmem:[#allocation2 + $0x138] sm:$0xff]
    %v1518 = vld [vmem:[#allocation2 + $0x140] sm:$0xff]
    %v1519 = vld [vmem:[#allocation2 + $0x148] sm:$0xff]
    %v1520 = vld [vmem:[#allocation2 + $0x150] sm:$0xff]
    %v1521 = vld [vmem:[#allocation2 + $0x158] sm:$0xff]
    %v1522 = vld [vmem:[#allocation2 + $0x160] sm:$0xff]
    %v1523 = vld [vmem:[#allocation2 + $0x168] sm:$0xff]
    %v1524 = vld [vmem:[#allocation2 + $0x170] sm:$0xff]
    %v1525 = vld [vmem:[#allocation2 + $0x178] sm:$0xff]
    %v1526 = vld [vmem:[#allocation2 + $0x180] sm:$0xff]
    %v1527 = vld [vmem:[#allocation2 + $0x188] sm:$0xff]
    %v1528 = vld [vmem:[#allocation2 + $0x190] sm:$0xff]
    %v1529 = vld [vmem:[#allocation2 + $0x198] sm:$0xff]
    %v1530 = vld [vmem:[#allocation2 + $0x1a0] sm:$0xff]
    %v1531 = vld [vmem:[#allocation2 + $0x1a8] sm:$0xff]
    %v1532 = vld [vmem:[#allocation2 + $0x1b0] sm:$0xff]
    %v1533 = vld [vmem:[#allocation2 + $0x1b8] sm:$0xff]
    %v1534 = vld [vmem:[#allocation2 + $0x1c0] sm:$0xff]
    %v1535 = vld [vmem:[#allocation2 + $0x1c8] sm:$0xff]
    %v1536 = vld [vmem:[#allocation2 + $0x1d0] sm:$0xff]
    %v1537 = vld [vmem:[#allocation2 + $0x1d8] sm:$0xff]
    %v1538 = vld [vmem:[#allocation2 + $0x1e0] sm:$0xff]
    %v1539 = vld [vmem:[#allocation2 + $0x1e8] sm:$0xff]
    %v1540 = vld [vmem:[#allocation2 + $0x1f0] sm:$0xff]
    %v1541 = vld [vmem:[#allocation2 + $0x1f8] sm:$0xff]
    %v1542 = vld [vmem:[#allocation2 + $0x200] sm:$0xff]
    %v1544 = vsel %vm646, %v1467, 0
    %v1547 = vsel %vm646, %v1472, 0
    %v1550 = vsel %vm646, %v1477, 0
    %1552 = vmatpush.msra.mxu0 %v1493
    %1553 = vmatpush.msra.mxu0 %v1492
    %1554 = vmatpush.msra.mxu0 %v1491
    %1555 = vmatpush.msra.mxu0 %v1490
    %1556 = vmatpush.msra.mxu0 %v1489
    %1557 = vmatpush.msra.mxu0 %v1488
    %1558 = vmatpush.msra.mxu0 %v1487
    %1559 = vmatpush.msra.mxu0 %v1486
    %1560 = vmatpush.msra.mxu0 %v1485
    %1561 = vmatpush.msra.mxu0 %v1484
    %1562 = vmatpush.msra.mxu0 %v1483
    %1563 = vmatpush.msra.mxu0 %v1482
    %1564 = vmatpush.msra.mxu0 %v1481
    %1565 = vmatpush.msra.mxu0 %v1480
    %1566 = vmatpush.msra.mxu0 %v1479
    %1567 = vmatpush.msra.mxu0 %v1478
    %1568 = vmatmul.f32.gmra.mxu0 %v1463
    %v1569 = vpop.f32.mrf.mxu0
    %v1570 = vadd.f32 0.0, %v1569
    %1571 = vmatmul.f32.gmra.mxu0 %v1468
    %v1572 = vpop.f32.mrf.mxu0
    %v1573 = vadd.f32 0.0, %v1572
    %1574 = vmatmul.f32.gmra.mxu0 %v1473
    %v1575 = vpop.f32.mrf.mxu0
    %1576 = vdwg.mxu0
    %1577 = vmatpush.msra.mxu0 %v1509
    %1578 = vmatpush.msra.mxu0 %v1508
    %1579 = vmatpush.msra.mxu0 %v1507
    %1580 = vmatpush.msra.mxu0 %v1506
    %1581 = vmatpush.msra.mxu0 %v1505
    %1582 = vmatpush.msra.mxu0 %v1504
    %1583 = vmatpush.msra.mxu0 %v1503
    %1584 = vmatpush.msra.mxu0 %v1502
    %1585 = vmatpush.msra.mxu0 %v1501
    %1586 = vmatpush.msra.mxu0 %v1500
    %1587 = vmatpush.msra.mxu0 %v1499
    %1588 = vmatpush.msra.mxu0 %v1498
    %1589 = vmatpush.msra.mxu0 %v1497
    %1590 = vmatpush.msra.mxu0 %v1496
    %1591 = vmatpush.msra.mxu0 %v1495
    %1592 = vmatpush.msra.mxu0 %v1494
    %1593 = vmatmul.f32.gmra.mxu0 %v1464
    %v1594 = vpop.f32.mrf.mxu0
    %v1595 = vadd.f32 %v1570, %v1594
    %1596 = vmatmul.f32.gmra.mxu0 %v1469
    %v1597 = vpop.f32.mrf.mxu0
    %v1598 = vadd.f32 %v1573, %v1597
    %1599 = vmatmul.f32.gmra.mxu0 %v1474
    %v1600 = vpop.f32.mrf.mxu0
    %1601 = vdwg.mxu0
    %1602 = vmatpush.msra.mxu0 %v1525
    %1603 = vmatpush.msra.mxu0 %v1524
    %1604 = vmatpush.msra.mxu0 %v1523
    %1605 = vmatpush.msra.mxu0 %v1522
    %1606 = vmatpush.msra.mxu0 %v1521
    %1607 = vmatpush.msra.mxu0 %v1520
    %1608 = vmatpush.msra.mxu0 %v1519
    %1609 = vmatpush.msra.mxu0 %v1518
    %1610 = vmatpush.msra.mxu0 %v1517
    %1611 = vmatpush.msra.mxu0 %v1516
    %1612 = vmatpush.msra.mxu0 %v1515
    %1613 = vmatpush.msra.mxu0 %v1514
    %1614 = vmatpush.msra.mxu0 %v1513
    %1615 = vmatpush.msra.mxu0 %v1512
    %1616 = vmatpush.msra.mxu0 %v1511
    %1617 = vmatpush.msra.mxu0 %v1510
    %1618 = vmatmul.f32.gmra.mxu0 %v1465
    %v1619 = vpop.f32.mrf.mxu0
    %v1620 = vadd.f32 %v1595, %v1619
    %1621 = vmatmul.f32.gmra.mxu0 %v1470
    %v1622 = vpop.f32.mrf.mxu0
    %v1623 = vadd.f32 %v1598, %v1622
    %1624 = vmatmul.f32.gmra.mxu0 %v1475
    %v1625 = vpop.f32.mrf.mxu0
    %1626 = vdwg.mxu0
    %1627 = vmatpush.msra.mxu0 %v1541
    %1628 = vmatpush.msra.mxu0 %v1540
    %1629 = vmatpush.msra.mxu0 %v1539
    %1630 = vmatpush.msra.mxu0 %v1538
    %1631 = vmatpush.msra.mxu0 %v1537
    %1632 = vmatpush.msra.mxu0 %v1536
    %1633 = vmatpush.msra.mxu0 %v1535
    %1634 = vmatpush.msra.mxu0 %v1534
    %1635 = vmatpush.msra.mxu0 %v1533
    %1636 = vmatpush.msra.mxu0 %v1532
    %1637 = vmatpush.msra.mxu0 %v1531
    %1638 = vmatpush.msra.mxu0 %v1530
    %1639 = vmatpush.msra.mxu0 %v1529
    %1640 = vmatpush.msra.mxu0 %v1528
    %1641 = vmatpush.msra.mxu0 %v1527
    %1642 = vmatpush.msra.mxu0 %v1526
    %1643 = vmatmul.f32.gmra.mxu0 %v1466
    %v1644 = vpop.f32.mrf.mxu0
    %v1645 = vadd.f32 %v1620, %v1644
    %1646 = vmatmul.f32.gmra.mxu0 %v1471
    %v1647 = vpop.f32.mrf.mxu0
    %v1648 = vadd.f32 %v1623, %v1647
    %1649 = vmatmul.f32.gmra.mxu0 %v1476
    %v1650 = vpop.f32.mrf.mxu0
    %1651 = vdwg.mxu0
    %1652 = vmatpush.msra.mxu0 0.0
    %1653 = vmatpush.msra.mxu0 0.0
    %1654 = vmatpush.msra.mxu0 0.0
    %1655 = vmatpush.msra.mxu0 0.0
    %1656 = vmatpush.msra.mxu0 0.0
    %1657 = vmatpush.msra.mxu0 0.0
    %1658 = vmatpush.msra.mxu0 0.0
    %1659 = vmatpush.msra.mxu0 0.0
    %1660 = vmatpush.msra.mxu0 0.0
    %1661 = vmatpush.msra.mxu0 0.0
    %1662 = vmatpush.msra.mxu0 0.0
    %1663 = vmatpush.msra.mxu0 0.0
    %1664 = vmatpush.msra.mxu0 0.0
    %1665 = vmatpush.msra.mxu0 0.0
    %1666 = vmatpush.msra.mxu0 0.0
    %1667 = vmatpush.msra.mxu0 %v1542
    %1668 = vmatmul.f32.gmra.mxu0 %v1544
    %v1669 = vpop.f32.mrf.mxu0
    %v1670 = vadd.f32 %v1645, %v1669
    %1671 = vmatmul.f32.gmra.mxu0 %v1547
    %v1672 = vpop.f32.mrf.mxu0
    %v1673 = vadd.f32 %v1648, %v1672
    %1674 = vmatmul.f32.gmra.mxu0 %v1550
    %v1675 = vpop.f32.mrf.mxu0
    %1676 = vdwg.mxu0
    %1677 = vadd.xlane.f32.xlu0 %v1670
    %v1678 = vpop.xlane.xlu0 %1677
    %1679 = vadd.xlane.f32.xlu0 %v1673
    %v1680 = vpop.xlane.xlu0 %1679
    %v1681 = vmul.f32 %v1678, 0.0078125
    %v1682 = vmul.f32 %v1680, 0.0078125
    %v1683 = vsub.f32 %v1670, %v1681
    %v1684 = vsub.f32 %v1673, %v1682
    %v1685 = vmul.f32 %v1683, %v1683
    %v1686 = vmul.f32 %v1684, %v1684
    %1687 = vadd.xlane.f32.xlu0 %v1685
    %v1688 = vpop.xlane.xlu0 %1687
    %1689 = vadd.xlane.f32.xlu0 %v1686
    %v1690 = vpop.xlane.xlu0 %1689
    %v1691 = vmul.f32 %v1688, 0.0078125
    %v1692 = vmul.f32 %v1690, 0.0078125
    %v1693 = vadd.f32 %v1691, 1e-05
    %v1694 = vadd.f32 %v1692, 1e-05
    %v1695 = vrsqrt.pop %v1693
    %v1696 = vmul.f32 %v1695, %v1693
    %v1697 = vmul.f32 %v1696, %v1695
    %v1698 = vmul.f32 0.5, %v1697
    %v1699 = vsub.f32 1.5, %v1698
    %v1700 = vmul.f32 %v1695, %v1699
    %vm1701 = vweird.f32 %v1693
    %vm1702 = vweird.f32 %v1695
    %vm1703 = vmor %vm1701, %vm1702
    %v1704 = vsel %vm1703, %v1695, %v1700
    %v1705 = vrsqrt.pop %v1694
    %v1706 = vmul.f32 %v1705, %v1694
    %v1707 = vmul.f32 %v1706, %v1705
    %v1708 = vmul.f32 0.5, %v1707
    %v1709 = vsub.f32 1.5, %v1708
    %v1710 = vmul.f32 %v1705, %v1709
    %vm1711 = vweird.f32 %v1694
    %vm1712 = vweird.f32 %v1705
    %vm1713 = vmor %vm1711, %vm1712
    %v1714 = vsel %vm1713, %v1705, %v1710
    %v1715 = vmul.f32 %v1683, %v1704
    %v1716 = vmul.f32 %v1684, %v1714
    %s1717 = sld [smem:[#allocation3 + $0x5]]
    %s1718 = sld [smem:[#allocation6 + $0x5]]
    %s1719 = smul.f32 %s1717, %s1718
    %v1720 = vstv %s1719
    %v1721 = vmul.f32 %v1720, %v1715
    %v1722 = vadd.f32 %v1721, 0.0
    %v1723 = vstv %s1718
    %v1724 = vmul.f32 %v1723, %v197
    %v1725 = vmul.f32 %v1723, %v198
    %v1726 = vadd.f32 %v1724, 0.0
    %v1727 = vadd.f32 %v1725, 0.0
    %s1728 = sld [smem:[#allocation3 + $0x6]]
    %s1729 = sld [smem:[#allocation6 + $0x6]]
    %s1730 = smul.f32 %s1728, %s1729
    %v1731 = vstv %s1730
    %v1732 = vmul.f32 %v1731, %v1715
    %v1734 = vrot.slane %v1732, 4
    %v1736 = vadd.f32 %v1722, %v1734
    %v1737 = vstv %s1729
    %v1738 = vmul.f32 %v1737, %v199
    %v1739 = vmul.f32 %v1737, %v200
    %v1740 = vadd.f32 %v1726, %v1738
    %v1741 = vadd.f32 %v1727, %v1739
    %s1742 = sld [smem:[#allocation3 + $0x7]]
    %s1743 = sld [smem:[#allocation6 + $0x7]]
    %s1744 = smul.f32 %s1742, %s1743
    %v1745 = vstv %s1744
    %v1746 = vmul.f32 %v1745, %v1716
    %v1747 = vadd.f32 %v1736, %v1746
    %v1748 = vstv %s1743
    %v1749 = vmul.f32 %v1748, %v856
    %v1750 = vmul.f32 %v1748, %v863
    %v1751 = vadd.f32 %v1740, %v1749
    %v1752 = vadd.f32 %v1741, %v1750
    %s1753 = sld [smem:[#allocation3 + $0x8]]
    %s1754 = sld [smem:[#allocation6 + $0x8]]
    %s1755 = smul.f32 %s1753, %s1754
    %v1756 = vstv %s1755
    %v1757 = vmul.f32 %v1756, %v1716
    %v1759 = vrot.slane %v1757, 4
    %v1761 = vadd.f32 %v1747, %v1759
    %v1762 = vstv %s1754
    %v1763 = vmul.f32 %v1762, %v1319
    %v1764 = vmul.f32 %v1762, %v1326
    %v1765 = vadd.f32 %v1751, %v1763
    %v1766 = vadd.f32 %v1752, %v1764
    %v1768 = vrot.slane %v1765, 3
    %v1771 = vrot.slane %v1766, 6
    %v1773 = vrot.slane %v1766, 1
    %v1776 = vrot.slane %v1761, 5
    %v1778 = vrot.slane %v1766, 3
    %v1780 = vrot.slane %v1761, 2
    %v1782 = vrot.slane %v1765, 5
    %v1784 = vrot.slane %v1761, 7
    %v1786 = vrot.slane %v1765, 2
    %v1788 = vrot.slane %v1766, 5
    %v1790 = vsel %vm844, %v1761, %v1768
    %v1791 = vsel %vm846, %v1790, %v1771
    %v1792 = vsel %vm848, %v1791, %v1773
    %v1793 = vsel %vm393, %v1792, %v1776
    %v1794 = vsel %vm851, %v1793, %v1765
    %v1795 = vsel %vm853, %v1794, %v1778
    %v1796 = vsel %vm855, %v1795, %v1771
    %v1797 = vsel %vm844, %v1780, %v1782
    %v1798 = vsel %vm846, %v1797, %v1766
    %v1799 = vsel %vm848, %v1798, %v1778
    %v1800 = vsel %vm393, %v1799, %v1784
    %v1801 = vsel %vm851, %v1800, %v1786
    %v1802 = vsel %vm853, %v1801, %v1788
    %v1803 = vsel %vm855, %v1802, %v1766
    %v1804 = vmax.f32 %v1796, 0.0
    %1805 = vrot.lane.b32.xlu0 %v1804, 36
    %v1806 = vpop.permute.xlu0 %1805
    %v1807 = vmul.f32 %v1806, %v273
    %1808 = vrot.lane.b32.xlu0 %v1804, 34
    %v1809 = vpop.permute.xlu0 %1808
    %v1810 = vmul.f32 %v1809, %v277
    %1811 = vrot.lane.b32.xlu0 %v1804, 32
    %v1812 = vpop.permute.xlu0 %1811
    %v1813 = vmul.f32 %v1812, %v281
    %1814 = vrot.lane.b32.xlu0 %v1804, 30
    %v1815 = vpop.permute.xlu0 %1814
    %v1816 = vmul.f32 %v1815, %v285
    %1817 = vrot.lane.b32.xlu0 %v1804, 28
    %v1818 = vpop.permute.xlu0 %1817
    %v1819 = vmul.f32 %v1818, %v289
    %1820 = vrot.lane.b32.xlu0 %v1804, 20
    %v1821 = vpop.permute.xlu0 %1820
    %v1822 = vmul.f32 %v1821, %v293
    %1823 = vrot.lane.b32.xlu0 %v1804, 18
    %v1824 = vpop.permute.xlu0 %1823
    %v1825 = vmul.f32 %v1824, %v297
    %1826 = vrot.lane.b32.xlu0 %v1804, 16
    %v1827 = vpop.permute.xlu0 %1826
    %v1828 = vmul.f32 %v1827, %v301
    %1829 = vrot.lane.b32.xlu0 %v1804, 14
    %v1830 = vpop.permute.xlu0 %1829
    %v1831 = vmul.f32 %v1830, %v305
    %1832 = vrot.lane.b32.xlu0 %v1804, 12
    %v1833 = vpop.permute.xlu0 %1832
    %v1834 = vmul.f32 %v1833, %v309
    %1835 = vrot.lane.b32.xlu0 %v1804, 4
    %v1836 = vpop.permute.xlu0 %1835
    %v1837 = vmul.f32 %v1836, %v313
    %1838 = vrot.lane.b32.xlu0 %v1804, 2
    %v1839 = vpop.permute.xlu0 %1838
    %v1840 = vmul.f32 %v1839, %v317
    %v1841 = vmul.f32 %v1804, %v319
    %1842 = vrot.lane.b32.xlu0 %v1804, 126
    %v1843 = vpop.permute.xlu0 %1842
    %v1844 = vmul.f32 %v1843, %v323
    %1845 = vrot.lane.b32.xlu0 %v1804, 124
    %v1846 = vpop.permute.xlu0 %1845
    %v1847 = vmul.f32 %v1846, %v327
    %1848 = vrot.lane.b32.xlu0 %v1804, 116
    %v1849 = vpop.permute.xlu0 %1848
    %v1850 = vmul.f32 %v1849, %v331
    %1851 = vrot.lane.b32.xlu0 %v1804, 114
    %v1852 = vpop.permute.xlu0 %1851
    %v1853 = vmul.f32 %v1852, %v335
    %1854 = vrot.lane.b32.xlu0 %v1804, 112
    %v1855 = vpop.permute.xlu0 %1854
    %v1856 = vmul.f32 %v1855, %v339
    %1857 = vrot.lane.b32.xlu0 %v1804, 110
    %v1858 = vpop.permute.xlu0 %1857
    %v1859 = vmul.f32 %v1858, %v343
    %1860 = vrot.lane.b32.xlu0 %v1804, 108
    %v1861 = vpop.permute.xlu0 %1860
    %v1862 = vmul.f32 %v1861, %v347
    %1863 = vrot.lane.b32.xlu0 %v1804, 100
    %v1864 = vpop.permute.xlu0 %1863
    %v1865 = vmul.f32 %v1864, %v351
    %1866 = vrot.lane.b32.xlu0 %v1804, 98
    %v1867 = vpop.permute.xlu0 %1866
    %v1868 = vmul.f32 %v1867, %v355
    %1869 = vrot.lane.b32.xlu0 %v1804, 96
    %v1870 = vpop.permute.xlu0 %1869
    %v1871 = vmul.f32 %v1870, %v359
    %1872 = vrot.lane.b32.xlu0 %v1804, 94
    %v1873 = vpop.permute.xlu0 %1872
    %v1874 = vmul.f32 %v1873, %v363
    %1875 = vrot.lane.b32.xlu0 %v1804, 92
    %v1876 = vpop.permute.xlu0 %1875
    %v1877 = vmul.f32 %v1876, %v367
    %v1879 = vrot.slane %v1810, 4
    %v1882 = vrot.slane %v1816, 4
    %v1885 = vrot.slane %v1822, 4
    %v1888 = vrot.slane %v1828, 4
    %v1891 = vrot.slane %v1834, 4
    %v1894 = vrot.slane %v1840, 4
    %v1897 = vrot.slane %v1844, 4
    %v1900 = vrot.slane %v1850, 4
    %v1902 = vsel %vm393, %v1807, %v1879
    %v1903 = vsel %vm393, %v1813, %v1882
    %v1904 = vsel %vm393, %v1819, %v1885
    %v1905 = vsel %vm393, %v1825, %v1888
    %v1906 = vsel %vm393, %v1831, %v1891
    %v1907 = vsel %vm393, %v1837, %v1894
    %v1908 = vsel %vm393, %v1841, %v1897
    %v1909 = vsel %vm393, %v1847, %v1900
    %v1911 = vrot.slane %v1856, 4
    %v1914 = vrot.slane %v1862, 4
    %v1917 = vrot.slane %v1868, 4
    %v1920 = vrot.slane %v1874, 4
    %v1922 = vsel %vm393, %v1853, %v1911
    %v1923 = vsel %vm393, %v1859, %v1914
    %v1924 = vsel %vm393, %v1865, %v1917
    %v1925 = vsel %vm393, %v1871, %v1920
    %1926 = vst [vmem:[#allocation2 + $0x1a0] sm:$0xff] %v1902
    %1927 = vst [vmem:[#allocation2 + $0x1a8] sm:$0xff] %v1903
    %1928 = vst [vmem:[#allocation2 + $0x1b0] sm:$0xff] %v1904
    %1929 = vst [vmem:[#allocation2 + $0x1b8] sm:$0xff] %v1905
    %1930 = vst [vmem:[#allocation2 + $0x1c0] sm:$0xff] %v1906
    %1931 = vst [vmem:[#allocation2 + $0x1c8] sm:$0xff] %v1907
    %1932 = vst [vmem:[#allocation2 + $0x1d0] sm:$0xff] %v1908
    %1933 = vst [vmem:[#allocation2 + $0x1d8] sm:$0xff] %v1909
    %1934 = vst [vmem:[#allocation2 + $0x1e0] sm:$0xff] %v1922
    %1935 = vst [vmem:[#allocation2 + $0x1e8] sm:$0xff] %v1923
    %1936 = vst [vmem:[#allocation2 + $0x1f0] sm:$0xff] %v1924
    %1937 = vst [vmem:[#allocation2 + $0x1f8] sm:$0xff] %v1925
    %1938 = vst [vmem:[#allocation2 + $0x200] sm:$0xf] %v1877
    %s1939 = scalar_lea.vmem [#allocation8], 360
    %v1940 = vld [vmem:[%s1939] sm:$0xff]
    %v1941 = vld [vmem:[%s1939 + $0x8] sm:$0xff]
    %v1942 = vld [vmem:[%s1939 + $0x10] sm:$0xff]
    %v1943 = vld [vmem:[%s1939 + $0x18] sm:$0xff]
    %v1944 = vld [vmem:[%s1939 + $0x20] sm:$0xff]
    %v1945 = vld [vmem:[%s1939 + $0x28] sm:$0xff]
    %v1946 = vld [vmem:[%s1939 + $0x30] sm:$0xff]
    %v1947 = vld [vmem:[%s1939 + $0x38] sm:$0xff]
    %v1948 = vld [vmem:[%s1939 + $0x40] sm:$0xff]
    %v1949 = vld [vmem:[%s1939 + $0x48] sm:$0xff]
    %v1950 = vld [vmem:[%s1939 + $0x50] sm:$0xf]
    %v1951 = vld [vmem:[%s1939 + $0x58] sm:$0xf]
    %v1952 = vld [vmem:[%s1939 + $0x60] sm:$0xf]
    %v1953 = vld [vmem:[%s1939 + $0x68] sm:$0xf]
    %v1954 = vld [vmem:[%s1939 + $0x70] sm:$0xf]
    %v1955 = vld [vmem:[#allocation2] sm:$0xff]
    %v1956 = vld [vmem:[#allocation2 + $0x8] sm:$0xff]
    %v1957 = vld [vmem:[#allocation2 + $0x10] sm:$0xff]
    %v1958 = vld [vmem:[#allocation2 + $0x18] sm:$0xff]
    %v1959 = vld [vmem:[#allocation2 + $0x20] sm:$0xff]
    %v1960 = vld [vmem:[#allocation2 + $0x28] sm:$0xff]
    %v1961 = vld [vmem:[#allocation2 + $0x30] sm:$0xff]
    %v1962 = vld [vmem:[#allocation2 + $0x38] sm:$0xff]
    %v1963 = vld [vmem:[#allocation2 + $0x40] sm:$0xff]
    %v1964 = vld [vmem:[#allocation2 + $0x48] sm:$0xff]
    %v1965 = vld [vmem:[#allocation2 + $0x50] sm:$0xff]
    %v1966 = vld [vmem:[#allocation2 + $0x58] sm:$0xff]
    %v1967 = vld [vmem:[#allocation2 + $0x60] sm:$0xff]
    %v1968 = vld [vmem:[#allocation2 + $0x68] sm:$0xff]
    %v1969 = vld [vmem:[#allocation2 + $0x70] sm:$0xff]
    %v1970 = vld [vmem:[#allocation2 + $0x78] sm:$0xff]
    %v1971 = vld [vmem:[#allocation2 + $0x80] sm:$0xff]
    %v1972 = vld [vmem:[#allocation2 + $0x88] sm:$0xff]
    %v1973 = vld [vmem:[#allocation2 + $0x90] sm:$0xff]
    %v1974 = vld [vmem:[#allocation2 + $0x98] sm:$0xff]
    %v1975 = vld [vmem:[#allocation2 + $0xa0] sm:$0xff]
    %v1976 = vld [vmem:[#allocation2 + $0xa8] sm:$0xff]
    %v1977 = vld [vmem:[#allocation2 + $0xb0] sm:$0xff]
    %v1978 = vld [vmem:[#allocation2 + $0xb8] sm:$0xff]
    %v1979 = vld [vmem:[#allocation2 + $0xc0] sm:$0xff]
    %v1980 = vld [vmem:[#allocation2 + $0xc8] sm:$0xff]
    %v1981 = vld [vmem:[#allocation2 + $0xd0] sm:$0xff]
    %v1982 = vld [vmem:[#allocation2 + $0xd8] sm:$0xff]
    %v1983 = vld [vmem:[#allocation2 + $0xe0] sm:$0xff]
    %v1984 = vld [vmem:[#allocation2 + $0xe8] sm:$0xff]
    %v1985 = vld [vmem:[#allocation2 + $0xf0] sm:$0xff]
    %v1986 = vld [vmem:[#allocation2 + $0xf8] sm:$0xff]
    %v1987 = vld [vmem:[#allocation2 + $0x100] sm:$0xff]
    %v1988 = vld [vmem:[#allocation2 + $0x108] sm:$0xff]
    %v1989 = vld [vmem:[#allocation2 + $0x110] sm:$0xff]
    %v1990 = vld [vmem:[#allocation2 + $0x118] sm:$0xff]
    %v1991 = vld [vmem:[#allocation2 + $0x120] sm:$0xff]
    %v1992 = vld [vmem:[#allocation2 + $0x128] sm:$0xff]
    %v1993 = vld [vmem:[#allocation2 + $0x130] sm:$0xff]
    %v1994 = vld [vmem:[#allocation2 + $0x138] sm:$0xff]
    %v1995 = vld [vmem:[#allocation2 + $0x140] sm:$0xff]
    %v1996 = vld [vmem:[#allocation2 + $0x148] sm:$0xff]
    %v1997 = vld [vmem:[#allocation2 + $0x150] sm:$0xff]
    %v1998 = vld [vmem:[#allocation2 + $0x158] sm:$0xff]
    %v1999 = vld [vmem:[#allocation2 + $0x160] sm:$0xff]
    %v2000 = vld [vmem:[#allocation2 + $0x168] sm:$0xff]
    %v2001 = vld [vmem:[#allocation2 + $0x170] sm:$0xff]
    %v2002 = vld [vmem:[#allocation2 + $0x178] sm:$0xff]
    %v2003 = vld [vmem:[#allocation2 + $0x180] sm:$0xff]
    %v2004 = vld [vmem:[#allocation2 + $0x188] sm:$0xff]
    %v2005 = vld [vmem:[#allocation2 + $0x190] sm:$0xff]
    %v2006 = vld [vmem:[#allocation2 + $0x198] sm:$0xff]
    %v2007 = vld [vmem:[#allocation2 + $0x1a0] sm:$0xff]
    %v2008 = vld [vmem:[#allocation2 + $0x1a8] sm:$0xff]
    %v2009 = vld [vmem:[#allocation2 + $0x1b0] sm:$0xff]
    %v2010 = vld [vmem:[#allocation2 + $0x1b8] sm:$0xff]
    %v2011 = vld [vmem:[#allocation2 + $0x1c0] sm:$0xff]
    %v2012 = vld [vmem:[#allocation2 + $0x1c8] sm:$0xff]
    %v2013 = vld [vmem:[#allocation2 + $0x1d0] sm:$0xff]
    %v2014 = vld [vmem:[#allocation2 + $0x1d8] sm:$0xff]
    %v2015 = vld [vmem:[#allocation2 + $0x1e0] sm:$0xff]
    %v2016 = vld [vmem:[#allocation2 + $0x1e8] sm:$0xff]
    %v2017 = vld [vmem:[#allocation2 + $0x1f0] sm:$0xff]
    %v2018 = vld [vmem:[#allocation2 + $0x1f8] sm:$0xff]
    %v2019 = vld [vmem:[#allocation2 + $0x200] sm:$0xff]
    %v2021 = vsel %vm646, %v1944, 0
    %v2024 = vsel %vm646, %v1949, 0
    %v2027 = vsel %vm646, %v1954, 0
    %2029 = vmatpush.msra.mxu0 %v1970
    %2030 = vmatpush.msra.mxu0 %v1969
    %2031 = vmatpush.msra.mxu0 %v1968
    %2032 = vmatpush.msra.mxu0 %v1967
    %2033 = vmatpush.msra.mxu0 %v1966
    %2034 = vmatpush.msra.mxu0 %v1965
    %2035 = vmatpush.msra.mxu0 %v1964
    %2036 = vmatpush.msra.mxu0 %v1963
    %2037 = vmatpush.msra.mxu0 %v1962
    %2038 = vmatpush.msra.mxu0 %v1961
    %2039 = vmatpush.msra.mxu0 %v1960
    %2040 = vmatpush.msra.mxu0 %v1959
    %2041 = vmatpush.msra.mxu0 %v1958
    %2042 = vmatpush.msra.mxu0 %v1957
    %2043 = vmatpush.msra.mxu0 %v1956
    %2044 = vmatpush.msra.mxu0 %v1955
    %2045 = vmatmul.f32.gmra.mxu0 %v1940
    %v2046 = vpop.f32.mrf.mxu0
    %v2047 = vadd.f32 0.0, %v2046
    %2048 = vmatmul.f32.gmra.mxu0 %v1945
    %v2049 = vpop.f32.mrf.mxu0
    %v2050 = vadd.f32 0.0, %v2049
    %2051 = vmatmul.f32.gmra.mxu0 %v1950
    %v2052 = vpop.f32.mrf.mxu0
    %v2053 = vadd.f32 0.0, %v2052
    %2054 = vdwg.mxu0
    %2055 = vmatpush.msra.mxu0 %v1986
    %2056 = vmatpush.msra.mxu0 %v1985
    %2057 = vmatpush.msra.mxu0 %v1984
    %2058 = vmatpush.msra.mxu0 %v1983
    %2059 = vmatpush.msra.mxu0 %v1982
    %2060 = vmatpush.msra.mxu0 %v1981
    %2061 = vmatpush.msra.mxu0 %v1980
    %2062 = vmatpush.msra.mxu0 %v1979
    %2063 = vmatpush.msra.mxu0 %v1978
    %2064 = vmatpush.msra.mxu0 %v1977
    %2065 = vmatpush.msra.mxu0 %v1976
    %2066 = vmatpush.msra.mxu0 %v1975
    %2067 = vmatpush.msra.mxu0 %v1974
    %2068 = vmatpush.msra.mxu0 %v1973
    %2069 = vmatpush.msra.mxu0 %v1972
    %2070 = vmatpush.msra.mxu0 %v1971
    %2071 = vmatmul.f32.gmra.mxu0 %v1941
    %v2072 = vpop.f32.mrf.mxu0
    %v2073 = vadd.f32 %v2047, %v2072
    %2074 = vmatmul.f32.gmra.mxu0 %v1946
    %v2075 = vpop.f32.mrf.mxu0
    %v2076 = vadd.f32 %v2050, %v2075
    %2077 = vmatmul.f32.gmra.mxu0 %v1951
    %v2078 = vpop.f32.mrf.mxu0
    %v2079 = vadd.f32 %v2053, %v2078
    %2080 = vdwg.mxu0
    %2081 = vmatpush.msra.mxu0 %v2002
    %2082 = vmatpush.msra.mxu0 %v2001
    %2083 = vmatpush.msra.mxu0 %v2000
    %2084 = vmatpush.msra.mxu0 %v1999
    %2085 = vmatpush.msra.mxu0 %v1998
    %2086 = vmatpush.msra.mxu0 %v1997
    %2087 = vmatpush.msra.mxu0 %v1996
    %2088 = vmatpush.msra.mxu0 %v1995
    %2089 = vmatpush.msra.mxu0 %v1994
    %2090 = vmatpush.msra.mxu0 %v1993
    %2091 = vmatpush.msra.mxu0 %v1992
    %2092 = vmatpush.msra.mxu0 %v1991
    %2093 = vmatpush.msra.mxu0 %v1990
    %2094 = vmatpush.msra.mxu0 %v1989
    %2095 = vmatpush.msra.mxu0 %v1988
    %2096 = vmatpush.msra.mxu0 %v1987
    %2097 = vmatmul.f32.gmra.mxu0 %v1942
    %v2098 = vpop.f32.mrf.mxu0
    %v2099 = vadd.f32 %v2073, %v2098
    %2100 = vmatmul.f32.gmra.mxu0 %v1947
    %v2101 = vpop.f32.mrf.mxu0
    %v2102 = vadd.f32 %v2076, %v2101
    %2103 = vmatmul.f32.gmra.mxu0 %v1952
    %v2104 = vpop.f32.mrf.mxu0
    %v2105 = vadd.f32 %v2079, %v2104
    %2106 = vdwg.mxu0
    %2107 = vmatpush.msra.mxu0 %v2018
    %2108 = vmatpush.msra.mxu0 %v2017
    %2109 = vmatpush.msra.mxu0 %v2016
    %2110 = vmatpush.msra.mxu0 %v2015
    %2111 = vmatpush.msra.mxu0 %v2014
    %2112 = vmatpush.msra.mxu0 %v2013
    %2113 = vmatpush.msra.mxu0 %v2012
    %2114 = vmatpush.msra.mxu0 %v2011
    %2115 = vmatpush.msra.mxu0 %v2010
    %2116 = vmatpush.msra.mxu0 %v2009
    %2117 = vmatpush.msra.mxu0 %v2008
    %2118 = vmatpush.msra.mxu0 %v2007
    %2119 = vmatpush.msra.mxu0 %v2006
    %2120 = vmatpush.msra.mxu0 %v2005
    %2121 = vmatpush.msra.mxu0 %v2004
    %2122 = vmatpush.msra.mxu0 %v2003
    %2123 = vmatmul.f32.gmra.mxu0 %v1943
    %v2124 = vpop.f32.mrf.mxu0
    %v2125 = vadd.f32 %v2099, %v2124
    %2126 = vmatmul.f32.gmra.mxu0 %v1948
    %v2127 = vpop.f32.mrf.mxu0
    %v2128 = vadd.f32 %v2102, %v2127
    %2129 = vmatmul.f32.gmra.mxu0 %v1953
    %v2130 = vpop.f32.mrf.mxu0
    %v2131 = vadd.f32 %v2105, %v2130
    %2132 = vdwg.mxu0
    %2133 = vmatpush.msra.mxu0 0.0
    %2134 = vmatpush.msra.mxu0 0.0
    %2135 = vmatpush.msra.mxu0 0.0
    %2136 = vmatpush.msra.mxu0 0.0
    %2137 = vmatpush.msra.mxu0 0.0
    %2138 = vmatpush.msra.mxu0 0.0
    %2139 = vmatpush.msra.mxu0 0.0
    %2140 = vmatpush.msra.mxu0 0.0
    %2141 = vmatpush.msra.mxu0 0.0
    %2142 = vmatpush.msra.mxu0 0.0
    %2143 = vmatpush.msra.mxu0 0.0
    %2144 = vmatpush.msra.mxu0 0.0
    %2145 = vmatpush.msra.mxu0 0.0
    %2146 = vmatpush.msra.mxu0 0.0
    %2147 = vmatpush.msra.mxu0 0.0
    %2148 = vmatpush.msra.mxu0 %v2019
    %2149 = vmatmul.f32.gmra.mxu0 %v2021
    %v2150 = vpop.f32.mrf.mxu0
    %v2151 = vadd.f32 %v2125, %v2150
    %2152 = vmatmul.f32.gmra.mxu0 %v2024
    %v2153 = vpop.f32.mrf.mxu0
    %v2154 = vadd.f32 %v2128, %v2153
    %2155 = vmatmul.f32.gmra.mxu0 %v2027
    %v2156 = vpop.f32.mrf.mxu0
    %v2157 = vadd.f32 %v2131, %v2156
    %2158 = vdwg.mxu0
    %2159 = vadd.xlane.f32.xlu0 %v2151
    %v2160 = vpop.xlane.xlu0 %2159
    %2161 = vadd.xlane.f32.xlu0 %v2154
    %v2162 = vpop.xlane.xlu0 %2161
    %v2163 = vsel %vm393, %v2157, 0.0
    %2164 = vadd.xlane.f32.xlu0 %v2163
    %v2165 = vpop.xlane.xlu0 %2164
    %v2166 = vmul.f32 %v2160, 0.0078125
    %v2167 = vmul.f32 %v2162, 0.0078125
    %v2168 = vmul.f32 %v2165, 0.0078125
    %v2169 = vsub.f32 %v2151, %v2166
    %v2170 = vsub.f32 %v2154, %v2167
    %v2171 = vsub.f32 %v2157, %v2168
    %v2172 = vmul.f32 %v2169, %v2169
    %v2173 = vmul.f32 %v2170, %v2170
    %v2174 = vmul.f32 %v2171, %v2171
    %2175 = vadd.xlane.f32.xlu0 %v2172
    %v2176 = vpop.xlane.xlu0 %2175
    %2177 = vadd.xlane.f32.xlu0 %v2173
    %v2178 = vpop.xlane.xlu0 %2177
    %v2179 = vsel %vm393, %v2174, 0.0
    %2180 = vadd.xlane.f32.xlu0 %v2179
    %v2181 = vpop.xlane.xlu0 %2180
    %v2182 = vmul.f32 %v2176, 0.0078125
    %v2183 = vmul.f32 %v2178, 0.0078125
    %v2184 = vmul.f32 %v2181, 0.0078125
    %v2185 = vadd.f32 %v2182, 1e-05
    %v2186 = vadd.f32 %v2183, 1e-05
    %v2187 = vadd.f32 %v2184, 1e-05
    %v2188 = vrsqrt.pop %v2185
    %v2189 = vmul.f32 %v2188, %v2185
    %v2190 = vmul.f32 %v2189, %v2188
    %v2191 = vmul.f32 0.5, %v2190
    %v2192 = vsub.f32 1.5, %v2191
    %v2193 = vmul.f32 %v2188, %v2192
    %vm2194 = vweird.f32 %v2185
    %vm2195 = vweird.f32 %v2188
    %vm2196 = vmor %vm2194, %vm2195
    %v2197 = vsel %vm2196, %v2188, %v2193
    %v2198 = vrsqrt.pop %v2186
    %v2199 = vmul.f32 %v2198, %v2186
    %v2200 = vmul.f32 %v2199, %v2198
    %v2201 = vmul.f32 0.5, %v2200
    %v2202 = vsub.f32 1.5, %v2201
    %v2203 = vmul.f32 %v2198, %v2202
    %vm2204 = vweird.f32 %v2186
    %vm2205 = vweird.f32 %v2198
    %vm2206 = vmor %vm2204, %vm2205
    %v2207 = vsel %vm2206, %v2198, %v2203
    %v2208 = vrsqrt.pop %v2187
    %v2209 = vmul.f32 %v2208, %v2187
    %v2210 = vmul.f32 %v2209, %v2208
    %v2211 = vmul.f32 0.5, %v2210
    %v2212 = vsub.f32 1.5, %v2211
    %v2213 = vmul.f32 %v2208, %v2212
    %vm2214 = vweird.f32 %v2187
    %vm2215 = vweird.f32 %v2208
    %vm2216 = vmor %vm2214, %vm2215
    %v2217 = vsel %vm2216, %v2208, %v2213
    %v2218 = vmul.f32 %v2169, %v2197
    %v2219 = vmul.f32 %v2170, %v2207
    %v2220 = vmul.f32 %v2171, %v2217
    %s2221 = sld [smem:[#allocation3 + $0x9]]
    %s2222 = sld [smem:[#allocation6 + $0x9]]
    %s2223 = smul.f32 %s2221, %s2222
    %v2224 = vstv %s2223
    %v2225 = vmul.f32 %v2224, %v2218
    %v2226 = vadd.f32 %v2225, 0.0
    %v2227 = vstv %s2222
    %v2228 = vmul.f32 %v2227, %v197
    %v2229 = vmul.f32 %v2227, %v198
    %v2230 = vadd.f32 %v2228, 0.0
    %v2231 = vadd.f32 %v2229, 0.0
    %s2232 = sld [smem:[#allocation3 + $0xa]]
    %s2233 = sld [smem:[#allocation6 + $0xa]]
    %s2234 = smul.f32 %s2232, %s2233
    %v2235 = vstv %s2234
    %v2236 = vmul.f32 %v2235, %v2218
    %v2238 = vrot.slane %v2236, 4
    %v2240 = vadd.f32 %v2226, %v2238
    %v2241 = vstv %s2233
    %v2242 = vmul.f32 %v2241, %v199
    %v2243 = vmul.f32 %v2241, %v200
    %v2244 = vadd.f32 %v2230, %v2242
    %v2245 = vadd.f32 %v2231, %v2243
    %s2246 = sld [smem:[#allocation3 + $0xb]]
    %s2247 = sld [smem:[#allocation6 + $0xb]]
    %s2248 = smul.f32 %s2246, %s2247
    %v2249 = vstv %s2248
    %v2250 = vmul.f32 %v2249, %v2219
    %v2251 = vadd.f32 %v2240, %v2250
    %v2252 = vstv %s2247
    %v2253 = vmul.f32 %v2252, %v856
    %v2254 = vmul.f32 %v2252, %v863
    %v2255 = vadd.f32 %v2244, %v2253
    %v2256 = vadd.f32 %v2245, %v2254
    %s2257 = sld [smem:[#allocation3 + $0xc]]
    %s2258 = sld [smem:[#allocation6 + $0xc]]
    %s2259 = smul.f32 %s2257, %s2258
    %v2260 = vstv %s2259
    %v2261 = vmul.f32 %v2260, %v2219
    %v2263 = vrot.slane %v2261, 4
    %v2265 = vadd.f32 %v2251, %v2263
    %v2266 = vstv %s2258
    %v2267 = vmul.f32 %v2266, %v1319
    %v2268 = vmul.f32 %v2266, %v1326
    %v2269 = vadd.f32 %v2255, %v2267
    %v2270 = vadd.f32 %v2256, %v2268
    %s2271 = sld [smem:[#allocation3 + $0xd]]
    %s2272 = sld [smem:[#allocation6 + $0xd]]
    %s2273 = smul.f32 %s2271, %s2272
    %v2274 = vstv %s2273
    %v2275 = vmul.f32 %v2274, %v2220
    %v2276 = vadd.f32 %v2265, %v2275
    %v2277 = vstv %s2272
    %v2278 = vmul.f32 %v2277, %v1796
    %v2279 = vmul.f32 %v2277, %v1803
    %v2280 = vadd.f32 %v2269, %v2278
    %v2281 = vadd.f32 %v2270, %v2279
    %v2283 = vrot.slane %v2280, 3
    %v2286 = vrot.slane %v2281, 6
    %v2288 = vrot.slane %v2281, 1
    %v2291 = vrot.slane %v2276, 5
    %v2293 = vrot.slane %v2281, 3
    %v2295 = vrot.slane %v2276, 2
    %v2297 = vrot.slane %v2280, 5
    %v2299 = vrot.slane %v2276, 7
    %v2301 = vrot.slane %v2280, 2
    %v2303 = vrot.slane %v2281, 5
    %v2305 = vsel %vm844, %v2276, %v2283
    %v2306 = vsel %vm846, %v2305, %v2286
    %v2307 = vsel %vm848, %v2306, %v2288
    %v2308 = vsel %vm393, %v2307, %v2291
    %v2309 = vsel %vm851, %v2308, %v2280
    %v2310 = vsel %vm853, %v2309, %v2293
    %v2311 = vsel %vm855, %v2310, %v2286
    %v2312 = vsel %vm844, %v2295, %v2297
    %v2313 = vsel %vm846, %v2312, %v2281
    %v2314 = vsel %vm848, %v2313, %v2293
    %v2315 = vsel %vm393, %v2314, %v2299
    %v2316 = vsel %vm851, %v2315, %v2301
    %v2317 = vsel %vm853, %v2316, %v2303
    %v2318 = vsel %vm855, %v2317, %v2281
    %2319 = vst [vmem:[%s7] sm:$0xff] %v856
    %2320 = vst [vmem:[%s7 + $0x8] sm:$0xff] %v863
    %2321 = vst [vmem:[%s7 + $0x10] sm:$0xff] %v1319
    %2322 = vst [vmem:[%s7 + $0x18] sm:$0xff] %v1326
    %2323 = vst [vmem:[%s7 + $0x20] sm:$0xff] %v1796
    %2324 = vst [vmem:[%s7 + $0x28] sm:$0xff] %v1803
    %2325 = vst [vmem:[%s7 + $0x30] sm:$0xff] %v2311
    %2326 = vst [vmem:[%s7 + $0x38] sm:$0xff] %v2318
    // Predicated region
    $region42: #{_lambda_.1} parent=1 // pred_check
      _
    $region43: #{_lambda_.1} parent=1 // pred_check_branch
      %2328 = sbr.rel (0) target = $region45
    $region44: #{_lambda_.1} parent=1 // pred_region
      _
    $region45: #{_lambda_.1} parent=1 // pred_fallthru
      _
    // Predicated region
    $region46: #{_lambda_.1} parent=1 // pred_check
      _
    $region47: #{_lambda_.1} parent=1 // pred_check_branch
      %2330 = sbr.rel (0) target = $region49
    $region48: #{_lambda_.1} parent=1 // pred_region
      _
    $region49: #{_lambda_.1} parent=1 // pred_fallthru
      _
    %2331 = vsyncpa [#allocation4], 1
    %2332 = vsyncpa [#allocation5], 1
    %2333 = vsyncpa [#allocation7], 1

</llo_original>
